<compile_context>
chip_gen: v7x
topology: tpu7x:2x2x1
jax: 0.10.0
libtpu: 0.0.40
codegen_flags: <defaults>
</compile_context>

<pallas_src>
import math
from functools import partial

import jax
import jax.numpy as jnp
from jax.experimental import pallas as pl
from jax.experimental.pallas import tpu as pltpu


# ----------------------------------------------------------------------------
# LSTM cell elementwise update (gates in (i, f, o, g) column order, f32).
# Works on the stacked (2B, 4H) gates of both directions at once.
# ----------------------------------------------------------------------------
def _lstm_cell(gates, c_prev, H):
    sig = jax.nn.sigmoid(gates[:, : 3 * H])      # one contiguous EUP slab
    i = sig[:, 0 * H:1 * H]
    f = sig[:, 1 * H:2 * H]
    o = sig[:, 2 * H:3 * H]
    g = jnp.tanh(gates[:, 3 * H:])
    c_new = f * c_prev + i * g
    h_new = o * jnp.tanh(c_new)
    return h_new, c_new


# ----------------------------------------------------------------------------
# Single fused kernel: num_layers bidirectional LSTM layers + fc + residual.
# ----------------------------------------------------------------------------
def _make_fused_blstm_kernel(T, B, H, D, num_layers):
    FH = 4 * H

    def kernel(*refs):
        # refs layout:
        #   [0]              x_ref     (T*B, D)   f32, time-major flattened
        #   [1+3l .. 3+3l]   per layer l: wih (Din, 8H) bf16 (fwd cols [:4H],
        #                    bwd cols [4H:]), whh (H, 8H) bf16 (fwd|bwd),
        #                    bias (1, 8H) f32 (b_ih + b_hh, both directions)
        #   [1+3L], [2+3L]   wfc (2H, D) bf16, bfc (1, D) f32
        #   [3+3L]           out_ref   (T*B, D)   f32
        #   [4+3L], [5+3L]   p_scr (T*B, 8H) bf16, cat_scr (T*B, 2H) f32
        x_ref = refs[0]
        layer_refs = [refs[1 + 3 * l: 4 + 3 * l] for l in range(num_layers)]
        wfc_ref = refs[1 + 3 * num_layers]
        bfc_ref = refs[2 + 3 * num_layers]
        out_ref = refs[3 + 3 * num_layers]
        p_scr = refs[4 + 3 * num_layers]
        cat_scr = refs[5 + 3 * num_layers]

        # Hoisted row mask for the merged carry: rows [:B] = forward direction,
        # rows [B:] = backward direction.
        fwd_rows = jax.lax.broadcasted_iota(jnp.int32, (2 * B, FH), 0) < B

        for l in range(num_layers):
            wih_ref, whh_ref, bias_ref = layer_refs[l]

            # Prologue: hoisted input->gates projection for BOTH directions,
            # one MXU matmul over the whole sequence; stored bf16.
            xin = x_ref[...] if l == 0 else cat_scr[...]
            p_scr[...] = (
                jnp.dot(xin.astype(jnp.bfloat16), wih_ref[...],
                        preferred_element_type=jnp.float32)
                + bias_ref[...]).astype(jnp.bfloat16)

            # Merged-direction serial recurrence: ONE (2B,H)x(H,8H) matmul and
            # ONE elementwise cell update per step; the cross quadrants of hh
            # are discarded (extra FLOPs are free at ~1% MXU utilization).
            hcat = jnp.zeros((2 * B, H), jnp.float32)   # [h_fwd; h_bwd]
            ccat = jnp.zeros((2 * B, H), jnp.float32)   # [c_fwd; c_bwd]

            # T is small & static -> full trace-time unroll; carries stay in
            # vregs (no scratch traffic on the critical path).
            for t in range(T):
                rt = T - 1 - t
                hh = jnp.dot(hcat.astype(jnp.bfloat16), whh_ref[...],
                             preferred_element_type=jnp.float32)      # (2B, 8H)
                hh_sel = jnp.where(fwd_rows, hh[:, :FH], hh[:, FH:])  # (2B, 4H)
                g_pre = jnp.concatenate(
                    [p_scr[t * B:(t + 1) * B, :FH],      # fwd gates @ time t
                     p_scr[rt * B:(rt + 1) * B, FH:]],   # bwd gates @ time rt
                    axis=0).astype(jnp.float32)
                hcat, ccat = _lstm_cell(g_pre + hh_sel, ccat, H)
                cat_scr[t * B:(t + 1) * B, :H] = hcat[:B]    # fwd output @ t
                cat_scr[rt * B:(rt + 1) * B, H:] = hcat[B:]  # bwd output @ rt

        # Fused fc (Linear) + residual epilogue: the (T*B, 2H) concat never
        # leaves VMEM.
        out_ref[...] = (
            jnp.dot(cat_scr[...].astype(jnp.bfloat16), wfc_ref[...],
                    preferred_element_type=jnp.float32)
            + bfc_ref[...] + x_ref[...])

    return kernel


# ----------------------------------------------------------------------------
# Parameter initialization (PyTorch-style U(-1/sqrt(H), 1/sqrt(H))) + repacking.
# ----------------------------------------------------------------------------
def init_params(key, input_size, hidden, num_layers, output_size):
    assert output_size == input_size, \
        "residual `out += x` requires output_size == input_size"
    H = hidden
    bound = 1.0 / math.sqrt(H)
    # PyTorch gate row order is (i, f, g, o); repack to (i, f, o, g) so the
    # kernel applies sigmoid to one contiguous [:, :3H] slab, tanh to [:, 3H:].
    perm = jnp.concatenate([jnp.arange(0, H), jnp.arange(H, 2 * H),
                            jnp.arange(3 * H, 4 * H), jnp.arange(2 * H, 3 * H)])

    def uni(k, shape, b):
        return jax.random.uniform(k, shape, jnp.float32, -b, b)

    params = {"layers": []}
    for l in range(num_layers):
        d_in = input_size if l == 0 else 2 * H
        packed = []
        for _ in range(2):                      # forward, reverse
            key, k1, k2, k3, k4 = jax.random.split(key, 5)
            w_ih = uni(k1, (4 * H, d_in), bound)   # PyTorch layout (4H, d_in)
            w_hh = uni(k2, (4 * H, H), bound)
            b_ih = uni(k3, (4 * H,), bound)
            b_hh = uni(k4, (4 * H,), bound)
            packed.append(dict(
                wih_t=w_ih[perm].T,                 # (d_in, 4H)
                whh_t=w_hh[perm].T,                 # (H, 4H)
                bias=(b_ih + b_hh)[perm],           # (4H,)
            ))
        fwd, bwd = packed
        params["layers"].append(dict(
            wih=jnp.concatenate([fwd["wih_t"], bwd["wih_t"]],
                                axis=1).astype(jnp.bfloat16),   # (d_in, 8H)
            whh=jnp.concatenate([fwd["whh_t"], bwd["whh_t"]],
                                axis=1).astype(jnp.bfloat16),   # (H, 8H)
            bias=jnp.concatenate([fwd["bias"], bwd["bias"]])[None, :],  # (1, 8H)
        ))

    key, k1, k2 = jax.random.split(key, 3)
    bfc = 1.0 / math.sqrt(2 * H)
    w_fc = uni(k1, (output_size, 2 * H), bfc)      # PyTorch Linear layout
    b_fc = uni(k2, (output_size,), bfc)
    params["fc"] = dict(w_t=w_fc.T.astype(jnp.bfloat16),        # (2H, O) bf16
                        b=b_fc[None, :])                        # (1, O) f32
    return params


# ----------------------------------------------------------------------------
# Full BLSTM forward (batch_first in / out, like the PyTorch module).
# One pallas_call for the whole model.
# ----------------------------------------------------------------------------
def blstm_forward(x, params, num_layers, hidden):
    B, T, D = x.shape
    H = hidden
    assert params["fc"]["w_t"].shape[1] == D, \
        "residual `out += x` requires output_size == input_size"

    # Single transpose + flatten to time-major (T*B, D) for the fused kernel.
    x2d = jnp.transpose(x, (1, 0, 2)).reshape(T * B, D)

    flat_in = [x2d]
    for lp in params["layers"]:
        flat_in += [lp["wih"], lp["whh"], lp["bias"]]
    flat_in += [params["fc"]["w_t"], params["fc"]["b"]]

    def nbytes(a):
        return math.prod(a.shape) * jnp.dtype(a.dtype).itemsize

    buf_bytes = (sum(nbytes(a) for a in flat_in)
                 + T * B * D * 4                    # output
                 + T * B * 8 * H * 2                # p_scr (bf16)
                 + T * B * 2 * H * 4)               # cat_scr (f32)
    vmem_limit = int(min(128 << 20, max(8 << 20, 4 * buf_bytes)))

    out2d = pl.pallas_call(
        _make_fused_blstm_kernel(T, B, H, D, num_layers),
        out_shape=jax.ShapeDtypeStruct((T * B, D), jnp.float32),
        in_specs=[pl.BlockSpec(memory_space=pltpu.MemorySpace.VMEM)] * len(flat_in),
        out_specs=pl.BlockSpec(memory_space=pltpu.MemorySpace.VMEM),
        scratch_shapes=[pltpu.VMEM((T * B, 8 * H), jnp.bfloat16),   # p_scr
                        pltpu.VMEM((T * B, 2 * H), jnp.float32)],   # cat_scr
        compiler_params=pltpu.CompilerParams(vmem_limit_bytes=vmem_limit),
    )(*flat_in)

    return jnp.transpose(out2d.reshape(T, B, D), (1, 0, 2))


if __name__ == "__main__":
    # Model config (output_size == input_size is required by `out += x`).
    input_size = 32
    hidden_size = 32
    num_layers = 2
    output_size = 32
    B, T = 2, 8

    key = jax.random.PRNGKey(0)
    key, kx = jax.random.split(key)
    x = jax.random.normal(kx, (B, T, input_size), dtype=jnp.float32)
    params = init_params(key, input_size, hidden_size, num_layers, output_size)

    fwd = jax.jit(partial(blstm_forward, num_layers=num_layers,
                          hidden=hidden_size))
    out = jax.block_until_ready(fwd(x, params))

    assert out.shape == (B, T, output_size)
    assert bool(jnp.all(jnp.isfinite(out)))
    print("KERNEL_OK")
</pallas_src>

<mosaic_0001>
module attributes {stable_mosaic.version = 11 : i64} {
  func.func @kernel(%arg0: memref<16x32xf32, #tpu.memory_space<vmem>>, %arg1: memref<32x256xbf16, #tpu.memory_space<vmem>>, %arg2: memref<32x256xbf16, #tpu.memory_space<vmem>>, %arg3: memref<1x256xf32, #tpu.memory_space<vmem>>, %arg4: memref<64x256xbf16, #tpu.memory_space<vmem>>, %arg5: memref<32x256xbf16, #tpu.memory_space<vmem>>, %arg6: memref<1x256xf32, #tpu.memory_space<vmem>>, %arg7: memref<64x32xbf16, #tpu.memory_space<vmem>>, %arg8: memref<1x32xf32, #tpu.memory_space<vmem>>, %arg9: memref<16x32xf32, #tpu.memory_space<vmem>>, %arg10: memref<16x256xbf16, #tpu.memory_space<vmem>>, %arg11: memref<16x64xf32, #tpu.memory_space<vmem>>) attributes {dimension_semantics = [], scalar_prefetch = 0 : i64, scratch_operands = 2 : i64, tpu.core_type = #tpu.core_type<tc>} {
    %0 = tpu.iota {dimensions = array<i32: 0>} : vector<4x128xi32>
    %c2_i32 = arith.constant 2 : i32
    %1 = vector.broadcast %c2_i32 : i32 to vector<4x128xi32>
    %2 = arith.cmpi slt, %0, %1 : vector<4x128xi32>
    %c0 = arith.constant 0 : index
    %c0_0 = arith.constant 0 : index
    %3 = vector.load %arg0[%c0, %c0_0] : memref<16x32xf32, #tpu.memory_space<vmem>>, vector<16x32xf32>
    %4 = arith.truncf %3 : vector<16x32xf32> to vector<16x32xbf16>
    %c0_1 = arith.constant 0 : index
    %c0_2 = arith.constant 0 : index
    %5 = vector.load %arg1[%c0_1, %c0_2] : memref<32x256xbf16, #tpu.memory_space<vmem>>, vector<32x256xbf16>
    %cst = arith.constant dense<0.000000e+00> : vector<16x256xf32>
    %6 = tpu.matmul %4, %5, %cst {dimension_numbers = #tpu.dot_dimension_numbers<[1], [0], [0], [1], [0, 0, 1, 1], [], []>} : vector<16x32xbf16>, vector<32x256xbf16>, vector<16x256xf32> -> vector<16x256xf32>
    %c0_3 = arith.constant 0 : index
    %c0_4 = arith.constant 0 : index
    %7 = vector.load %arg3[%c0_3, %c0_4] : memref<1x256xf32, #tpu.memory_space<vmem>>, vector<1x256xf32>
    %8 = vector.broadcast %7 : vector<1x256xf32> to vector<16x256xf32>
    %9 = arith.addf %6, %8 : vector<16x256xf32>
    %10 = arith.truncf %9 : vector<16x256xf32> to vector<16x256xbf16>
    %c0_5 = arith.constant 0 : index
    %c0_6 = arith.constant 0 : index
    %11 = vector.load %arg10[%c0_5, %c0_6] : memref<16x256xbf16, #tpu.memory_space<vmem>>, vector<16x256xbf16>
    tpu.vector_store %arg10[%c0_5, %c0_6], %10 {strides = array<i32>} : memref<16x256xbf16, #tpu.memory_space<vmem>>, vector<16x256xbf16>,
    %cst_7 = arith.constant 0.000000e+00 : f32
    %12 = vector.broadcast %cst_7 : f32 to vector<4x32xf32>
    %cst_8 = arith.constant 0.000000e+00 : f32
    %13 = vector.broadcast %cst_8 : f32 to vector<4x32xf32>
    %14 = arith.truncf %12 : vector<4x32xf32> to vector<4x32xbf16>
    %c0_9 = arith.constant 0 : index
    %c0_10 = arith.constant 0 : index
    %15 = vector.load %arg2[%c0_9, %c0_10] : memref<32x256xbf16, #tpu.memory_space<vmem>>, vector<32x256xbf16>
    %cst_11 = arith.constant dense<0.000000e+00> : vector<4x256xf32>
    %16 = tpu.matmul %14, %15, %cst_11 {dimension_numbers = #tpu.dot_dimension_numbers<[1], [0], [0], [1], [0, 0, 1, 1], [], []>} : vector<4x32xbf16>, vector<32x256xbf16>, vector<4x256xf32> -> vector<4x256xf32>
    %17 = vector.extract_strided_slice %16 {offsets = [0, 0], sizes = [4, 128], strides = [1, 1]} : vector<4x256xf32> to vector<4x128xf32>
    %18 = vector.extract_strided_slice %16 {offsets = [0, 128], sizes = [4, 128], strides = [1, 1]} : vector<4x256xf32> to vector<4x128xf32>
    %19 = arith.select %2, %17, %18 : vector<4x128xi1>, vector<4x128xf32>
    %c0_12 = arith.constant 0 : index
    %c0_13 = arith.constant 0 : index
    %20 = vector.load %arg10[%c0_12, %c0_13] : memref<16x256xbf16, #tpu.memory_space<vmem>>, vector<2x128xbf16>
    %c14 = arith.constant 14 : index
    %c128 = arith.constant 128 : index
    %21 = vector.load %arg10[%c14, %c128] : memref<16x256xbf16, #tpu.memory_space<vmem>>, vector<2x128xbf16>
    %22 = tpu.concatenate %20, %21 in 0 : vector<2x128xbf16>, vector<2x128xbf16> -> vector<4x128xbf16>
    %23 = arith.extf %22 : vector<4x128xbf16> to vector<4x128xf32>
    %24 = arith.addf %23, %19 : vector<4x128xf32>
    %25 = vector.extract_strided_slice %24 {offsets = [0, 0], sizes = [4, 96], strides = [1, 1]} : vector<4x128xf32> to vector<4x96xf32>
    %26 = arith.negf %25 : vector<4x96xf32>
    %27 = math.exp %26 : vector<4x96xf32>
    %cst_14 = arith.constant 1.000000e+00 : f32
    %28 = vector.broadcast %cst_14 : f32 to vector<4x96xf32>
    %29 = arith.addf %28, %27 : vector<4x96xf32>
    %30 = arith.divf %28, %29 : vector<4x96xf32>
    %31 = vector.extract_strided_slice %30 {offsets = [0, 0], sizes = [4, 32], strides = [1, 1]} : vector<4x96xf32> to vector<4x32xf32>
    %32 = vector.extract_strided_slice %30 {offsets = [0, 32], sizes = [4, 32], strides = [1, 1]} : vector<4x96xf32> to vector<4x32xf32>
    %33 = vector.extract_strided_slice %30 {offsets = [0, 64], sizes = [4, 32], strides = [1, 1]} : vector<4x96xf32> to vector<4x32xf32>
    %34 = vector.extract_strided_slice %24 {offsets = [0, 96], sizes = [4, 32], strides = [1, 1]} : vector<4x128xf32> to vector<4x32xf32>
    %35 = math.tanh %34 : vector<4x32xf32>
    %36 = arith.mulf %32, %13 : vector<4x32xf32>
    %37 = arith.mulf %31, %35 : vector<4x32xf32>
    %38 = arith.addf %36, %37 : vector<4x32xf32>
    %39 = math.tanh %38 : vector<4x32xf32>
    %40 = arith.mulf %33, %39 : vector<4x32xf32>
    %41 = vector.extract_strided_slice %40 {offsets = [0, 0], sizes = [2, 32], strides = [1, 1]} : vector<4x32xf32> to vector<2x32xf32>
    %c0_15 = arith.constant 0 : index
    %c0_16 = arith.constant 0 : index
    %42 = vector.load %arg11[%c0_15, %c0_16] : memref<16x64xf32, #tpu.memory_space<vmem>>, vector<2x32xf32>
    tpu.vector_store %arg11[%c0_15, %c0_16], %41 {strides = array<i32>} : memref<16x64xf32, #tpu.memory_space<vmem>>, vector<2x32xf32>,
    %43 = vector.extract_strided_slice %40 {offsets = [2, 0], sizes = [2, 32], strides = [1, 1]} : vector<4x32xf32> to vector<2x32xf32>
    %c14_17 = arith.constant 14 : index
    %c32 = arith.constant 32 : index
    %44 = vector.load %arg11[%c14_17, %c32] : memref<16x64xf32, #tpu.memory_space<vmem>>, vector<2x32xf32>
    tpu.vector_store %arg11[%c14_17, %c32], %43 {strides = array<i32>} : memref<16x64xf32, #tpu.memory_space<vmem>>, vector<2x32xf32>,
    %45 = arith.truncf %40 : vector<4x32xf32> to vector<4x32xbf16>
    %c0_18 = arith.constant 0 : index
    %c0_19 = arith.constant 0 : index
    %46 = vector.load %arg2[%c0_18, %c0_19] : memref<32x256xbf16, #tpu.memory_space<vmem>>, vector<32x256xbf16>
    %cst_20 = arith.constant dense<0.000000e+00> : vector<4x256xf32>
    %47 = tpu.matmul %45, %46, %cst_20 {dimension_numbers = #tpu.dot_dimension_numbers<[1], [0], [0], [1], [0, 0, 1, 1], [], []>} : vector<4x32xbf16>, vector<32x256xbf16>, vector<4x256xf32> -> vector<4x256xf32>
    %48 = vector.extract_strided_slice %47 {offsets = [0, 0], sizes = [4, 128], strides = [1, 1]} : vector<4x256xf32> to vector<4x128xf32>
    %49 = vector.extract_strided_slice %47 {offsets = [0, 128], sizes = [4, 128], strides = [1, 1]} : vector<4x256xf32> to vector<4x128xf32>
    %50 = arith.select %2, %48, %49 : vector<4x128xi1>, vector<4x128xf32>
    %c2 = arith.constant 2 : index
    %c0_21 = arith.constant 0 : index
    %51 = vector.load %arg10[%c2, %c0_21] : memref<16x256xbf16, #tpu.memory_space<vmem>>, vector<2x128xbf16>
    %c12 = arith.constant 12 : index
    %c128_22 = arith.constant 128 : index
    %52 = vector.load %arg10[%c12, %c128_22] : memref<16x256xbf16, #tpu.memory_space<vmem>>, vector<2x128xbf16>
    %53 = tpu.concatenate %51, %52 in 0 : vector<2x128xbf16>, vector<2x128xbf16> -> vector<4x128xbf16>
    %54 = arith.extf %53 : vector<4x128xbf16> to vector<4x128xf32>
    %55 = arith.addf %54, %50 : vector<4x128xf32>
    %56 = vector.extract_strided_slice %55 {offsets = [0, 0], sizes = [4, 96], strides = [1, 1]} : vector<4x128xf32> to vector<4x96xf32>
    %57 = arith.negf %56 : vector<4x96xf32>
    %58 = math.exp %57 : vector<4x96xf32>
    %cst_23 = arith.constant 1.000000e+00 : f32
    %59 = vector.broadcast %cst_23 : f32 to vector<4x96xf32>
    %60 = arith.addf %59, %58 : vector<4x96xf32>
    %61 = arith.divf %59, %60 : vector<4x96xf32>
    %62 = vector.extract_strided_slice %61 {offsets = [0, 0], sizes = [4, 32], strides = [1, 1]} : vector<4x96xf32> to vector<4x32xf32>
    %63 = vector.extract_strided_slice %61 {offsets = [0, 32], sizes = [4, 32], strides = [1, 1]} : vector<4x96xf32> to vector<4x32xf32>
    %64 = vector.extract_strided_slice %61 {offsets = [0, 64], sizes = [4, 32], strides = [1, 1]} : vector<4x96xf32> to vector<4x32xf32>
    %65 = vector.extract_strided_slice %55 {offsets = [0, 96], sizes = [4, 32], strides = [1, 1]} : vector<4x128xf32> to vector<4x32xf32>
    %66 = math.tanh %65 : vector<4x32xf32>
    %67 = arith.mulf %63, %38 : vector<4x32xf32>
    %68 = arith.mulf %62, %66 : vector<4x32xf32>
    %69 = arith.addf %67, %68 : vector<4x32xf32>
    %70 = math.tanh %69 : vector<4x32xf32>
    %71 = arith.mulf %64, %70 : vector<4x32xf32>
    %72 = vector.extract_strided_slice %71 {offsets = [0, 0], sizes = [2, 32], strides = [1, 1]} : vector<4x32xf32> to vector<2x32xf32>
    %c2_24 = arith.constant 2 : index
    %c0_25 = arith.constant 0 : index
    %73 = vector.load %arg11[%c2_24, %c0_25] : memref<16x64xf32, #tpu.memory_space<vmem>>, vector<2x32xf32>
    tpu.vector_store %arg11[%c2_24, %c0_25], %72 {strides = array<i32>} : memref<16x64xf32, #tpu.memory_space<vmem>>, vector<2x32xf32>,
    %74 = vector.extract_strided_slice %71 {offsets = [2, 0], sizes = [2, 32], strides = [1, 1]} : vector<4x32xf32> to vector<2x32xf32>
    %c12_26 = arith.constant 12 : index
    %c32_27 = arith.constant 32 : index
    %75 = vector.load %arg11[%c12_26, %c32_27] : memref<16x64xf32, #tpu.memory_space<vmem>>, vector<2x32xf32>
    tpu.vector_store %arg11[%c12_26, %c32_27], %74 {strides = array<i32>} : memref<16x64xf32, #tpu.memory_space<vmem>>, vector<2x32xf32>,
    %76 = arith.truncf %71 : vector<4x32xf32> to vector<4x32xbf16>
    %c0_28 = arith.constant 0 : index
    %c0_29 = arith.constant 0 : index
    %77 = vector.load %arg2[%c0_28, %c0_29] : memref<32x256xbf16, #tpu.memory_space<vmem>>, vector<32x256xbf16>
    %cst_30 = arith.constant dense<0.000000e+00> : vector<4x256xf32>
    %78 = tpu.matmul %76, %77, %cst_30 {dimension_numbers = #tpu.dot_dimension_numbers<[1], [0], [0], [1], [0, 0, 1, 1], [], []>} : vector<4x32xbf16>, vector<32x256xbf16>, vector<4x256xf32> -> vector<4x256xf32>
    %79 = vector.extract_strided_slice %78 {offsets = [0, 0], sizes = [4, 128], strides = [1, 1]} : vector<4x256xf32> to vector<4x128xf32>
    %80 = vector.extract_strided_slice %78 {offsets = [0, 128], sizes = [4, 128], strides = [1, 1]} : vector<4x256xf32> to vector<4x128xf32>
    %81 = arith.select %2, %79, %80 : vector<4x128xi1>, vector<4x128xf32>
    %c4 = arith.constant 4 : index
    %c0_31 = arith.constant 0 : index
    %82 = vector.load %arg10[%c4, %c0_31] : memref<16x256xbf16, #tpu.memory_space<vmem>>, vector<2x128xbf16>
    %c10 = arith.constant 10 : index
    %c128_32 = arith.constant 128 : index
    %83 = vector.load %arg10[%c10, %c128_32] : memref<16x256xbf16, #tpu.memory_space<vmem>>, vector<2x128xbf16>
    %84 = tpu.concatenate %82, %83 in 0 : vector<2x128xbf16>, vector<2x128xbf16> -> vector<4x128xbf16>
    %85 = arith.extf %84 : vector<4x128xbf16> to vector<4x128xf32>
    %86 = arith.addf %85, %81 : vector<4x128xf32>
    %87 = vector.extract_strided_slice %86 {offsets = [0, 0], sizes = [4, 96], strides = [1, 1]} : vector<4x128xf32> to vector<4x96xf32>
    %88 = arith.negf %87 : vector<4x96xf32>
    %89 = math.exp %88 : vector<4x96xf32>
    %cst_33 = arith.constant 1.000000e+00 : f32
    %90 = vector.broadcast %cst_33 : f32 to vector<4x96xf32>
    %91 = arith.addf %90, %89 : vector<4x96xf32>
    %92 = arith.divf %90, %91 : vector<4x96xf32>
    %93 = vector.extract_strided_slice %92 {offsets = [0, 0], sizes = [4, 32], strides = [1, 1]} : vector<4x96xf32> to vector<4x32xf32>
    %94 = vector.extract_strided_slice %92 {offsets = [0, 32], sizes = [4, 32], strides = [1, 1]} : vector<4x96xf32> to vector<4x32xf32>
    %95 = vector.extract_strided_slice %92 {offsets = [0, 64], sizes = [4, 32], strides = [1, 1]} : vector<4x96xf32> to vector<4x32xf32>
    %96 = vector.extract_strided_slice %86 {offsets = [0, 96], sizes = [4, 32], strides = [1, 1]} : vector<4x128xf32> to vector<4x32xf32>
    %97 = math.tanh %96 : vector<4x32xf32>
    %98 = arith.mulf %94, %69 : vector<4x32xf32>
    %99 = arith.mulf %93, %97 : vector<4x32xf32>
    %100 = arith.addf %98, %99 : vector<4x32xf32>
    %101 = math.tanh %100 : vector<4x32xf32>
    %102 = arith.mulf %95, %101 : vector<4x32xf32>
    %103 = vector.extract_strided_slice %102 {offsets = [0, 0], sizes = [2, 32], strides = [1, 1]} : vector<4x32xf32> to vector<2x32xf32>
    %c4_34 = arith.constant 4 : index
    %c0_35 = arith.constant 0 : index
    %104 = vector.load %arg11[%c4_34, %c0_35] : memref<16x64xf32, #tpu.memory_space<vmem>>, vector<2x32xf32>
    tpu.vector_store %arg11[%c4_34, %c0_35], %103 {strides = array<i32>} : memref<16x64xf32, #tpu.memory_space<vmem>>, vector<2x32xf32>,
    %105 = vector.extract_strided_slice %102 {offsets = [2, 0], sizes = [2, 32], strides = [1, 1]} : vector<4x32xf32> to vector<2x32xf32>
    %c10_36 = arith.constant 10 : index
    %c32_37 = arith.constant 32 : index
    %106 = vector.load %arg11[%c10_36, %c32_37] : memref<16x64xf32, #tpu.memory_space<vmem>>, vector<2x32xf32>
    tpu.vector_store %arg11[%c10_36, %c32_37], %105 {strides = array<i32>} : memref<16x64xf32, #tpu.memory_space<vmem>>, vector<2x32xf32>,
    %107 = arith.truncf %102 : vector<4x32xf32> to vector<4x32xbf16>
    %c0_38 = arith.constant 0 : index
    %c0_39 = arith.constant 0 : index
    %108 = vector.load %arg2[%c0_38, %c0_39] : memref<32x256xbf16, #tpu.memory_space<vmem>>, vector<32x256xbf16>
    %cst_40 = arith.constant dense<0.000000e+00> : vector<4x256xf32>
    %109 = tpu.matmul %107, %108, %cst_40 {dimension_numbers = #tpu.dot_dimension_numbers<[1], [0], [0], [1], [0, 0, 1, 1], [], []>} : vector<4x32xbf16>, vector<32x256xbf16>, vector<4x256xf32> -> vector<4x256xf32>
    %110 = vector.extract_strided_slice %109 {offsets = [0, 0], sizes = [4, 128], strides = [1, 1]} : vector<4x256xf32> to vector<4x128xf32>
    %111 = vector.extract_strided_slice %109 {offsets = [0, 128], sizes = [4, 128], strides = [1, 1]} : vector<4x256xf32> to vector<4x128xf32>
    %112 = arith.select %2, %110, %111 : vector<4x128xi1>, vector<4x128xf32>
    %c6 = arith.constant 6 : index
    %c0_41 = arith.constant 0 : index
    %113 = vector.load %arg10[%c6, %c0_41] : memref<16x256xbf16, #tpu.memory_space<vmem>>, vector<2x128xbf16>
    %c8 = arith.constant 8 : index
    %c128_42 = arith.constant 128 : index
    %114 = vector.load %arg10[%c8, %c128_42] : memref<16x256xbf16, #tpu.memory_space<vmem>>, vector<2x128xbf16>
    %115 = tpu.concatenate %113, %114 in 0 : vector<2x128xbf16>, vector<2x128xbf16> -> vector<4x128xbf16>
    %116 = arith.extf %115 : vector<4x128xbf16> to vector<4x128xf32>
    %117 = arith.addf %116, %112 : vector<4x128xf32>
    %118 = vector.extract_strided_slice %117 {offsets = [0, 0], sizes = [4, 96], strides = [1, 1]} : vector<4x128xf32> to vector<4x96xf32>
    %119 = arith.negf %118 : vector<4x96xf32>
    %120 = math.exp %119 : vector<4x96xf32>
    %cst_43 = arith.constant 1.000000e+00 : f32
    %121 = vector.broadcast %cst_43 : f32 to vector<4x96xf32>
    %122 = arith.addf %121, %120 : vector<4x96xf32>
    %123 = arith.divf %121, %122 : vector<4x96xf32>
    %124 = vector.extract_strided_slice %123 {offsets = [0, 0], sizes = [4, 32], strides = [1, 1]} : vector<4x96xf32> to vector<4x32xf32>
    %125 = vector.extract_strided_slice %123 {offsets = [0, 32], sizes = [4, 32], strides = [1, 1]} : vector<4x96xf32> to vector<4x32xf32>
    %126 = vector.extract_strided_slice %123 {offsets = [0, 64], sizes = [4, 32], strides = [1, 1]} : vector<4x96xf32> to vector<4x32xf32>
    %127 = vector.extract_strided_slice %117 {offsets = [0, 96], sizes = [4, 32], strides = [1, 1]} : vector<4x128xf32> to vector<4x32xf32>
    %128 = math.tanh %127 : vector<4x32xf32>
    %129 = arith.mulf %125, %100 : vector<4x32xf32>
    %130 = arith.mulf %124, %128 : vector<4x32xf32>
    %131 = arith.addf %129, %130 : vector<4x32xf32>
    %132 = math.tanh %131 : vector<4x32xf32>
    %133 = arith.mulf %126, %132 : vector<4x32xf32>
    %134 = vector.extract_strided_slice %133 {offsets = [0, 0], sizes = [2, 32], strides = [1, 1]} : vector<4x32xf32> to vector<2x32xf32>
    %c6_44 = arith.constant 6 : index
    %c0_45 = arith.constant 0 : index
    %135 = vector.load %arg11[%c6_44, %c0_45] : memref<16x64xf32, #tpu.memory_space<vmem>>, vector<2x32xf32>
    tpu.vector_store %arg11[%c6_44, %c0_45], %134 {strides = array<i32>} : memref<16x64xf32, #tpu.memory_space<vmem>>, vector<2x32xf32>,
    %136 = vector.extract_strided_slice %133 {offsets = [2, 0], sizes = [2, 32], strides = [1, 1]} : vector<4x32xf32> to vector<2x32xf32>
    %c8_46 = arith.constant 8 : index
    %c32_47 = arith.constant 32 : index
    %137 = vector.load %arg11[%c8_46, %c32_47] : memref<16x64xf32, #tpu.memory_space<vmem>>, vector<2x32xf32>
    tpu.vector_store %arg11[%c8_46, %c32_47], %136 {strides = array<i32>} : memref<16x64xf32, #tpu.memory_space<vmem>>, vector<2x32xf32>,
    %138 = arith.truncf %133 : vector<4x32xf32> to vector<4x32xbf16>
    %c0_48 = arith.constant 0 : index
    %c0_49 = arith.constant 0 : index
    %139 = vector.load %arg2[%c0_48, %c0_49] : memref<32x256xbf16, #tpu.memory_space<vmem>>, vector<32x256xbf16>
    %cst_50 = arith.constant dense<0.000000e+00> : vector<4x256xf32>
    %140 = tpu.matmul %138, %139, %cst_50 {dimension_numbers = #tpu.dot_dimension_numbers<[1], [0], [0], [1], [0, 0, 1, 1], [], []>} : vector<4x32xbf16>, vector<32x256xbf16>, vector<4x256xf32> -> vector<4x256xf32>
    %141 = vector.extract_strided_slice %140 {offsets = [0, 0], sizes = [4, 128], strides = [1, 1]} : vector<4x256xf32> to vector<4x128xf32>
    %142 = vector.extract_strided_slice %140 {offsets = [0, 128], sizes = [4, 128], strides = [1, 1]} : vector<4x256xf32> to vector<4x128xf32>
    %143 = arith.select %2, %141, %142 : vector<4x128xi1>, vector<4x128xf32>
    %c8_51 = arith.constant 8 : index
    %c0_52 = arith.constant 0 : index
    %144 = vector.load %arg10[%c8_51, %c0_52] : memref<16x256xbf16, #tpu.memory_space<vmem>>, vector<2x128xbf16>
    %c6_53 = arith.constant 6 : index
    %c128_54 = arith.constant 128 : index
    %145 = vector.load %arg10[%c6_53, %c128_54] : memref<16x256xbf16, #tpu.memory_space<vmem>>, vector<2x128xbf16>
    %146 = tpu.concatenate %144, %145 in 0 : vector<2x128xbf16>, vector<2x128xbf16> -> vector<4x128xbf16>
    %147 = arith.extf %146 : vector<4x128xbf16> to vector<4x128xf32>
    %148 = arith.addf %147, %143 : vector<4x128xf32>
    %149 = vector.extract_strided_slice %148 {offsets = [0, 0], sizes = [4, 96], strides = [1, 1]} : vector<4x128xf32> to vector<4x96xf32>
    %150 = arith.negf %149 : vector<4x96xf32>
    %151 = math.exp %150 : vector<4x96xf32>
    %cst_55 = arith.constant 1.000000e+00 : f32
    %152 = vector.broadcast %cst_55 : f32 to vector<4x96xf32>
    %153 = arith.addf %152, %151 : vector<4x96xf32>
    %154 = arith.divf %152, %153 : vector<4x96xf32>
    %155 = vector.extract_strided_slice %154 {offsets = [0, 0], sizes = [4, 32], strides = [1, 1]} : vector<4x96xf32> to vector<4x32xf32>
    %156 = vector.extract_strided_slice %154 {offsets = [0, 32], sizes = [4, 32], strides = [1, 1]} : vector<4x96xf32> to vector<4x32xf32>
    %157 = vector.extract_strided_slice %154 {offsets = [0, 64], sizes = [4, 32], strides = [1, 1]} : vector<4x96xf32> to vector<4x32xf32>
    %158 = vector.extract_strided_slice %148 {offsets = [0, 96], sizes = [4, 32], strides = [1, 1]} : vector<4x128xf32> to vector<4x32xf32>
    %159 = math.tanh %158 : vector<4x32xf32>
    %160 = arith.mulf %156, %131 : vector<4x32xf32>
    %161 = arith.mulf %155, %159 : vector<4x32xf32>
    %162 = arith.addf %160, %161 : vector<4x32xf32>
    %163 = math.tanh %162 : vector<4x32xf32>
    %164 = arith.mulf %157, %163 : vector<4x32xf32>
    %165 = vector.extract_strided_slice %164 {offsets = [0, 0], sizes = [2, 32], strides = [1, 1]} : vector<4x32xf32> to vector<2x32xf32>
    %c8_56 = arith.constant 8 : index
    %c0_57 = arith.constant 0 : index
    %166 = vector.load %arg11[%c8_56, %c0_57] : memref<16x64xf32, #tpu.memory_space<vmem>>, vector<2x32xf32>
    tpu.vector_store %arg11[%c8_56, %c0_57], %165 {strides = array<i32>} : memref<16x64xf32, #tpu.memory_space<vmem>>, vector<2x32xf32>,
    %167 = vector.extract_strided_slice %164 {offsets = [2, 0], sizes = [2, 32], strides = [1, 1]} : vector<4x32xf32> to vector<2x32xf32>
    %c6_58 = arith.constant 6 : index
    %c32_59 = arith.constant 32 : index
    %168 = vector.load %arg11[%c6_58, %c32_59] : memref<16x64xf32, #tpu.memory_space<vmem>>, vector<2x32xf32>
    tpu.vector_store %arg11[%c6_58, %c32_59], %167 {strides = array<i32>} : memref<16x64xf32, #tpu.memory_space<vmem>>, vector<2x32xf32>,
    %169 = arith.truncf %164 : vector<4x32xf32> to vector<4x32xbf16>
    %c0_60 = arith.constant 0 : index
    %c0_61 = arith.constant 0 : index
    %170 = vector.load %arg2[%c0_60, %c0_61] : memref<32x256xbf16, #tpu.memory_space<vmem>>, vector<32x256xbf16>
    %cst_62 = arith.constant dense<0.000000e+00> : vector<4x256xf32>
    %171 = tpu.matmul %169, %170, %cst_62 {dimension_numbers = #tpu.dot_dimension_numbers<[1], [0], [0], [1], [0, 0, 1, 1], [], []>} : vector<4x32xbf16>, vector<32x256xbf16>, vector<4x256xf32> -> vector<4x256xf32>
    %172 = vector.extract_strided_slice %171 {offsets = [0, 0], sizes = [4, 128], strides = [1, 1]} : vector<4x256xf32> to vector<4x128xf32>
    %173 = vector.extract_strided_slice %171 {offsets = [0, 128], sizes = [4, 128], strides = [1, 1]} : vector<4x256xf32> to vector<4x128xf32>
    %174 = arith.select %2, %172, %173 : vector<4x128xi1>, vector<4x128xf32>
    %c10_63 = arith.constant 10 : index
    %c0_64 = arith.constant 0 : index
    %175 = vector.load %arg10[%c10_63, %c0_64] : memref<16x256xbf16, #tpu.memory_space<vmem>>, vector<2x128xbf16>
    %c4_65 = arith.constant 4 : index
    %c128_66 = arith.constant 128 : index
    %176 = vector.load %arg10[%c4_65, %c128_66] : memref<16x256xbf16, #tpu.memory_space<vmem>>, vector<2x128xbf16>
    %177 = tpu.concatenate %175, %176 in 0 : vector<2x128xbf16>, vector<2x128xbf16> -> vector<4x128xbf16>
    %178 = arith.extf %177 : vector<4x128xbf16> to vector<4x128xf32>
    %179 = arith.addf %178, %174 : vector<4x128xf32>
    %180 = vector.extract_strided_slice %179 {offsets = [0, 0], sizes = [4, 96], strides = [1, 1]} : vector<4x128xf32> to vector<4x96xf32>
    %181 = arith.negf %180 : vector<4x96xf32>
    %182 = math.exp %181 : vector<4x96xf32>
    %cst_67 = arith.constant 1.000000e+00 : f32
    %183 = vector.broadcast %cst_67 : f32 to vector<4x96xf32>
    %184 = arith.addf %183, %182 : vector<4x96xf32>
    %185 = arith.divf %183, %184 : vector<4x96xf32>
    %186 = vector.extract_strided_slice %185 {offsets = [0, 0], sizes = [4, 32], strides = [1, 1]} : vector<4x96xf32> to vector<4x32xf32>
    %187 = vector.extract_strided_slice %185 {offsets = [0, 32], sizes = [4, 32], strides = [1, 1]} : vector<4x96xf32> to vector<4x32xf32>
    %188 = vector.extract_strided_slice %185 {offsets = [0, 64], sizes = [4, 32], strides = [1, 1]} : vector<4x96xf32> to vector<4x32xf32>
    %189 = vector.extract_strided_slice %179 {offsets = [0, 96], sizes = [4, 32], strides = [1, 1]} : vector<4x128xf32> to vector<4x32xf32>
    %190 = math.tanh %189 : vector<4x32xf32>
    %191 = arith.mulf %187, %162 : vector<4x32xf32>
    %192 = arith.mulf %186, %190 : vector<4x32xf32>
    %193 = arith.addf %191, %192 : vector<4x32xf32>
    %194 = math.tanh %193 : vector<4x32xf32>
    %195 = arith.mulf %188, %194 : vector<4x32xf32>
    %196 = vector.extract_strided_slice %195 {offsets = [0, 0], sizes = [2, 32], strides = [1, 1]} : vector<4x32xf32> to vector<2x32xf32>
    %c10_68 = arith.constant 10 : index
    %c0_69 = arith.constant 0 : index
    %197 = vector.load %arg11[%c10_68, %c0_69] : memref<16x64xf32, #tpu.memory_space<vmem>>, vector<2x32xf32>
    tpu.vector_store %arg11[%c10_68, %c0_69], %196 {strides = array<i32>} : memref<16x64xf32, #tpu.memory_space<vmem>>, vector<2x32xf32>,
    %198 = vector.extract_strided_slice %195 {offsets = [2, 0], sizes = [2, 32], strides = [1, 1]} : vector<4x32xf32> to vector<2x32xf32>
    %c4_70 = arith.constant 4 : index
    %c32_71 = arith.constant 32 : index
    %199 = vector.load %arg11[%c4_70, %c32_71] : memref<16x64xf32, #tpu.memory_space<vmem>>, vector<2x32xf32>
    tpu.vector_store %arg11[%c4_70, %c32_71], %198 {strides = array<i32>} : memref<16x64xf32, #tpu.memory_space<vmem>>, vector<2x32xf32>,
    %200 = arith.truncf %195 : vector<4x32xf32> to vector<4x32xbf16>
    %c0_72 = arith.constant 0 : index
    %c0_73 = arith.constant 0 : index
    %201 = vector.load %arg2[%c0_72, %c0_73] : memref<32x256xbf16, #tpu.memory_space<vmem>>, vector<32x256xbf16>
    %cst_74 = arith.constant dense<0.000000e+00> : vector<4x256xf32>
    %202 = tpu.matmul %200, %201, %cst_74 {dimension_numbers = #tpu.dot_dimension_numbers<[1], [0], [0], [1], [0, 0, 1, 1], [], []>} : vector<4x32xbf16>, vector<32x256xbf16>, vector<4x256xf32> -> vector<4x256xf32>
    %203 = vector.extract_strided_slice %202 {offsets = [0, 0], sizes = [4, 128], strides = [1, 1]} : vector<4x256xf32> to vector<4x128xf32>
    %204 = vector.extract_strided_slice %202 {offsets = [0, 128], sizes = [4, 128], strides = [1, 1]} : vector<4x256xf32> to vector<4x128xf32>
    %205 = arith.select %2, %203, %204 : vector<4x128xi1>, vector<4x128xf32>
    %c12_75 = arith.constant 12 : index
    %c0_76 = arith.constant 0 : index
    %206 = vector.load %arg10[%c12_75, %c0_76] : memref<16x256xbf16, #tpu.memory_space<vmem>>, vector<2x128xbf16>
    %c2_77 = arith.constant 2 : index
    %c128_78 = arith.constant 128 : index
    %207 = vector.load %arg10[%c2_77, %c128_78] : memref<16x256xbf16, #tpu.memory_space<vmem>>, vector<2x128xbf16>
    %208 = tpu.concatenate %206, %207 in 0 : vector<2x128xbf16>, vector<2x128xbf16> -> vector<4x128xbf16>
    %209 = arith.extf %208 : vector<4x128xbf16> to vector<4x128xf32>
    %210 = arith.addf %209, %205 : vector<4x128xf32>
    %211 = vector.extract_strided_slice %210 {offsets = [0, 0], sizes = [4, 96], strides = [1, 1]} : vector<4x128xf32> to vector<4x96xf32>
    %212 = arith.negf %211 : vector<4x96xf32>
    %213 = math.exp %212 : vector<4x96xf32>
    %cst_79 = arith.constant 1.000000e+00 : f32
    %214 = vector.broadcast %cst_79 : f32 to vector<4x96xf32>
    %215 = arith.addf %214, %213 : vector<4x96xf32>
    %216 = arith.divf %214, %215 : vector<4x96xf32>
    %217 = vector.extract_strided_slice %216 {offsets = [0, 0], sizes = [4, 32], strides = [1, 1]} : vector<4x96xf32> to vector<4x32xf32>
    %218 = vector.extract_strided_slice %216 {offsets = [0, 32], sizes = [4, 32], strides = [1, 1]} : vector<4x96xf32> to vector<4x32xf32>
    %219 = vector.extract_strided_slice %216 {offsets = [0, 64], sizes = [4, 32], strides = [1, 1]} : vector<4x96xf32> to vector<4x32xf32>
    %220 = vector.extract_strided_slice %210 {offsets = [0, 96], sizes = [4, 32], strides = [1, 1]} : vector<4x128xf32> to vector<4x32xf32>
    %221 = math.tanh %220 : vector<4x32xf32>
    %222 = arith.mulf %218, %193 : vector<4x32xf32>
    %223 = arith.mulf %217, %221 : vector<4x32xf32>
    %224 = arith.addf %222, %223 : vector<4x32xf32>
    %225 = math.tanh %224 : vector<4x32xf32>
    %226 = arith.mulf %219, %225 : vector<4x32xf32>
    %227 = vector.extract_strided_slice %226 {offsets = [0, 0], sizes = [2, 32], strides = [1, 1]} : vector<4x32xf32> to vector<2x32xf32>
    %c12_80 = arith.constant 12 : index
    %c0_81 = arith.constant 0 : index
    %228 = vector.load %arg11[%c12_80, %c0_81] : memref<16x64xf32, #tpu.memory_space<vmem>>, vector<2x32xf32>
    tpu.vector_store %arg11[%c12_80, %c0_81], %227 {strides = array<i32>} : memref<16x64xf32, #tpu.memory_space<vmem>>, vector<2x32xf32>,
    %229 = vector.extract_strided_slice %226 {offsets = [2, 0], sizes = [2, 32], strides = [1, 1]} : vector<4x32xf32> to vector<2x32xf32>
    %c2_82 = arith.constant 2 : index
    %c32_83 = arith.constant 32 : index
    %230 = vector.load %arg11[%c2_82, %c32_83] : memref<16x64xf32, #tpu.memory_space<vmem>>, vector<2x32xf32>
    tpu.vector_store %arg11[%c2_82, %c32_83], %229 {strides = array<i32>} : memref<16x64xf32, #tpu.memory_space<vmem>>, vector<2x32xf32>,
    %231 = arith.truncf %226 : vector<4x32xf32> to vector<4x32xbf16>
    %c0_84 = arith.constant 0 : index
    %c0_85 = arith.constant 0 : index
    %232 = vector.load %arg2[%c0_84, %c0_85] : memref<32x256xbf16, #tpu.memory_space<vmem>>, vector<32x256xbf16>
    %cst_86 = arith.constant dense<0.000000e+00> : vector<4x256xf32>
    %233 = tpu.matmul %231, %232, %cst_86 {dimension_numbers = #tpu.dot_dimension_numbers<[1], [0], [0], [1], [0, 0, 1, 1], [], []>} : vector<4x32xbf16>, vector<32x256xbf16>, vector<4x256xf32> -> vector<4x256xf32>
    %234 = vector.extract_strided_slice %233 {offsets = [0, 0], sizes = [4, 128], strides = [1, 1]} : vector<4x256xf32> to vector<4x128xf32>
    %235 = vector.extract_strided_slice %233 {offsets = [0, 128], sizes = [4, 128], strides = [1, 1]} : vector<4x256xf32> to vector<4x128xf32>
    %236 = arith.select %2, %234, %235 : vector<4x128xi1>, vector<4x128xf32>
    %c14_87 = arith.constant 14 : index
    %c0_88 = arith.constant 0 : index
    %237 = vector.load %arg10[%c14_87, %c0_88] : memref<16x256xbf16, #tpu.memory_space<vmem>>, vector<2x128xbf16>
    %c0_89 = arith.constant 0 : index
    %c128_90 = arith.constant 128 : index
    %238 = vector.load %arg10[%c0_89, %c128_90] : memref<16x256xbf16, #tpu.memory_space<vmem>>, vector<2x128xbf16>
    %239 = tpu.concatenate %237, %238 in 0 : vector<2x128xbf16>, vector<2x128xbf16> -> vector<4x128xbf16>
    %240 = arith.extf %239 : vector<4x128xbf16> to vector<4x128xf32>
    %241 = arith.addf %240, %236 : vector<4x128xf32>
    %242 = vector.extract_strided_slice %241 {offsets = [0, 0], sizes = [4, 96], strides = [1, 1]} : vector<4x128xf32> to vector<4x96xf32>
    %243 = arith.negf %242 : vector<4x96xf32>
    %244 = math.exp %243 : vector<4x96xf32>
    %cst_91 = arith.constant 1.000000e+00 : f32
    %245 = vector.broadcast %cst_91 : f32 to vector<4x96xf32>
    %246 = arith.addf %245, %244 : vector<4x96xf32>
    %247 = arith.divf %245, %246 : vector<4x96xf32>
    %248 = vector.extract_strided_slice %247 {offsets = [0, 0], sizes = [4, 32], strides = [1, 1]} : vector<4x96xf32> to vector<4x32xf32>
    %249 = vector.extract_strided_slice %247 {offsets = [0, 32], sizes = [4, 32], strides = [1, 1]} : vector<4x96xf32> to vector<4x32xf32>
    %250 = vector.extract_strided_slice %247 {offsets = [0, 64], sizes = [4, 32], strides = [1, 1]} : vector<4x96xf32> to vector<4x32xf32>
    %251 = vector.extract_strided_slice %241 {offsets = [0, 96], sizes = [4, 32], strides = [1, 1]} : vector<4x128xf32> to vector<4x32xf32>
    %252 = math.tanh %251 : vector<4x32xf32>
    %253 = arith.mulf %249, %224 : vector<4x32xf32>
    %254 = arith.mulf %248, %252 : vector<4x32xf32>
    %255 = arith.addf %253, %254 : vector<4x32xf32>
    %256 = math.tanh %255 : vector<4x32xf32>
    %257 = arith.mulf %250, %256 : vector<4x32xf32>
    %258 = vector.extract_strided_slice %257 {offsets = [0, 0], sizes = [2, 32], strides = [1, 1]} : vector<4x32xf32> to vector<2x32xf32>
    %c14_92 = arith.constant 14 : index
    %c0_93 = arith.constant 0 : index
    %259 = vector.load %arg11[%c14_92, %c0_93] : memref<16x64xf32, #tpu.memory_space<vmem>>, vector<2x32xf32>
    tpu.vector_store %arg11[%c14_92, %c0_93], %258 {strides = array<i32>} : memref<16x64xf32, #tpu.memory_space<vmem>>, vector<2x32xf32>,
    %260 = vector.extract_strided_slice %257 {offsets = [2, 0], sizes = [2, 32], strides = [1, 1]} : vector<4x32xf32> to vector<2x32xf32>
    %c0_94 = arith.constant 0 : index
    %c32_95 = arith.constant 32 : index
    %261 = vector.load %arg11[%c0_94, %c32_95] : memref<16x64xf32, #tpu.memory_space<vmem>>, vector<2x32xf32>
    tpu.vector_store %arg11[%c0_94, %c32_95], %260 {strides = array<i32>} : memref<16x64xf32, #tpu.memory_space<vmem>>, vector<2x32xf32>,
    %c0_96 = arith.constant 0 : index
    %c0_97 = arith.constant 0 : index
    %262 = vector.load %arg11[%c0_96, %c0_97] : memref<16x64xf32, #tpu.memory_space<vmem>>, vector<16x64xf32>
    %263 = arith.truncf %262 : vector<16x64xf32> to vector<16x64xbf16>
    %c0_98 = arith.constant 0 : index
    %c0_99 = arith.constant 0 : index
    %264 = vector.load %arg4[%c0_98, %c0_99] : memref<64x256xbf16, #tpu.memory_space<vmem>>, vector<64x256xbf16>
    %cst_100 = arith.constant dense<0.000000e+00> : vector<16x256xf32>
    %265 = tpu.matmul %263, %264, %cst_100 {dimension_numbers = #tpu.dot_dimension_numbers<[1], [0], [0], [1], [0, 0, 1, 1], [], []>} : vector<16x64xbf16>, vector<64x256xbf16>, vector<16x256xf32> -> vector<16x256xf32>
    %c0_101 = arith.constant 0 : index
    %c0_102 = arith.constant 0 : index
    %266 = vector.load %arg6[%c0_101, %c0_102] : memref<1x256xf32, #tpu.memory_space<vmem>>, vector<1x256xf32>
    %267 = vector.broadcast %266 : vector<1x256xf32> to vector<16x256xf32>
    %268 = arith.addf %265, %267 : vector<16x256xf32>
    %269 = arith.truncf %268 : vector<16x256xf32> to vector<16x256xbf16>
    %c0_103 = arith.constant 0 : index
    %c0_104 = arith.constant 0 : index
    %270 = vector.load %arg10[%c0_103, %c0_104] : memref<16x256xbf16, #tpu.memory_space<vmem>>, vector<16x256xbf16>
    tpu.vector_store %arg10[%c0_103, %c0_104], %269 {strides = array<i32>} : memref<16x256xbf16, #tpu.memory_space<vmem>>, vector<16x256xbf16>,
    %cst_105 = arith.constant 0.000000e+00 : f32
    %271 = vector.broadcast %cst_105 : f32 to vector<4x32xf32>
    %cst_106 = arith.constant 0.000000e+00 : f32
    %272 = vector.broadcast %cst_106 : f32 to vector<4x32xf32>
    %273 = arith.truncf %271 : vector<4x32xf32> to vector<4x32xbf16>
    %c0_107 = arith.constant 0 : index
    %c0_108 = arith.constant 0 : index
    %274 = vector.load %arg5[%c0_107, %c0_108] : memref<32x256xbf16, #tpu.memory_space<vmem>>, vector<32x256xbf16>
    %cst_109 = arith.constant dense<0.000000e+00> : vector<4x256xf32>
    %275 = tpu.matmul %273, %274, %cst_109 {dimension_numbers = #tpu.dot_dimension_numbers<[1], [0], [0], [1], [0, 0, 1, 1], [], []>} : vector<4x32xbf16>, vector<32x256xbf16>, vector<4x256xf32> -> vector<4x256xf32>
    %276 = vector.extract_strided_slice %275 {offsets = [0, 0], sizes = [4, 128], strides = [1, 1]} : vector<4x256xf32> to vector<4x128xf32>
    %277 = vector.extract_strided_slice %275 {offsets = [0, 128], sizes = [4, 128], strides = [1, 1]} : vector<4x256xf32> to vector<4x128xf32>
    %278 = arith.select %2, %276, %277 : vector<4x128xi1>, vector<4x128xf32>
    %c0_110 = arith.constant 0 : index
    %c0_111 = arith.constant 0 : index
    %279 = vector.load %arg10[%c0_110, %c0_111] : memref<16x256xbf16, #tpu.memory_space<vmem>>, vector<2x128xbf16>
    %c14_112 = arith.constant 14 : index
    %c128_113 = arith.constant 128 : index
    %280 = vector.load %arg10[%c14_112, %c128_113] : memref<16x256xbf16, #tpu.memory_space<vmem>>, vector<2x128xbf16>
    %281 = tpu.concatenate %279, %280 in 0 : vector<2x128xbf16>, vector<2x128xbf16> -> vector<4x128xbf16>
    %282 = arith.extf %281 : vector<4x128xbf16> to vector<4x128xf32>
    %283 = arith.addf %282, %278 : vector<4x128xf32>
    %284 = vector.extract_strided_slice %283 {offsets = [0, 0], sizes = [4, 96], strides = [1, 1]} : vector<4x128xf32> to vector<4x96xf32>
    %285 = arith.negf %284 : vector<4x96xf32>
    %286 = math.exp %285 : vector<4x96xf32>
    %cst_114 = arith.constant 1.000000e+00 : f32
    %287 = vector.broadcast %cst_114 : f32 to vector<4x96xf32>
    %288 = arith.addf %287, %286 : vector<4x96xf32>
    %289 = arith.divf %287, %288 : vector<4x96xf32>
    %290 = vector.extract_strided_slice %289 {offsets = [0, 0], sizes = [4, 32], strides = [1, 1]} : vector<4x96xf32> to vector<4x32xf32>
    %291 = vector.extract_strided_slice %289 {offsets = [0, 32], sizes = [4, 32], strides = [1, 1]} : vector<4x96xf32> to vector<4x32xf32>
    %292 = vector.extract_strided_slice %289 {offsets = [0, 64], sizes = [4, 32], strides = [1, 1]} : vector<4x96xf32> to vector<4x32xf32>
    %293 = vector.extract_strided_slice %283 {offsets = [0, 96], sizes = [4, 32], strides = [1, 1]} : vector<4x128xf32> to vector<4x32xf32>
    %294 = math.tanh %293 : vector<4x32xf32>
    %295 = arith.mulf %291, %272 : vector<4x32xf32>
    %296 = arith.mulf %290, %294 : vector<4x32xf32>
    %297 = arith.addf %295, %296 : vector<4x32xf32>
    %298 = math.tanh %297 : vector<4x32xf32>
    %299 = arith.mulf %292, %298 : vector<4x32xf32>
    %300 = vector.extract_strided_slice %299 {offsets = [0, 0], sizes = [2, 32], strides = [1, 1]} : vector<4x32xf32> to vector<2x32xf32>
    %c0_115 = arith.constant 0 : index
    %c0_116 = arith.constant 0 : index
    %301 = vector.load %arg11[%c0_115, %c0_116] : memref<16x64xf32, #tpu.memory_space<vmem>>, vector<2x32xf32>
    tpu.vector_store %arg11[%c0_115, %c0_116], %300 {strides = array<i32>} : memref<16x64xf32, #tpu.memory_space<vmem>>, vector<2x32xf32>,
    %302 = vector.extract_strided_slice %299 {offsets = [2, 0], sizes = [2, 32], strides = [1, 1]} : vector<4x32xf32> to vector<2x32xf32>
    %c14_117 = arith.constant 14 : index
    %c32_118 = arith.constant 32 : index
    %303 = vector.load %arg11[%c14_117, %c32_118] : memref<16x64xf32, #tpu.memory_space<vmem>>, vector<2x32xf32>
    tpu.vector_store %arg11[%c14_117, %c32_118], %302 {strides = array<i32>} : memref<16x64xf32, #tpu.memory_space<vmem>>, vector<2x32xf32>,
    %304 = arith.truncf %299 : vector<4x32xf32> to vector<4x32xbf16>
    %c0_119 = arith.constant 0 : index
    %c0_120 = arith.constant 0 : index
    %305 = vector.load %arg5[%c0_119, %c0_120] : memref<32x256xbf16, #tpu.memory_space<vmem>>, vector<32x256xbf16>
    %cst_121 = arith.constant dense<0.000000e+00> : vector<4x256xf32>
    %306 = tpu.matmul %304, %305, %cst_121 {dimension_numbers = #tpu.dot_dimension_numbers<[1], [0], [0], [1], [0, 0, 1, 1], [], []>} : vector<4x32xbf16>, vector<32x256xbf16>, vector<4x256xf32> -> vector<4x256xf32>
    %307 = vector.extract_strided_slice %306 {offsets = [0, 0], sizes = [4, 128], strides = [1, 1]} : vector<4x256xf32> to vector<4x128xf32>
    %308 = vector.extract_strided_slice %306 {offsets = [0, 128], sizes = [4, 128], strides = [1, 1]} : vector<4x256xf32> to vector<4x128xf32>
    %309 = arith.select %2, %307, %308 : vector<4x128xi1>, vector<4x128xf32>
    %c2_122 = arith.constant 2 : index
    %c0_123 = arith.constant 0 : index
    %310 = vector.load %arg10[%c2_122, %c0_123] : memref<16x256xbf16, #tpu.memory_space<vmem>>, vector<2x128xbf16>
    %c12_124 = arith.constant 12 : index
    %c128_125 = arith.constant 128 : index
    %311 = vector.load %arg10[%c12_124, %c128_125] : memref<16x256xbf16, #tpu.memory_space<vmem>>, vector<2x128xbf16>
    %312 = tpu.concatenate %310, %311 in 0 : vector<2x128xbf16>, vector<2x128xbf16> -> vector<4x128xbf16>
    %313 = arith.extf %312 : vector<4x128xbf16> to vector<4x128xf32>
    %314 = arith.addf %313, %309 : vector<4x128xf32>
    %315 = vector.extract_strided_slice %314 {offsets = [0, 0], sizes = [4, 96], strides = [1, 1]} : vector<4x128xf32> to vector<4x96xf32>
    %316 = arith.negf %315 : vector<4x96xf32>
    %317 = math.exp %316 : vector<4x96xf32>
    %cst_126 = arith.constant 1.000000e+00 : f32
    %318 = vector.broadcast %cst_126 : f32 to vector<4x96xf32>
    %319 = arith.addf %318, %317 : vector<4x96xf32>
    %320 = arith.divf %318, %319 : vector<4x96xf32>
    %321 = vector.extract_strided_slice %320 {offsets = [0, 0], sizes = [4, 32], strides = [1, 1]} : vector<4x96xf32> to vector<4x32xf32>
    %322 = vector.extract_strided_slice %320 {offsets = [0, 32], sizes = [4, 32], strides = [1, 1]} : vector<4x96xf32> to vector<4x32xf32>
    %323 = vector.extract_strided_slice %320 {offsets = [0, 64], sizes = [4, 32], strides = [1, 1]} : vector<4x96xf32> to vector<4x32xf32>
    %324 = vector.extract_strided_slice %314 {offsets = [0, 96], sizes = [4, 32], strides = [1, 1]} : vector<4x128xf32> to vector<4x32xf32>
    %325 = math.tanh %324 : vector<4x32xf32>
    %326 = arith.mulf %322, %297 : vector<4x32xf32>
    %327 = arith.mulf %321, %325 : vector<4x32xf32>
    %328 = arith.addf %326, %327 : vector<4x32xf32>
    %329 = math.tanh %328 : vector<4x32xf32>
    %330 = arith.mulf %323, %329 : vector<4x32xf32>
    %331 = vector.extract_strided_slice %330 {offsets = [0, 0], sizes = [2, 32], strides = [1, 1]} : vector<4x32xf32> to vector<2x32xf32>
    %c2_127 = arith.constant 2 : index
    %c0_128 = arith.constant 0 : index
    %332 = vector.load %arg11[%c2_127, %c0_128] : memref<16x64xf32, #tpu.memory_space<vmem>>, vector<2x32xf32>
    tpu.vector_store %arg11[%c2_127, %c0_128], %331 {strides = array<i32>} : memref<16x64xf32, #tpu.memory_space<vmem>>, vector<2x32xf32>,
    %333 = vector.extract_strided_slice %330 {offsets = [2, 0], sizes = [2, 32], strides = [1, 1]} : vector<4x32xf32> to vector<2x32xf32>
    %c12_129 = arith.constant 12 : index
    %c32_130 = arith.constant 32 : index
    %334 = vector.load %arg11[%c12_129, %c32_130] : memref<16x64xf32, #tpu.memory_space<vmem>>, vector<2x32xf32>
    tpu.vector_store %arg11[%c12_129, %c32_130], %333 {strides = array<i32>} : memref<16x64xf32, #tpu.memory_space<vmem>>, vector<2x32xf32>,
    %335 = arith.truncf %330 : vector<4x32xf32> to vector<4x32xbf16>
    %c0_131 = arith.constant 0 : index
    %c0_132 = arith.constant 0 : index
    %336 = vector.load %arg5[%c0_131, %c0_132] : memref<32x256xbf16, #tpu.memory_space<vmem>>, vector<32x256xbf16>
    %cst_133 = arith.constant dense<0.000000e+00> : vector<4x256xf32>
    %337 = tpu.matmul %335, %336, %cst_133 {dimension_numbers = #tpu.dot_dimension_numbers<[1], [0], [0], [1], [0, 0, 1, 1], [], []>} : vector<4x32xbf16>, vector<32x256xbf16>, vector<4x256xf32> -> vector<4x256xf32>
    %338 = vector.extract_strided_slice %337 {offsets = [0, 0], sizes = [4, 128], strides = [1, 1]} : vector<4x256xf32> to vector<4x128xf32>
    %339 = vector.extract_strided_slice %337 {offsets = [0, 128], sizes = [4, 128], strides = [1, 1]} : vector<4x256xf32> to vector<4x128xf32>
    %340 = arith.select %2, %338, %339 : vector<4x128xi1>, vector<4x128xf32>
    %c4_134 = arith.constant 4 : index
    %c0_135 = arith.constant 0 : index
    %341 = vector.load %arg10[%c4_134, %c0_135] : memref<16x256xbf16, #tpu.memory_space<vmem>>, vector<2x128xbf16>
    %c10_136 = arith.constant 10 : index
    %c128_137 = arith.constant 128 : index
    %342 = vector.load %arg10[%c10_136, %c128_137] : memref<16x256xbf16, #tpu.memory_space<vmem>>, vector<2x128xbf16>
    %343 = tpu.concatenate %341, %342 in 0 : vector<2x128xbf16>, vector<2x128xbf16> -> vector<4x128xbf16>
    %344 = arith.extf %343 : vector<4x128xbf16> to vector<4x128xf32>
    %345 = arith.addf %344, %340 : vector<4x128xf32>
    %346 = vector.extract_strided_slice %345 {offsets = [0, 0], sizes = [4, 96], strides = [1, 1]} : vector<4x128xf32> to vector<4x96xf32>
    %347 = arith.negf %346 : vector<4x96xf32>
    %348 = math.exp %347 : vector<4x96xf32>
    %cst_138 = arith.constant 1.000000e+00 : f32
    %349 = vector.broadcast %cst_138 : f32 to vector<4x96xf32>
    %350 = arith.addf %349, %348 : vector<4x96xf32>
    %351 = arith.divf %349, %350 : vector<4x96xf32>
    %352 = vector.extract_strided_slice %351 {offsets = [0, 0], sizes = [4, 32], strides = [1, 1]} : vector<4x96xf32> to vector<4x32xf32>
    %353 = vector.extract_strided_slice %351 {offsets = [0, 32], sizes = [4, 32], strides = [1, 1]} : vector<4x96xf32> to vector<4x32xf32>
    %354 = vector.extract_strided_slice %351 {offsets = [0, 64], sizes = [4, 32], strides = [1, 1]} : vector<4x96xf32> to vector<4x32xf32>
    %355 = vector.extract_strided_slice %345 {offsets = [0, 96], sizes = [4, 32], strides = [1, 1]} : vector<4x128xf32> to vector<4x32xf32>
    %356 = math.tanh %355 : vector<4x32xf32>
    %357 = arith.mulf %353, %328 : vector<4x32xf32>
    %358 = arith.mulf %352, %356 : vector<4x32xf32>
    %359 = arith.addf %357, %358 : vector<4x32xf32>
    %360 = math.tanh %359 : vector<4x32xf32>
    %361 = arith.mulf %354, %360 : vector<4x32xf32>
    %362 = vector.extract_strided_slice %361 {offsets = [0, 0], sizes = [2, 32], strides = [1, 1]} : vector<4x32xf32> to vector<2x32xf32>
    %c4_139 = arith.constant 4 : index
    %c0_140 = arith.constant 0 : index
    %363 = vector.load %arg11[%c4_139, %c0_140] : memref<16x64xf32, #tpu.memory_space<vmem>>, vector<2x32xf32>
    tpu.vector_store %arg11[%c4_139, %c0_140], %362 {strides = array<i32>} : memref<16x64xf32, #tpu.memory_space<vmem>>, vector<2x32xf32>,
    %364 = vector.extract_strided_slice %361 {offsets = [2, 0], sizes = [2, 32], strides = [1, 1]} : vector<4x32xf32> to vector<2x32xf32>
    %c10_141 = arith.constant 10 : index
    %c32_142 = arith.constant 32 : index
    %365 = vector.load %arg11[%c10_141, %c32_142] : memref<16x64xf32, #tpu.memory_space<vmem>>, vector<2x32xf32>
    tpu.vector_store %arg11[%c10_141, %c32_142], %364 {strides = array<i32>} : memref<16x64xf32, #tpu.memory_space<vmem>>, vector<2x32xf32>,
    %366 = arith.truncf %361 : vector<4x32xf32> to vector<4x32xbf16>
    %c0_143 = arith.constant 0 : index
    %c0_144 = arith.constant 0 : index
    %367 = vector.load %arg5[%c0_143, %c0_144] : memref<32x256xbf16, #tpu.memory_space<vmem>>, vector<32x256xbf16>
    %cst_145 = arith.constant dense<0.000000e+00> : vector<4x256xf32>
    %368 = tpu.matmul %366, %367, %cst_145 {dimension_numbers = #tpu.dot_dimension_numbers<[1], [0], [0], [1], [0, 0, 1, 1], [], []>} : vector<4x32xbf16>, vector<32x256xbf16>, vector<4x256xf32> -> vector<4x256xf32>
    %369 = vector.extract_strided_slice %368 {offsets = [0, 0], sizes = [4, 128], strides = [1, 1]} : vector<4x256xf32> to vector<4x128xf32>
    %370 = vector.extract_strided_slice %368 {offsets = [0, 128], sizes = [4, 128], strides = [1, 1]} : vector<4x256xf32> to vector<4x128xf32>
    %371 = arith.select %2, %369, %370 : vector<4x128xi1>, vector<4x128xf32>
    %c6_146 = arith.constant 6 : index
    %c0_147 = arith.constant 0 : index
    %372 = vector.load %arg10[%c6_146, %c0_147] : memref<16x256xbf16, #tpu.memory_space<vmem>>, vector<2x128xbf16>
    %c8_148 = arith.constant 8 : index
    %c128_149 = arith.constant 128 : index
    %373 = vector.load %arg10[%c8_148, %c128_149] : memref<16x256xbf16, #tpu.memory_space<vmem>>, vector<2x128xbf16>
    %374 = tpu.concatenate %372, %373 in 0 : vector<2x128xbf16>, vector<2x128xbf16> -> vector<4x128xbf16>
    %375 = arith.extf %374 : vector<4x128xbf16> to vector<4x128xf32>
    %376 = arith.addf %375, %371 : vector<4x128xf32>
    %377 = vector.extract_strided_slice %376 {offsets = [0, 0], sizes = [4, 96], strides = [1, 1]} : vector<4x128xf32> to vector<4x96xf32>
    %378 = arith.negf %377 : vector<4x96xf32>
    %379 = math.exp %378 : vector<4x96xf32>
    %cst_150 = arith.constant 1.000000e+00 : f32
    %380 = vector.broadcast %cst_150 : f32 to vector<4x96xf32>
    %381 = arith.addf %380, %379 : vector<4x96xf32>
    %382 = arith.divf %380, %381 : vector<4x96xf32>
    %383 = vector.extract_strided_slice %382 {offsets = [0, 0], sizes = [4, 32], strides = [1, 1]} : vector<4x96xf32> to vector<4x32xf32>
    %384 = vector.extract_strided_slice %382 {offsets = [0, 32], sizes = [4, 32], strides = [1, 1]} : vector<4x96xf32> to vector<4x32xf32>
    %385 = vector.extract_strided_slice %382 {offsets = [0, 64], sizes = [4, 32], strides = [1, 1]} : vector<4x96xf32> to vector<4x32xf32>
    %386 = vector.extract_strided_slice %376 {offsets = [0, 96], sizes = [4, 32], strides = [1, 1]} : vector<4x128xf32> to vector<4x32xf32>
    %387 = math.tanh %386 : vector<4x32xf32>
    %388 = arith.mulf %384, %359 : vector<4x32xf32>
    %389 = arith.mulf %383, %387 : vector<4x32xf32>
    %390 = arith.addf %388, %389 : vector<4x32xf32>
    %391 = math.tanh %390 : vector<4x32xf32>
    %392 = arith.mulf %385, %391 : vector<4x32xf32>
    %393 = vector.extract_strided_slice %392 {offsets = [0, 0], sizes = [2, 32], strides = [1, 1]} : vector<4x32xf32> to vector<2x32xf32>
    %c6_151 = arith.constant 6 : index
    %c0_152 = arith.constant 0 : index
    %394 = vector.load %arg11[%c6_151, %c0_152] : memref<16x64xf32, #tpu.memory_space<vmem>>, vector<2x32xf32>
    tpu.vector_store %arg11[%c6_151, %c0_152], %393 {strides = array<i32>} : memref<16x64xf32, #tpu.memory_space<vmem>>, vector<2x32xf32>,
    %395 = vector.extract_strided_slice %392 {offsets = [2, 0], sizes = [2, 32], strides = [1, 1]} : vector<4x32xf32> to vector<2x32xf32>
    %c8_153 = arith.constant 8 : index
    %c32_154 = arith.constant 32 : index
    %396 = vector.load %arg11[%c8_153, %c32_154] : memref<16x64xf32, #tpu.memory_space<vmem>>, vector<2x32xf32>
    tpu.vector_store %arg11[%c8_153, %c32_154], %395 {strides = array<i32>} : memref<16x64xf32, #tpu.memory_space<vmem>>, vector<2x32xf32>,
    %397 = arith.truncf %392 : vector<4x32xf32> to vector<4x32xbf16>
    %c0_155 = arith.constant 0 : index
    %c0_156 = arith.constant 0 : index
    %398 = vector.load %arg5[%c0_155, %c0_156] : memref<32x256xbf16, #tpu.memory_space<vmem>>, vector<32x256xbf16>
    %cst_157 = arith.constant dense<0.000000e+00> : vector<4x256xf32>
    %399 = tpu.matmul %397, %398, %cst_157 {dimension_numbers = #tpu.dot_dimension_numbers<[1], [0], [0], [1], [0, 0, 1, 1], [], []>} : vector<4x32xbf16>, vector<32x256xbf16>, vector<4x256xf32> -> vector<4x256xf32>
    %400 = vector.extract_strided_slice %399 {offsets = [0, 0], sizes = [4, 128], strides = [1, 1]} : vector<4x256xf32> to vector<4x128xf32>
    %401 = vector.extract_strided_slice %399 {offsets = [0, 128], sizes = [4, 128], strides = [1, 1]} : vector<4x256xf32> to vector<4x128xf32>
    %402 = arith.select %2, %400, %401 : vector<4x128xi1>, vector<4x128xf32>
    %c8_158 = arith.constant 8 : index
    %c0_159 = arith.constant 0 : index
    %403 = vector.load %arg10[%c8_158, %c0_159] : memref<16x256xbf16, #tpu.memory_space<vmem>>, vector<2x128xbf16>
    %c6_160 = arith.constant 6 : index
    %c128_161 = arith.constant 128 : index
    %404 = vector.load %arg10[%c6_160, %c128_161] : memref<16x256xbf16, #tpu.memory_space<vmem>>, vector<2x128xbf16>
    %405 = tpu.concatenate %403, %404 in 0 : vector<2x128xbf16>, vector<2x128xbf16> -> vector<4x128xbf16>
    %406 = arith.extf %405 : vector<4x128xbf16> to vector<4x128xf32>
    %407 = arith.addf %406, %402 : vector<4x128xf32>
    %408 = vector.extract_strided_slice %407 {offsets = [0, 0], sizes = [4, 96], strides = [1, 1]} : vector<4x128xf32> to vector<4x96xf32>
    %409 = arith.negf %408 : vector<4x96xf32>
    %410 = math.exp %409 : vector<4x96xf32>
    %cst_162 = arith.constant 1.000000e+00 : f32
    %411 = vector.broadcast %cst_162 : f32 to vector<4x96xf32>
    %412 = arith.addf %411, %410 : vector<4x96xf32>
    %413 = arith.divf %411, %412 : vector<4x96xf32>
    %414 = vector.extract_strided_slice %413 {offsets = [0, 0], sizes = [4, 32], strides = [1, 1]} : vector<4x96xf32> to vector<4x32xf32>
    %415 = vector.extract_strided_slice %413 {offsets = [0, 32], sizes = [4, 32], strides = [1, 1]} : vector<4x96xf32> to vector<4x32xf32>
    %416 = vector.extract_strided_slice %413 {offsets = [0, 64], sizes = [4, 32], strides = [1, 1]} : vector<4x96xf32> to vector<4x32xf32>
    %417 = vector.extract_strided_slice %407 {offsets = [0, 96], sizes = [4, 32], strides = [1, 1]} : vector<4x128xf32> to vector<4x32xf32>
    %418 = math.tanh %417 : vector<4x32xf32>
    %419 = arith.mulf %415, %390 : vector<4x32xf32>
    %420 = arith.mulf %414, %418 : vector<4x32xf32>
    %421 = arith.addf %419, %420 : vector<4x32xf32>
    %422 = math.tanh %421 : vector<4x32xf32>
    %423 = arith.mulf %416, %422 : vector<4x32xf32>
    %424 = vector.extract_strided_slice %423 {offsets = [0, 0], sizes = [2, 32], strides = [1, 1]} : vector<4x32xf32> to vector<2x32xf32>
    %c8_163 = arith.constant 8 : index
    %c0_164 = arith.constant 0 : index
    %425 = vector.load %arg11[%c8_163, %c0_164] : memref<16x64xf32, #tpu.memory_space<vmem>>, vector<2x32xf32>
    tpu.vector_store %arg11[%c8_163, %c0_164], %424 {strides = array<i32>} : memref<16x64xf32, #tpu.memory_space<vmem>>, vector<2x32xf32>,
    %426 = vector.extract_strided_slice %423 {offsets = [2, 0], sizes = [2, 32], strides = [1, 1]} : vector<4x32xf32> to vector<2x32xf32>
    %c6_165 = arith.constant 6 : index
    %c32_166 = arith.constant 32 : index
    %427 = vector.load %arg11[%c6_165, %c32_166] : memref<16x64xf32, #tpu.memory_space<vmem>>, vector<2x32xf32>
    tpu.vector_store %arg11[%c6_165, %c32_166], %426 {strides = array<i32>} : memref<16x64xf32, #tpu.memory_space<vmem>>, vector<2x32xf32>,
    %428 = arith.truncf %423 : vector<4x32xf32> to vector<4x32xbf16>
    %c0_167 = arith.constant 0 : index
    %c0_168 = arith.constant 0 : index
    %429 = vector.load %arg5[%c0_167, %c0_168] : memref<32x256xbf16, #tpu.memory_space<vmem>>, vector<32x256xbf16>
    %cst_169 = arith.constant dense<0.000000e+00> : vector<4x256xf32>
    %430 = tpu.matmul %428, %429, %cst_169 {dimension_numbers = #tpu.dot_dimension_numbers<[1], [0], [0], [1], [0, 0, 1, 1], [], []>} : vector<4x32xbf16>, vector<32x256xbf16>, vector<4x256xf32> -> vector<4x256xf32>
    %431 = vector.extract_strided_slice %430 {offsets = [0, 0], sizes = [4, 128], strides = [1, 1]} : vector<4x256xf32> to vector<4x128xf32>
    %432 = vector.extract_strided_slice %430 {offsets = [0, 128], sizes = [4, 128], strides = [1, 1]} : vector<4x256xf32> to vector<4x128xf32>
    %433 = arith.select %2, %431, %432 : vector<4x128xi1>, vector<4x128xf32>
    %c10_170 = arith.constant 10 : index
    %c0_171 = arith.constant 0 : index
    %434 = vector.load %arg10[%c10_170, %c0_171] : memref<16x256xbf16, #tpu.memory_space<vmem>>, vector<2x128xbf16>
    %c4_172 = arith.constant 4 : index
    %c128_173 = arith.constant 128 : index
    %435 = vector.load %arg10[%c4_172, %c128_173] : memref<16x256xbf16, #tpu.memory_space<vmem>>, vector<2x128xbf16>
    %436 = tpu.concatenate %434, %435 in 0 : vector<2x128xbf16>, vector<2x128xbf16> -> vector<4x128xbf16>
    %437 = arith.extf %436 : vector<4x128xbf16> to vector<4x128xf32>
    %438 = arith.addf %437, %433 : vector<4x128xf32>
    %439 = vector.extract_strided_slice %438 {offsets = [0, 0], sizes = [4, 96], strides = [1, 1]} : vector<4x128xf32> to vector<4x96xf32>
    %440 = arith.negf %439 : vector<4x96xf32>
    %441 = math.exp %440 : vector<4x96xf32>
    %cst_174 = arith.constant 1.000000e+00 : f32
    %442 = vector.broadcast %cst_174 : f32 to vector<4x96xf32>
    %443 = arith.addf %442, %441 : vector<4x96xf32>
    %444 = arith.divf %442, %443 : vector<4x96xf32>
    %445 = vector.extract_strided_slice %444 {offsets = [0, 0], sizes = [4, 32], strides = [1, 1]} : vector<4x96xf32> to vector<4x32xf32>
    %446 = vector.extract_strided_slice %444 {offsets = [0, 32], sizes = [4, 32], strides = [1, 1]} : vector<4x96xf32> to vector<4x32xf32>
    %447 = vector.extract_strided_slice %444 {offsets = [0, 64], sizes = [4, 32], strides = [1, 1]} : vector<4x96xf32> to vector<4x32xf32>
    %448 = vector.extract_strided_slice %438 {offsets = [0, 96], sizes = [4, 32], strides = [1, 1]} : vector<4x128xf32> to vector<4x32xf32>
    %449 = math.tanh %448 : vector<4x32xf32>
    %450 = arith.mulf %446, %421 : vector<4x32xf32>
    %451 = arith.mulf %445, %449 : vector<4x32xf32>
    %452 = arith.addf %450, %451 : vector<4x32xf32>
    %453 = math.tanh %452 : vector<4x32xf32>
    %454 = arith.mulf %447, %453 : vector<4x32xf32>
    %455 = vector.extract_strided_slice %454 {offsets = [0, 0], sizes = [2, 32], strides = [1, 1]} : vector<4x32xf32> to vector<2x32xf32>
    %c10_175 = arith.constant 10 : index
    %c0_176 = arith.constant 0 : index
    %456 = vector.load %arg11[%c10_175, %c0_176] : memref<16x64xf32, #tpu.memory_space<vmem>>, vector<2x32xf32>
    tpu.vector_store %arg11[%c10_175, %c0_176], %455 {strides = array<i32>} : memref<16x64xf32, #tpu.memory_space<vmem>>, vector<2x32xf32>,
    %457 = vector.extract_strided_slice %454 {offsets = [2, 0], sizes = [2, 32], strides = [1, 1]} : vector<4x32xf32> to vector<2x32xf32>
    %c4_177 = arith.constant 4 : index
    %c32_178 = arith.constant 32 : index
    %458 = vector.load %arg11[%c4_177, %c32_178] : memref<16x64xf32, #tpu.memory_space<vmem>>, vector<2x32xf32>
    tpu.vector_store %arg11[%c4_177, %c32_178], %457 {strides = array<i32>} : memref<16x64xf32, #tpu.memory_space<vmem>>, vector<2x32xf32>,
    %459 = arith.truncf %454 : vector<4x32xf32> to vector<4x32xbf16>
    %c0_179 = arith.constant 0 : index
    %c0_180 = arith.constant 0 : index
    %460 = vector.load %arg5[%c0_179, %c0_180] : memref<32x256xbf16, #tpu.memory_space<vmem>>, vector<32x256xbf16>
    %cst_181 = arith.constant dense<0.000000e+00> : vector<4x256xf32>
    %461 = tpu.matmul %459, %460, %cst_181 {dimension_numbers = #tpu.dot_dimension_numbers<[1], [0], [0], [1], [0, 0, 1, 1], [], []>} : vector<4x32xbf16>, vector<32x256xbf16>, vector<4x256xf32> -> vector<4x256xf32>
    %462 = vector.extract_strided_slice %461 {offsets = [0, 0], sizes = [4, 128], strides = [1, 1]} : vector<4x256xf32> to vector<4x128xf32>
    %463 = vector.extract_strided_slice %461 {offsets = [0, 128], sizes = [4, 128], strides = [1, 1]} : vector<4x256xf32> to vector<4x128xf32>
    %464 = arith.select %2, %462, %463 : vector<4x128xi1>, vector<4x128xf32>
    %c12_182 = arith.constant 12 : index
    %c0_183 = arith.constant 0 : index
    %465 = vector.load %arg10[%c12_182, %c0_183] : memref<16x256xbf16, #tpu.memory_space<vmem>>, vector<2x128xbf16>
    %c2_184 = arith.constant 2 : index
    %c128_185 = arith.constant 128 : index
    %466 = vector.load %arg10[%c2_184, %c128_185] : memref<16x256xbf16, #tpu.memory_space<vmem>>, vector<2x128xbf16>
    %467 = tpu.concatenate %465, %466 in 0 : vector<2x128xbf16>, vector<2x128xbf16> -> vector<4x128xbf16>
    %468 = arith.extf %467 : vector<4x128xbf16> to vector<4x128xf32>
    %469 = arith.addf %468, %464 : vector<4x128xf32>
    %470 = vector.extract_strided_slice %469 {offsets = [0, 0], sizes = [4, 96], strides = [1, 1]} : vector<4x128xf32> to vector<4x96xf32>
    %471 = arith.negf %470 : vector<4x96xf32>
    %472 = math.exp %471 : vector<4x96xf32>
    %cst_186 = arith.constant 1.000000e+00 : f32
    %473 = vector.broadcast %cst_186 : f32 to vector<4x96xf32>
    %474 = arith.addf %473, %472 : vector<4x96xf32>
    %475 = arith.divf %473, %474 : vector<4x96xf32>
    %476 = vector.extract_strided_slice %475 {offsets = [0, 0], sizes = [4, 32], strides = [1, 1]} : vector<4x96xf32> to vector<4x32xf32>
    %477 = vector.extract_strided_slice %475 {offsets = [0, 32], sizes = [4, 32], strides = [1, 1]} : vector<4x96xf32> to vector<4x32xf32>
    %478 = vector.extract_strided_slice %475 {offsets = [0, 64], sizes = [4, 32], strides = [1, 1]} : vector<4x96xf32> to vector<4x32xf32>
    %479 = vector.extract_strided_slice %469 {offsets = [0, 96], sizes = [4, 32], strides = [1, 1]} : vector<4x128xf32> to vector<4x32xf32>
    %480 = math.tanh %479 : vector<4x32xf32>
    %481 = arith.mulf %477, %452 : vector<4x32xf32>
    %482 = arith.mulf %476, %480 : vector<4x32xf32>
    %483 = arith.addf %481, %482 : vector<4x32xf32>
    %484 = math.tanh %483 : vector<4x32xf32>
    %485 = arith.mulf %478, %484 : vector<4x32xf32>
    %486 = vector.extract_strided_slice %485 {offsets = [0, 0], sizes = [2, 32], strides = [1, 1]} : vector<4x32xf32> to vector<2x32xf32>
    %c12_187 = arith.constant 12 : index
    %c0_188 = arith.constant 0 : index
    %487 = vector.load %arg11[%c12_187, %c0_188] : memref<16x64xf32, #tpu.memory_space<vmem>>, vector<2x32xf32>
    tpu.vector_store %arg11[%c12_187, %c0_188], %486 {strides = array<i32>} : memref<16x64xf32, #tpu.memory_space<vmem>>, vector<2x32xf32>,
    %488 = vector.extract_strided_slice %485 {offsets = [2, 0], sizes = [2, 32], strides = [1, 1]} : vector<4x32xf32> to vector<2x32xf32>
    %c2_189 = arith.constant 2 : index
    %c32_190 = arith.constant 32 : index
    %489 = vector.load %arg11[%c2_189, %c32_190] : memref<16x64xf32, #tpu.memory_space<vmem>>, vector<2x32xf32>
    tpu.vector_store %arg11[%c2_189, %c32_190], %488 {strides = array<i32>} : memref<16x64xf32, #tpu.memory_space<vmem>>, vector<2x32xf32>,
    %490 = arith.truncf %485 : vector<4x32xf32> to vector<4x32xbf16>
    %c0_191 = arith.constant 0 : index
    %c0_192 = arith.constant 0 : index
    %491 = vector.load %arg5[%c0_191, %c0_192] : memref<32x256xbf16, #tpu.memory_space<vmem>>, vector<32x256xbf16>
    %cst_193 = arith.constant dense<0.000000e+00> : vector<4x256xf32>
    %492 = tpu.matmul %490, %491, %cst_193 {dimension_numbers = #tpu.dot_dimension_numbers<[1], [0], [0], [1], [0, 0, 1, 1], [], []>} : vector<4x32xbf16>, vector<32x256xbf16>, vector<4x256xf32> -> vector<4x256xf32>
    %493 = vector.extract_strided_slice %492 {offsets = [0, 0], sizes = [4, 128], strides = [1, 1]} : vector<4x256xf32> to vector<4x128xf32>
    %494 = vector.extract_strided_slice %492 {offsets = [0, 128], sizes = [4, 128], strides = [1, 1]} : vector<4x256xf32> to vector<4x128xf32>
    %495 = arith.select %2, %493, %494 : vector<4x128xi1>, vector<4x128xf32>
    %c14_194 = arith.constant 14 : index
    %c0_195 = arith.constant 0 : index
    %496 = vector.load %arg10[%c14_194, %c0_195] : memref<16x256xbf16, #tpu.memory_space<vmem>>, vector<2x128xbf16>
    %c0_196 = arith.constant 0 : index
    %c128_197 = arith.constant 128 : index
    %497 = vector.load %arg10[%c0_196, %c128_197] : memref<16x256xbf16, #tpu.memory_space<vmem>>, vector<2x128xbf16>
    %498 = tpu.concatenate %496, %497 in 0 : vector<2x128xbf16>, vector<2x128xbf16> -> vector<4x128xbf16>
    %499 = arith.extf %498 : vector<4x128xbf16> to vector<4x128xf32>
    %500 = arith.addf %499, %495 : vector<4x128xf32>
    %501 = vector.extract_strided_slice %500 {offsets = [0, 0], sizes = [4, 96], strides = [1, 1]} : vector<4x128xf32> to vector<4x96xf32>
    %502 = arith.negf %501 : vector<4x96xf32>
    %503 = math.exp %502 : vector<4x96xf32>
    %cst_198 = arith.constant 1.000000e+00 : f32
    %504 = vector.broadcast %cst_198 : f32 to vector<4x96xf32>
    %505 = arith.addf %504, %503 : vector<4x96xf32>
    %506 = arith.divf %504, %505 : vector<4x96xf32>
    %507 = vector.extract_strided_slice %506 {offsets = [0, 0], sizes = [4, 32], strides = [1, 1]} : vector<4x96xf32> to vector<4x32xf32>
    %508 = vector.extract_strided_slice %506 {offsets = [0, 32], sizes = [4, 32], strides = [1, 1]} : vector<4x96xf32> to vector<4x32xf32>
    %509 = vector.extract_strided_slice %506 {offsets = [0, 64], sizes = [4, 32], strides = [1, 1]} : vector<4x96xf32> to vector<4x32xf32>
    %510 = vector.extract_strided_slice %500 {offsets = [0, 96], sizes = [4, 32], strides = [1, 1]} : vector<4x128xf32> to vector<4x32xf32>
    %511 = math.tanh %510 : vector<4x32xf32>
    %512 = arith.mulf %508, %483 : vector<4x32xf32>
    %513 = arith.mulf %507, %511 : vector<4x32xf32>
    %514 = arith.addf %512, %513 : vector<4x32xf32>
    %515 = math.tanh %514 : vector<4x32xf32>
    %516 = arith.mulf %509, %515 : vector<4x32xf32>
    %517 = vector.extract_strided_slice %516 {offsets = [0, 0], sizes = [2, 32], strides = [1, 1]} : vector<4x32xf32> to vector<2x32xf32>
    %c14_199 = arith.constant 14 : index
    %c0_200 = arith.constant 0 : index
    %518 = vector.load %arg11[%c14_199, %c0_200] : memref<16x64xf32, #tpu.memory_space<vmem>>, vector<2x32xf32>
    tpu.vector_store %arg11[%c14_199, %c0_200], %517 {strides = array<i32>} : memref<16x64xf32, #tpu.memory_space<vmem>>, vector<2x32xf32>,
    %519 = vector.extract_strided_slice %516 {offsets = [2, 0], sizes = [2, 32], strides = [1, 1]} : vector<4x32xf32> to vector<2x32xf32>
    %c0_201 = arith.constant 0 : index
    %c32_202 = arith.constant 32 : index
    %520 = vector.load %arg11[%c0_201, %c32_202] : memref<16x64xf32, #tpu.memory_space<vmem>>, vector<2x32xf32>
    tpu.vector_store %arg11[%c0_201, %c32_202], %519 {strides = array<i32>} : memref<16x64xf32, #tpu.memory_space<vmem>>, vector<2x32xf32>,
    %c0_203 = arith.constant 0 : index
    %c0_204 = arith.constant 0 : index
    %521 = vector.load %arg11[%c0_203, %c0_204] : memref<16x64xf32, #tpu.memory_space<vmem>>, vector<16x64xf32>
    %522 = arith.truncf %521 : vector<16x64xf32> to vector<16x64xbf16>
    %c0_205 = arith.constant 0 : index
    %c0_206 = arith.constant 0 : index
    %523 = vector.load %arg7[%c0_205, %c0_206] : memref<64x32xbf16, #tpu.memory_space<vmem>>, vector<64x32xbf16>
    %cst_207 = arith.constant dense<0.000000e+00> : vector<16x32xf32>
    %524 = tpu.matmul %522, %523, %cst_207 {dimension_numbers = #tpu.dot_dimension_numbers<[1], [0], [0], [1], [0, 0, 1, 1], [], []>} : vector<16x64xbf16>, vector<64x32xbf16>, vector<16x32xf32> -> vector<16x32xf32>
    %c0_208 = arith.constant 0 : index
    %c0_209 = arith.constant 0 : index
    %525 = vector.load %arg8[%c0_208, %c0_209] : memref<1x32xf32, #tpu.memory_space<vmem>>, vector<1x32xf32>
    %526 = vector.broadcast %525 : vector<1x32xf32> to vector<16x32xf32>
    %527 = arith.addf %524, %526 : vector<16x32xf32>
    %c0_210 = arith.constant 0 : index
    %c0_211 = arith.constant 0 : index
    %528 = vector.load %arg0[%c0_210, %c0_211] : memref<16x32xf32, #tpu.memory_space<vmem>>, vector<16x32xf32>
    %529 = arith.addf %527, %528 : vector<16x32xf32>
    %c0_212 = arith.constant 0 : index
    %c0_213 = arith.constant 0 : index
    %530 = vector.load %arg9[%c0_212, %c0_213] : memref<16x32xf32, #tpu.memory_space<vmem>>, vector<16x32xf32>
    tpu.vector_store %arg9[%c0_212, %c0_213], %529 {strides = array<i32>} : memref<16x32xf32, #tpu.memory_space<vmem>>, vector<16x32xf32>,
    return
  }
}

</mosaic_0001>

<llo_original>
// kernel: blstm_forward.1
$region0: #{blstm_forward.1}
  #allocation0 [shape = 'u32[]', space=smem, size = 0x4, offset = 0x4, fixed_abs, tag = 'smem constant byte address 0x4 - core index']
  #allocation1 [shape = 'u32[144,128]{1,0:T(1,128)}', space=vmem, size = 0x12000, scoped, tag = 'internal scratch']
  #allocation2 [shape = 'bf16[16,256]{1,0:T(16,128)(2,1)}', space=vmem, size = 0x2000, scoped, tag = 'scratch operand']
  #allocation3 [shape = 'f32[16,64]{1,0:T(8,128)}', space=vmem, size = 0x2000, scoped, tag = 'scratch operand']
  %s0 = inlined_call_operand.vmem [shape: f32[16,32], index: 0, kind: input, shape index: {}]
  %s1 = inlined_call_operand.vmem [shape: bf16[32,256], index: 1, kind: input, shape index: {}]
  %s2 = inlined_call_operand.hbm [shape: bf16[32,256], index: 2, kind: input, shape index: {}]
  %s3 = inlined_call_operand.vmem [shape: f32[1,256], index: 3, kind: input, shape index: {}]
  %s4 = inlined_call_operand.vmem [shape: bf16[64,256], index: 4, kind: input, shape index: {}]
  %s5 = inlined_call_operand.hbm [shape: bf16[32,256], index: 5, kind: input, shape index: {}]
  %s6 = inlined_call_operand.vmem [shape: f32[1,256], index: 6, kind: input, shape index: {}]
  %s7 = inlined_call_operand.vmem [shape: bf16[64,32], index: 7, kind: input, shape index: {}]
  %s8 = inlined_call_operand.vmem [shape: f32[1,32], index: 8, kind: input, shape index: {}]
  %s9 = inlined_call_operand.vmem [shape: f32[16,32], index: 9, kind: output, shape index: {}]
  %s10 = sld [smem:[#allocation0]]
  $region54: #{blstm_forward.1} parent=0
    _
  %s12 = ssub.s32 1, %s10
  %s13 = scalar_select 0, %s12, %s10
  $region1: #{blstm_forward.1} parent=0
    #allocation4 [shape = 'u8[16384]{0}', space=vmem, size = 0x4000, scoped, tag = 'input window, operand 2, single buffered']
    #allocation5 [shape = 's32[1]{0}', space=sflag, size = 0x4, scoped, tag = 'scoped memory for blstm_forward.1']
    #allocation6 [shape = 'u8[16384]{0}', space=vmem, size = 0x4000, scoped, tag = 'input window, operand 5, single buffered']
    #allocation7 [shape = 's32[1]{0}', space=sflag, size = 0x4, scoped, tag = 'scoped memory for blstm_forward.1']
    %14 = vsyncpa [#allocation5], 0
    %15 = vsyncpa [#allocation7], 0
    // Predicated region
    $region2: #{blstm_forward.1} parent=1 // pred_check
      _
    $region3: #{blstm_forward.1} parent=1 // pred_check_branch
      %17 = sbr.rel (0) target = $region5
    $region4: #{blstm_forward.1} parent=1 // pred_region
      _
    $region5: #{blstm_forward.1} parent=1 // pred_fallthru
      _
    // Predicated region
    $region6: #{blstm_forward.1} parent=1 // pred_check
      _
    $region7: #{blstm_forward.1} parent=1 // pred_check_branch
      %19 = sbr.rel (0) target = $region9
    $region8: #{blstm_forward.1} parent=1 // pred_region
      _
    $region9: #{blstm_forward.1} parent=1 // pred_fallthru
      _
    // Predicated region
    $region10: #{blstm_forward.1} parent=1 // pred_check
      _
    $region11: #{blstm_forward.1} parent=1 // pred_check_branch
      %21 = sbr.rel (0) target = $region13
    $region12: #{blstm_forward.1} parent=1 // pred_region
      %s23 = ssub.s32 512, 512
      %24 = vsyncadd [#allocation5], %s23
      %s25 = sshll.u32 [#allocation4], 4
      %s26 = int_to_ptr.vmem [resolvable:$true] %s25
      %31 = dma.hbm_to_vmem [thread:$0]  %s2, 512, %s26, [#allocation5], 128, 128, 8
    $region13: #{blstm_forward.1} parent=1 // pred_fallthru
      _
    // Predicated region
    $region14: #{blstm_forward.1} parent=1 // pred_check
      _
    $region15: #{blstm_forward.1} parent=1 // pred_check_branch
      %33 = sbr.rel (0) target = $region17
    $region16: #{blstm_forward.1} parent=1 // pred_region
      _
    $region17: #{blstm_forward.1} parent=1 // pred_fallthru
      _
    // Predicated region
    $region18: #{blstm_forward.1} parent=1 // pred_check
      _
    $region19: #{blstm_forward.1} parent=1 // pred_check_branch
      %35 = sbr.rel (0) target = $region21
    $region20: #{blstm_forward.1} parent=1 // pred_region
      _
    $region21: #{blstm_forward.1} parent=1 // pred_fallthru
      _
    // Predicated region
    $region22: #{blstm_forward.1} parent=1 // pred_check
      _
    $region23: #{blstm_forward.1} parent=1 // pred_check_branch
      %37 = sbr.rel (0) target = $region25
    $region24: #{blstm_forward.1} parent=1 // pred_region
      %s39 = ssub.s32 512, 512
      %40 = vsyncadd [#allocation7], %s39
      %s41 = sshll.u32 [#allocation6], 4
      %s42 = int_to_ptr.vmem [resolvable:$true] %s41
      %47 = dma.hbm_to_vmem [thread:$0]  %s5, 512, %s42, [#allocation7], 128, 128, 8
    $region25: #{blstm_forward.1} parent=1 // pred_fallthru
      _
    // Predicated region
    $region26: #{blstm_forward.1} parent=1 // pred_check
      _
    $region27: #{blstm_forward.1} parent=1 // pred_check_branch
      %49 = sbr.rel (0) target = $region29
    $region28: #{blstm_forward.1} parent=1 // pred_region
      _
    $region29: #{blstm_forward.1} parent=1 // pred_fallthru
      _
    // Predicated region
    $region30: #{blstm_forward.1} parent=1 // pred_check
      _
    $region31: #{blstm_forward.1} parent=1 // pred_check_branch
      %51 = sbr.rel (0) target = $region33
    $region32: #{blstm_forward.1} parent=1 // pred_region
      _
    $region33: #{blstm_forward.1} parent=1 // pred_fallthru
      _
    // Predicated region
    $region34: #{blstm_forward.1} parent=1 // pred_check
      _
    $region35: #{blstm_forward.1} parent=1 // pred_check_branch
      %53 = sbr.rel (0) target = $region37
    $region36: #{blstm_forward.1} parent=1 // pred_region
      _
    $region37: #{blstm_forward.1} parent=1 // pred_fallthru
      _
    // Predicated region
    $region38: #{blstm_forward.1} parent=1 // pred_check
      _
    $region39: #{blstm_forward.1} parent=1 // pred_check_branch
      %55 = sbr.rel (0) target = $region41
    $region40: #{blstm_forward.1} parent=1 // pred_region
      %56 = dma.done [#allocation5], 512
    $region41: #{blstm_forward.1} parent=1 // pred_fallthru
      _
    // Predicated region
    $region42: #{blstm_forward.1} parent=1 // pred_check
      _
    $region43: #{blstm_forward.1} parent=1 // pred_check_branch
      %58 = sbr.rel (0) target = $region45
    $region44: #{blstm_forward.1} parent=1 // pred_region
      %59 = dma.done [#allocation7], 512
    $region45: #{blstm_forward.1} parent=1 // pred_fallthru
      _
    %v61 = vlaneseq
    %v62 = vshrl.u32 %v61, 7
    %vm63 = vcmp.lt.s32.totalorder %v62, 2
    %v64 = vld [vmem:[%s0] sm:$0xff]
    %v65 = vld [vmem:[%s0 + $0x8] sm:$0xff]
    %v66 = vpack.c.bf16 %v65, %v64
    %v67 = vld [vmem:[%s1] sm:$0xff]
    %v68 = vld [vmem:[%s1 + $0x8] sm:$0xff]
    %v69 = vld [vmem:[%s1 + $0x10] sm:$0xff]
    %v70 = vld [vmem:[%s1 + $0x18] sm:$0xff]
    %v71 = vld [vmem:[%s3] sm:$0x3]
    %v73 = vlaneseq
    %v74 = vshrl.u32 %v73, 7
    %v75 = vsub.s32 0, %v74
    %v76 = vrot.slane %v71, %v75
    %v77 = vlaneseq
    %v78 = vshrl.u32 %v77, 7
    %v79 = vsub.s32 1, %v78
    %v80 = vrot.slane %v71, %v79
    %v87 = vunpack.c.l.b16 %v67
    %v88 = vunpack.c.h.b16 %v67
    %v89 = vunpack.c.l.b16 %v68
    %v90 = vunpack.c.h.b16 %v68
    %v91 = vunpack.c.l.b16 %v69
    %v92 = vunpack.c.h.b16 %v69
    %v93 = vunpack.c.l.b16 %v70
    %v94 = vunpack.c.h.b16 %v70
    %v95 = vpack.c.b16 %v89, %v87
    %v96 = vpack.c.b16 %v90, %v88
    %v97 = vpack.c.b16 %v93, %v91
    %v98 = vpack.c.b16 %v94, %v92
    %vm103 = vcmask 261120
    %v105 = vsel %vm103, %v66, 0
    %107 = vmatprep.subr.bf16.mxu0 %v96
    %108 = vmatpush1.bf16.msra.mxu0 %v95
    %109 = vmatprep.subr.bf16.mxu0 %v98
    %110 = vmatpush1.bf16.msra.mxu0 %v97
    %111 = vmatprep.subr.bf16.mxu0 0
    %112 = vmatpush1.bf16.msra.mxu0 0
    %113 = vmatprep.subr.bf16.mxu0 0
    %114 = vmatpush1.bf16.msra.mxu0 0
    %115 = vmatprep.subr.bf16.mxu0 0
    %116 = vmatpush1.bf16.msra.mxu0 0
    %117 = vmatprep.subr.bf16.mxu0 0
    %118 = vmatpush1.bf16.msra.mxu0 0
    %119 = vmatprep.subr.bf16.mxu0 0
    %120 = vmatpush1.bf16.msra.mxu0 0
    %121 = vmatprep.subr.bf16.mxu0 0
    %122 = vmatpush1.bf16.msra.mxu0 0
    %123 = vmatprep.subr.bf16.mxu0 0
    %124 = vmatpush1.bf16.msra.mxu0 0
    %125 = vmatprep.subr.bf16.mxu0 0
    %126 = vmatpush1.bf16.msra.mxu0 0
    %127 = vmatprep.subr.bf16.mxu0 0
    %128 = vmatpush1.bf16.msra.mxu0 0
    %129 = vmatprep.subr.bf16.mxu0 0
    %130 = vmatpush1.bf16.msra.mxu0 0
    %131 = vmatprep.subr.bf16.mxu0 0
    %132 = vmatpush1.bf16.msra.mxu0 0
    %133 = vmatprep.subr.bf16.mxu0 0
    %134 = vmatpush1.bf16.msra.mxu0 0
    %135 = vmatprep.subr.bf16.mxu0 0
    %136 = vmatpush1.bf16.msra.mxu0 0
    %137 = vmatprep.subr.bf16.mxu0 0
    %138 = vmatpush1.bf16.msra.mxu0 0
    %139 = vmatprep.mubr.bf16.mxu0 0
    %140 = vmatmul.mubr.bf16.gmra.mrb[0].mxu0 %v105
    %v141 = vpop.f32.mrb[0].mxu0
    %v142 = vadd.f32 %v76, %v141
    %v143 = vpop.f32.mrb[0].mxu0
    %v144 = vadd.f32 %v80, %v143
    %v145 = vpop.f32.mrb[0].mxu0
    %v146 = vadd.f32 %v76, %v145
    %v147 = vpop.f32.mrb[0].mxu0
    %v148 = vadd.f32 %v80, %v147
    %149 = vdwg.mxu0
    %v150 = vpack.c.bf16 %v146, %v142
    %v151 = vpack.c.bf16 %v148, %v144
    %152 = vst [vmem:[#allocation2] sm:$0xff] %v150
    %153 = vst [vmem:[#allocation2 + $0x8] sm:$0xff] %v151
    %v154 = vld [vmem:[#allocation4] sm:$0xff]
    %v155 = vld [vmem:[#allocation4 + $0x8] sm:$0xff]
    %v156 = vld [vmem:[#allocation4 + $0x10] sm:$0xff]
    %v157 = vld [vmem:[#allocation4 + $0x18] sm:$0xff]
    %v162 = vunpack.c.l.b16 %v154
    %v163 = vunpack.c.h.b16 %v154
    %v164 = vunpack.c.l.b16 %v155
    %v165 = vunpack.c.h.b16 %v155
    %v166 = vunpack.c.l.b16 %v156
    %v167 = vunpack.c.h.b16 %v156
    %v168 = vunpack.c.l.b16 %v157
    %v169 = vunpack.c.h.b16 %v157
    %v170 = vpack.c.b16 %v164, %v162
    %v171 = vpack.c.b16 %v165, %v163
    %v172 = vpack.c.b16 %v168, %v166
    %v173 = vpack.c.b16 %v169, %v167
    %v179 = vsel %vm103, 0, 0
    %181 = vmatprep.subr.bf16.mxu0 %v171
    %182 = vmatpush1.bf16.msra.mxu0 %v170
    %183 = vmatprep.subr.bf16.mxu0 %v173
    %184 = vmatpush1.bf16.msra.mxu0 %v172
    %185 = vmatprep.subr.bf16.mxu0 0
    %186 = vmatpush1.bf16.msra.mxu0 0
    %187 = vmatprep.subr.bf16.mxu0 0
    %188 = vmatpush1.bf16.msra.mxu0 0
    %189 = vmatprep.subr.bf16.mxu0 0
    %190 = vmatpush1.bf16.msra.mxu0 0
    %191 = vmatprep.subr.bf16.mxu0 0
    %192 = vmatpush1.bf16.msra.mxu0 0
    %193 = vmatprep.subr.bf16.mxu0 0
    %194 = vmatpush1.bf16.msra.mxu0 0
    %195 = vmatprep.subr.bf16.mxu0 0
    %196 = vmatpush1.bf16.msra.mxu0 0
    %197 = vmatprep.subr.bf16.mxu0 0
    %198 = vmatpush1.bf16.msra.mxu0 0
    %199 = vmatprep.subr.bf16.mxu0 0
    %200 = vmatpush1.bf16.msra.mxu0 0
    %201 = vmatprep.subr.bf16.mxu0 0
    %202 = vmatpush1.bf16.msra.mxu0 0
    %203 = vmatprep.subr.bf16.mxu0 0
    %204 = vmatpush1.bf16.msra.mxu0 0
    %205 = vmatprep.subr.bf16.mxu0 0
    %206 = vmatpush1.bf16.msra.mxu0 0
    %207 = vmatprep.subr.bf16.mxu0 0
    %208 = vmatpush1.bf16.msra.mxu0 0
    %209 = vmatprep.subr.bf16.mxu0 0
    %210 = vmatpush1.bf16.msra.mxu0 0
    %211 = vmatprep.subr.bf16.mxu0 0
    %212 = vmatpush1.bf16.msra.mxu0 0
    %213 = vmatprep.mubr.bf16.mxu0 0
    %214 = vmatmul.mubr.bf16.gmra.mrb[0].mxu0 %v179
    %v215 = vpop.f32.mrb[0].mxu0
    %v216 = vadd.f32 0.0, %v215
    %v217 = vpop.f32.mrb[0].mxu0
    %v218 = vadd.f32 0.0, %v217
    %v219 = vpop.f32.mrb[0].mxu0
    %v220 = vpop.f32.mrb[0].mxu0
    %221 = vdwg.mxu0
    %v222 = vsel %vm63, %v216, %v218
    %v223 = vld [vmem:[#allocation2] sm:$0x1]
    %v224 = vld [vmem:[#allocation2 + $0x8] sm:$0x80]
    %v226 = vrot.slane %v224, 6
    %vm227 = vcmask 1040384
    %v230 = vsel %vm227, %v223, %v226
    %v232 = vunpack.c.l.bf16 %v230
    %v233 = vadd.f32 %v232, %v222
    %v234 = vxor.u32 %v233, 2147483648
    %v235 = vmul.f32 %v234, 1.442695
    %v236 = vpow.pop %v235
    %v237 = vadd.f32 %v236, 1.0
    %v238 = vrcp.pop %v237
    %v239 = vmul.f32 1.0, %v238
    %v240 = vtanh.pop %v233
    %v241 = vmul.f32 %v239, 0.0
    %243 = vrot.lane.b32.xlu0 %v240, 32
    %v244 = vpop.permute.xlu0 %243
    %v246 = vmul.f32 %v239, %v244
    %248 = vrot.lane.b32.xlu0 %v246, 32
    %v249 = vpop.permute.xlu0 %248
    %v251 = vadd.f32 %v241, %v249
    %v252 = vtanh.pop %v251
    %254 = vrot.lane.b32.xlu0 %v252, 32
    %v255 = vpop.permute.xlu0 %254
    %v257 = vmul.f32 %v239, %v255
    %259 = vrot.lane.b32.xlu0 %v257, 64
    %v260 = vpop.permute.xlu0 %259
    %vm262 = vcmask 254976
    %263 = vst.msk [vmem:[#allocation3] sm:$0x3] %vm262, %v260
    %264 = vrot.lane.b32.xlu0 %v257, 96
    %v265 = vpop.permute.xlu0 %264
    %vm267 = vcmask 519426
    %268 = vst.msk [vmem:[#allocation3 + $0xc] sm:$0xc] %vm267, %v265
    %v269 = vpack.c.bf16 %v257, %v257
    %v270 = vld [vmem:[#allocation4] sm:$0xff]
    %v271 = vld [vmem:[#allocation4 + $0x8] sm:$0xff]
    %v272 = vld [vmem:[#allocation4 + $0x10] sm:$0xff]
    %v273 = vld [vmem:[#allocation4 + $0x18] sm:$0xff]
    %275 = vrot.lane.b32.xlu0 %v269, 64
    %v276 = vpop.permute.xlu0 %275
    %v281 = vunpack.c.l.b16 %v270
    %v282 = vunpack.c.h.b16 %v270
    %v283 = vunpack.c.l.b16 %v271
    %v284 = vunpack.c.h.b16 %v271
    %v285 = vunpack.c.l.b16 %v272
    %v286 = vunpack.c.h.b16 %v272
    %v287 = vunpack.c.l.b16 %v273
    %v288 = vunpack.c.h.b16 %v273
    %v289 = vpack.c.b16 %v283, %v281
    %v290 = vpack.c.b16 %v284, %v282
    %v291 = vpack.c.b16 %v287, %v285
    %v292 = vpack.c.b16 %v288, %v286
    %v298 = vsel %vm103, %v276, 0
    %300 = vmatprep.subr.bf16.mxu0 %v290
    %301 = vmatpush1.bf16.msra.mxu0 %v289
    %302 = vmatprep.subr.bf16.mxu0 %v292
    %303 = vmatpush1.bf16.msra.mxu0 %v291
    %304 = vmatprep.subr.bf16.mxu0 0
    %305 = vmatpush1.bf16.msra.mxu0 0
    %306 = vmatprep.subr.bf16.mxu0 0
    %307 = vmatpush1.bf16.msra.mxu0 0
    %308 = vmatprep.subr.bf16.mxu0 0
    %309 = vmatpush1.bf16.msra.mxu0 0
    %310 = vmatprep.subr.bf16.mxu0 0
    %311 = vmatpush1.bf16.msra.mxu0 0
    %312 = vmatprep.subr.bf16.mxu0 0
    %313 = vmatpush1.bf16.msra.mxu0 0
    %314 = vmatprep.subr.bf16.mxu0 0
    %315 = vmatpush1.bf16.msra.mxu0 0
    %316 = vmatprep.subr.bf16.mxu0 0
    %317 = vmatpush1.bf16.msra.mxu0 0
    %318 = vmatprep.subr.bf16.mxu0 0
    %319 = vmatpush1.bf16.msra.mxu0 0
    %320 = vmatprep.subr.bf16.mxu0 0
    %321 = vmatpush1.bf16.msra.mxu0 0
    %322 = vmatprep.subr.bf16.mxu0 0
    %323 = vmatpush1.bf16.msra.mxu0 0
    %324 = vmatprep.subr.bf16.mxu0 0
    %325 = vmatpush1.bf16.msra.mxu0 0
    %326 = vmatprep.subr.bf16.mxu0 0
    %327 = vmatpush1.bf16.msra.mxu0 0
    %328 = vmatprep.subr.bf16.mxu0 0
    %329 = vmatpush1.bf16.msra.mxu0 0
    %330 = vmatprep.subr.bf16.mxu0 0
    %331 = vmatpush1.bf16.msra.mxu0 0
    %332 = vmatprep.mubr.bf16.mxu0 0
    %333 = vmatmul.mubr.bf16.gmra.mrb[0].mxu0 %v298
    %v334 = vpop.f32.mrb[0].mxu0
    %v335 = vadd.f32 0.0, %v334
    %v336 = vpop.f32.mrb[0].mxu0
    %v337 = vadd.f32 0.0, %v336
    %v338 = vpop.f32.mrb[0].mxu0
    %v339 = vpop.f32.mrb[0].mxu0
    %340 = vdwg.mxu0
    %v341 = vsel %vm63, %v335, %v337
    %v342 = vld [vmem:[#allocation2] sm:$0x2]
    %v343 = vld [vmem:[#allocation2 + $0x8] sm:$0x40]
    %v345 = vrot.slane %v342, 1
    %v347 = vrot.slane %v343, 5
    %v350 = vsel %vm227, %v345, %v347
    %v352 = vunpack.c.l.bf16 %v350
    %v353 = vadd.f32 %v352, %v341
    %v354 = vxor.u32 %v353, 2147483648
    %v355 = vmul.f32 %v354, 1.442695
    %v356 = vpow.pop %v355
    %v357 = vadd.f32 %v356, 1.0
    %v358 = vrcp.pop %v357
    %v359 = vmul.f32 1.0, %v358
    %v360 = vtanh.pop %v353
    %v361 = vmul.f32 %v359, %v251
    %363 = vrot.lane.b32.xlu0 %v360, 32
    %v364 = vpop.permute.xlu0 %363
    %v366 = vmul.f32 %v359, %v364
    %368 = vrot.lane.b32.xlu0 %v366, 32
    %v369 = vpop.permute.xlu0 %368
    %v371 = vadd.f32 %v361, %v369
    %v372 = vtanh.pop %v371
    %374 = vrot.lane.b32.xlu0 %v372, 32
    %v375 = vpop.permute.xlu0 %374
    %v377 = vmul.f32 %v359, %v375
    %379 = vrot.lane.b32.xlu0 %v377, 64
    %v380 = vpop.permute.xlu0 %379
    %382 = vst.msk [vmem:[#allocation3 + $0x2] sm:$0x3] %vm262, %v380
    %383 = vrot.lane.b32.xlu0 %v377, 96
    %v384 = vpop.permute.xlu0 %383
    %386 = vst.msk [vmem:[#allocation3 + $0xa] sm:$0xc] %vm267, %v384
    %v387 = vpack.c.bf16 %v377, %v377
    %v388 = vld [vmem:[#allocation4] sm:$0xff]
    %v389 = vld [vmem:[#allocation4 + $0x8] sm:$0xff]
    %v390 = vld [vmem:[#allocation4 + $0x10] sm:$0xff]
    %v391 = vld [vmem:[#allocation4 + $0x18] sm:$0xff]
    %393 = vrot.lane.b32.xlu0 %v387, 64
    %v394 = vpop.permute.xlu0 %393
    %v399 = vunpack.c.l.b16 %v388
    %v400 = vunpack.c.h.b16 %v388
    %v401 = vunpack.c.l.b16 %v389
    %v402 = vunpack.c.h.b16 %v389
    %v403 = vunpack.c.l.b16 %v390
    %v404 = vunpack.c.h.b16 %v390
    %v405 = vunpack.c.l.b16 %v391
    %v406 = vunpack.c.h.b16 %v391
    %v407 = vpack.c.b16 %v401, %v399
    %v408 = vpack.c.b16 %v402, %v400
    %v409 = vpack.c.b16 %v405, %v403
    %v410 = vpack.c.b16 %v406, %v404
    %v416 = vsel %vm103, %v394, 0
    %418 = vmatprep.subr.bf16.mxu0 %v408
    %419 = vmatpush1.bf16.msra.mxu0 %v407
    %420 = vmatprep.subr.bf16.mxu0 %v410
    %421 = vmatpush1.bf16.msra.mxu0 %v409
    %422 = vmatprep.subr.bf16.mxu0 0
    %423 = vmatpush1.bf16.msra.mxu0 0
    %424 = vmatprep.subr.bf16.mxu0 0
    %425 = vmatpush1.bf16.msra.mxu0 0
    %426 = vmatprep.subr.bf16.mxu0 0
    %427 = vmatpush1.bf16.msra.mxu0 0
    %428 = vmatprep.subr.bf16.mxu0 0
    %429 = vmatpush1.bf16.msra.mxu0 0
    %430 = vmatprep.subr.bf16.mxu0 0
    %431 = vmatpush1.bf16.msra.mxu0 0
    %432 = vmatprep.subr.bf16.mxu0 0
    %433 = vmatpush1.bf16.msra.mxu0 0
    %434 = vmatprep.subr.bf16.mxu0 0
    %435 = vmatpush1.bf16.msra.mxu0 0
    %436 = vmatprep.subr.bf16.mxu0 0
    %437 = vmatpush1.bf16.msra.mxu0 0
    %438 = vmatprep.subr.bf16.mxu0 0
    %439 = vmatpush1.bf16.msra.mxu0 0
    %440 = vmatprep.subr.bf16.mxu0 0
    %441 = vmatpush1.bf16.msra.mxu0 0
    %442 = vmatprep.subr.bf16.mxu0 0
    %443 = vmatpush1.bf16.msra.mxu0 0
    %444 = vmatprep.subr.bf16.mxu0 0
    %445 = vmatpush1.bf16.msra.mxu0 0
    %446 = vmatprep.subr.bf16.mxu0 0
    %447 = vmatpush1.bf16.msra.mxu0 0
    %448 = vmatprep.subr.bf16.mxu0 0
    %449 = vmatpush1.bf16.msra.mxu0 0
    %450 = vmatprep.mubr.bf16.mxu0 0
    %451 = vmatmul.mubr.bf16.gmra.mrb[0].mxu0 %v416
    %v452 = vpop.f32.mrb[0].mxu0
    %v453 = vadd.f32 0.0, %v452
    %v454 = vpop.f32.mrb[0].mxu0
    %v455 = vadd.f32 0.0, %v454
    %v456 = vpop.f32.mrb[0].mxu0
    %v457 = vpop.f32.mrb[0].mxu0
    %458 = vdwg.mxu0
    %v459 = vsel %vm63, %v453, %v455
    %v460 = vld [vmem:[#allocation2] sm:$0x4]
    %v461 = vld [vmem:[#allocation2 + $0x8] sm:$0x20]
    %v463 = vrot.slane %v460, 2
    %v465 = vrot.slane %v461, 4
    %v468 = vsel %vm227, %v463, %v465
    %v470 = vunpack.c.l.bf16 %v468
    %v471 = vadd.f32 %v470, %v459
    %v472 = vxor.u32 %v471, 2147483648
    %v473 = vmul.f32 %v472, 1.442695
    %v474 = vpow.pop %v473
    %v475 = vadd.f32 %v474, 1.0
    %v476 = vrcp.pop %v475
    %v477 = vmul.f32 1.0, %v476
    %v478 = vtanh.pop %v471
    %v479 = vmul.f32 %v477, %v371
    %481 = vrot.lane.b32.xlu0 %v478, 32
    %v482 = vpop.permute.xlu0 %481
    %v484 = vmul.f32 %v477, %v482
    %486 = vrot.lane.b32.xlu0 %v484, 32
    %v487 = vpop.permute.xlu0 %486
    %v489 = vadd.f32 %v479, %v487
    %v490 = vtanh.pop %v489
    %492 = vrot.lane.b32.xlu0 %v490, 32
    %v493 = vpop.permute.xlu0 %492
    %v495 = vmul.f32 %v477, %v493
    %497 = vrot.lane.b32.xlu0 %v495, 64
    %v498 = vpop.permute.xlu0 %497
    %500 = vst.msk [vmem:[#allocation3 + $0x4] sm:$0x3] %vm262, %v498
    %501 = vrot.lane.b32.xlu0 %v495, 96
    %v502 = vpop.permute.xlu0 %501
    %504 = vst.msk [vmem:[#allocation3 + $0x8] sm:$0xc] %vm267, %v502
    %v505 = vpack.c.bf16 %v495, %v495
    %v506 = vld [vmem:[#allocation4] sm:$0xff]
    %v507 = vld [vmem:[#allocation4 + $0x8] sm:$0xff]
    %v508 = vld [vmem:[#allocation4 + $0x10] sm:$0xff]
    %v509 = vld [vmem:[#allocation4 + $0x18] sm:$0xff]
    %511 = vrot.lane.b32.xlu0 %v505, 64
    %v512 = vpop.permute.xlu0 %511
    %v517 = vunpack.c.l.b16 %v506
    %v518 = vunpack.c.h.b16 %v506
    %v519 = vunpack.c.l.b16 %v507
    %v520 = vunpack.c.h.b16 %v507
    %v521 = vunpack.c.l.b16 %v508
    %v522 = vunpack.c.h.b16 %v508
    %v523 = vunpack.c.l.b16 %v509
    %v524 = vunpack.c.h.b16 %v509
    %v525 = vpack.c.b16 %v519, %v517
    %v526 = vpack.c.b16 %v520, %v518
    %v527 = vpack.c.b16 %v523, %v521
    %v528 = vpack.c.b16 %v524, %v522
    %v534 = vsel %vm103, %v512, 0
    %536 = vmatprep.subr.bf16.mxu0 %v526
    %537 = vmatpush1.bf16.msra.mxu0 %v525
    %538 = vmatprep.subr.bf16.mxu0 %v528
    %539 = vmatpush1.bf16.msra.mxu0 %v527
    %540 = vmatprep.subr.bf16.mxu0 0
    %541 = vmatpush1.bf16.msra.mxu0 0
    %542 = vmatprep.subr.bf16.mxu0 0
    %543 = vmatpush1.bf16.msra.mxu0 0
    %544 = vmatprep.subr.bf16.mxu0 0
    %545 = vmatpush1.bf16.msra.mxu0 0
    %546 = vmatprep.subr.bf16.mxu0 0
    %547 = vmatpush1.bf16.msra.mxu0 0
    %548 = vmatprep.subr.bf16.mxu0 0
    %549 = vmatpush1.bf16.msra.mxu0 0
    %550 = vmatprep.subr.bf16.mxu0 0
    %551 = vmatpush1.bf16.msra.mxu0 0
    %552 = vmatprep.subr.bf16.mxu0 0
    %553 = vmatpush1.bf16.msra.mxu0 0
    %554 = vmatprep.subr.bf16.mxu0 0
    %555 = vmatpush1.bf16.msra.mxu0 0
    %556 = vmatprep.subr.bf16.mxu0 0
    %557 = vmatpush1.bf16.msra.mxu0 0
    %558 = vmatprep.subr.bf16.mxu0 0
    %559 = vmatpush1.bf16.msra.mxu0 0
    %560 = vmatprep.subr.bf16.mxu0 0
    %561 = vmatpush1.bf16.msra.mxu0 0
    %562 = vmatprep.subr.bf16.mxu0 0
    %563 = vmatpush1.bf16.msra.mxu0 0
    %564 = vmatprep.subr.bf16.mxu0 0
    %565 = vmatpush1.bf16.msra.mxu0 0
    %566 = vmatprep.subr.bf16.mxu0 0
    %567 = vmatpush1.bf16.msra.mxu0 0
    %568 = vmatprep.mubr.bf16.mxu0 0
    %569 = vmatmul.mubr.bf16.gmra.mrb[0].mxu0 %v534
    %v570 = vpop.f32.mrb[0].mxu0
    %v571 = vadd.f32 0.0, %v570
    %v572 = vpop.f32.mrb[0].mxu0
    %v573 = vadd.f32 0.0, %v572
    %v574 = vpop.f32.mrb[0].mxu0
    %v575 = vpop.f32.mrb[0].mxu0
    %576 = vdwg.mxu0
    %v577 = vsel %vm63, %v571, %v573
    %v578 = vld [vmem:[#allocation2] sm:$0x8]
    %v579 = vld [vmem:[#allocation2 + $0x8] sm:$0x10]
    %v581 = vrot.slane %v578, 3
    %v583 = vrot.slane %v579, 3
    %v586 = vsel %vm227, %v581, %v583
    %v588 = vunpack.c.l.bf16 %v586
    %v589 = vadd.f32 %v588, %v577
    %v590 = vxor.u32 %v589, 2147483648
    %v591 = vmul.f32 %v590, 1.442695
    %v592 = vpow.pop %v591
    %v593 = vadd.f32 %v592, 1.0
    %v594 = vrcp.pop %v593
    %v595 = vmul.f32 1.0, %v594
    %v596 = vtanh.pop %v589
    %v597 = vmul.f32 %v595, %v489
    %599 = vrot.lane.b32.xlu0 %v596, 32
    %v600 = vpop.permute.xlu0 %599
    %v602 = vmul.f32 %v595, %v600
    %604 = vrot.lane.b32.xlu0 %v602, 32
    %v605 = vpop.permute.xlu0 %604
    %v607 = vadd.f32 %v597, %v605
    %v608 = vtanh.pop %v607
    %610 = vrot.lane.b32.xlu0 %v608, 32
    %v611 = vpop.permute.xlu0 %610
    %v613 = vmul.f32 %v595, %v611
    %615 = vrot.lane.b32.xlu0 %v613, 64
    %v616 = vpop.permute.xlu0 %615
    %618 = vst.msk [vmem:[#allocation3 + $0x6] sm:$0x3] %vm262, %v616
    %619 = vrot.lane.b32.xlu0 %v613, 96
    %v620 = vpop.permute.xlu0 %619
    %622 = vst.msk [vmem:[#allocation3 + $0x6] sm:$0xc] %vm267, %v620
    %v623 = vpack.c.bf16 %v613, %v613
    %v624 = vld [vmem:[#allocation4] sm:$0xff]
    %v625 = vld [vmem:[#allocation4 + $0x8] sm:$0xff]
    %v626 = vld [vmem:[#allocation4 + $0x10] sm:$0xff]
    %v627 = vld [vmem:[#allocation4 + $0x18] sm:$0xff]
    %629 = vrot.lane.b32.xlu0 %v623, 64
    %v630 = vpop.permute.xlu0 %629
    %v635 = vunpack.c.l.b16 %v624
    %v636 = vunpack.c.h.b16 %v624
    %v637 = vunpack.c.l.b16 %v625
    %v638 = vunpack.c.h.b16 %v625
    %v639 = vunpack.c.l.b16 %v626
    %v640 = vunpack.c.h.b16 %v626
    %v641 = vunpack.c.l.b16 %v627
    %v642 = vunpack.c.h.b16 %v627
    %v643 = vpack.c.b16 %v637, %v635
    %v644 = vpack.c.b16 %v638, %v636
    %v645 = vpack.c.b16 %v641, %v639
    %v646 = vpack.c.b16 %v642, %v640
    %v652 = vsel %vm103, %v630, 0
    %654 = vmatprep.subr.bf16.mxu0 %v644
    %655 = vmatpush1.bf16.msra.mxu0 %v643
    %656 = vmatprep.subr.bf16.mxu0 %v646
    %657 = vmatpush1.bf16.msra.mxu0 %v645
    %658 = vmatprep.subr.bf16.mxu0 0
    %659 = vmatpush1.bf16.msra.mxu0 0
    %660 = vmatprep.subr.bf16.mxu0 0
    %661 = vmatpush1.bf16.msra.mxu0 0
    %662 = vmatprep.subr.bf16.mxu0 0
    %663 = vmatpush1.bf16.msra.mxu0 0
    %664 = vmatprep.subr.bf16.mxu0 0
    %665 = vmatpush1.bf16.msra.mxu0 0
    %666 = vmatprep.subr.bf16.mxu0 0
    %667 = vmatpush1.bf16.msra.mxu0 0
    %668 = vmatprep.subr.bf16.mxu0 0
    %669 = vmatpush1.bf16.msra.mxu0 0
    %670 = vmatprep.subr.bf16.mxu0 0
    %671 = vmatpush1.bf16.msra.mxu0 0
    %672 = vmatprep.subr.bf16.mxu0 0
    %673 = vmatpush1.bf16.msra.mxu0 0
    %674 = vmatprep.subr.bf16.mxu0 0
    %675 = vmatpush1.bf16.msra.mxu0 0
    %676 = vmatprep.subr.bf16.mxu0 0
    %677 = vmatpush1.bf16.msra.mxu0 0
    %678 = vmatprep.subr.bf16.mxu0 0
    %679 = vmatpush1.bf16.msra.mxu0 0
    %680 = vmatprep.subr.bf16.mxu0 0
    %681 = vmatpush1.bf16.msra.mxu0 0
    %682 = vmatprep.subr.bf16.mxu0 0
    %683 = vmatpush1.bf16.msra.mxu0 0
    %684 = vmatprep.subr.bf16.mxu0 0
    %685 = vmatpush1.bf16.msra.mxu0 0
    %686 = vmatprep.mubr.bf16.mxu0 0
    %687 = vmatmul.mubr.bf16.gmra.mrb[0].mxu0 %v652
    %v688 = vpop.f32.mrb[0].mxu0
    %v689 = vadd.f32 0.0, %v688
    %v690 = vpop.f32.mrb[0].mxu0
    %v691 = vadd.f32 0.0, %v690
    %v692 = vpop.f32.mrb[0].mxu0
    %v693 = vpop.f32.mrb[0].mxu0
    %694 = vdwg.mxu0
    %v695 = vsel %vm63, %v689, %v691
    %v696 = vld [vmem:[#allocation2] sm:$0x10]
    %v697 = vld [vmem:[#allocation2 + $0x8] sm:$0x8]
    %v699 = vrot.slane %v696, 4
    %v701 = vrot.slane %v697, 2
    %v704 = vsel %vm227, %v699, %v701
    %v706 = vunpack.c.l.bf16 %v704
    %v707 = vadd.f32 %v706, %v695
    %v708 = vxor.u32 %v707, 2147483648
    %v709 = vmul.f32 %v708, 1.442695
    %v710 = vpow.pop %v709
    %v711 = vadd.f32 %v710, 1.0
    %v712 = vrcp.pop %v711
    %v713 = vmul.f32 1.0, %v712
    %v714 = vtanh.pop %v707
    %v715 = vmul.f32 %v713, %v607
    %717 = vrot.lane.b32.xlu0 %v714, 32
    %v718 = vpop.permute.xlu0 %717
    %v720 = vmul.f32 %v713, %v718
    %722 = vrot.lane.b32.xlu0 %v720, 32
    %v723 = vpop.permute.xlu0 %722
    %v725 = vadd.f32 %v715, %v723
    %v726 = vtanh.pop %v725
    %728 = vrot.lane.b32.xlu0 %v726, 32
    %v729 = vpop.permute.xlu0 %728
    %v731 = vmul.f32 %v713, %v729
    %733 = vrot.lane.b32.xlu0 %v731, 64
    %v734 = vpop.permute.xlu0 %733
    %736 = vst.msk [vmem:[#allocation3 + $0x8] sm:$0x3] %vm262, %v734
    %737 = vrot.lane.b32.xlu0 %v731, 96
    %v738 = vpop.permute.xlu0 %737
    %740 = vst.msk [vmem:[#allocation3 + $0x4] sm:$0xc] %vm267, %v738
    %v741 = vpack.c.bf16 %v731, %v731
    %v742 = vld [vmem:[#allocation4] sm:$0xff]
    %v743 = vld [vmem:[#allocation4 + $0x8] sm:$0xff]
    %v744 = vld [vmem:[#allocation4 + $0x10] sm:$0xff]
    %v745 = vld [vmem:[#allocation4 + $0x18] sm:$0xff]
    %747 = vrot.lane.b32.xlu0 %v741, 64
    %v748 = vpop.permute.xlu0 %747
    %v753 = vunpack.c.l.b16 %v742
    %v754 = vunpack.c.h.b16 %v742
    %v755 = vunpack.c.l.b16 %v743
    %v756 = vunpack.c.h.b16 %v743
    %v757 = vunpack.c.l.b16 %v744
    %v758 = vunpack.c.h.b16 %v744
    %v759 = vunpack.c.l.b16 %v745
    %v760 = vunpack.c.h.b16 %v745
    %v761 = vpack.c.b16 %v755, %v753
    %v762 = vpack.c.b16 %v756, %v754
    %v763 = vpack.c.b16 %v759, %v757
    %v764 = vpack.c.b16 %v760, %v758
    %v770 = vsel %vm103, %v748, 0
    %772 = vmatprep.subr.bf16.mxu0 %v762
    %773 = vmatpush1.bf16.msra.mxu0 %v761
    %774 = vmatprep.subr.bf16.mxu0 %v764
    %775 = vmatpush1.bf16.msra.mxu0 %v763
    %776 = vmatprep.subr.bf16.mxu0 0
    %777 = vmatpush1.bf16.msra.mxu0 0
    %778 = vmatprep.subr.bf16.mxu0 0
    %779 = vmatpush1.bf16.msra.mxu0 0
    %780 = vmatprep.subr.bf16.mxu0 0
    %781 = vmatpush1.bf16.msra.mxu0 0
    %782 = vmatprep.subr.bf16.mxu0 0
    %783 = vmatpush1.bf16.msra.mxu0 0
    %784 = vmatprep.subr.bf16.mxu0 0
    %785 = vmatpush1.bf16.msra.mxu0 0
    %786 = vmatprep.subr.bf16.mxu0 0
    %787 = vmatpush1.bf16.msra.mxu0 0
    %788 = vmatprep.subr.bf16.mxu0 0
    %789 = vmatpush1.bf16.msra.mxu0 0
    %790 = vmatprep.subr.bf16.mxu0 0
    %791 = vmatpush1.bf16.msra.mxu0 0
    %792 = vmatprep.subr.bf16.mxu0 0
    %793 = vmatpush1.bf16.msra.mxu0 0
    %794 = vmatprep.subr.bf16.mxu0 0
    %795 = vmatpush1.bf16.msra.mxu0 0
    %796 = vmatprep.subr.bf16.mxu0 0
    %797 = vmatpush1.bf16.msra.mxu0 0
    %798 = vmatprep.subr.bf16.mxu0 0
    %799 = vmatpush1.bf16.msra.mxu0 0
    %800 = vmatprep.subr.bf16.mxu0 0
    %801 = vmatpush1.bf16.msra.mxu0 0
    %802 = vmatprep.subr.bf16.mxu0 0
    %803 = vmatpush1.bf16.msra.mxu0 0
    %804 = vmatprep.mubr.bf16.mxu0 0
    %805 = vmatmul.mubr.bf16.gmra.mrb[0].mxu0 %v770
    %v806 = vpop.f32.mrb[0].mxu0
    %v807 = vadd.f32 0.0, %v806
    %v808 = vpop.f32.mrb[0].mxu0
    %v809 = vadd.f32 0.0, %v808
    %v810 = vpop.f32.mrb[0].mxu0
    %v811 = vpop.f32.mrb[0].mxu0
    %812 = vdwg.mxu0
    %v813 = vsel %vm63, %v807, %v809
    %v814 = vld [vmem:[#allocation2] sm:$0x20]
    %v815 = vld [vmem:[#allocation2 + $0x8] sm:$0x4]
    %v817 = vrot.slane %v814, 5
    %v819 = vrot.slane %v815, 1
    %v822 = vsel %vm227, %v817, %v819
    %v824 = vunpack.c.l.bf16 %v822
    %v825 = vadd.f32 %v824, %v813
    %v826 = vxor.u32 %v825, 2147483648
    %v827 = vmul.f32 %v826, 1.442695
    %v828 = vpow.pop %v827
    %v829 = vadd.f32 %v828, 1.0
    %v830 = vrcp.pop %v829
    %v831 = vmul.f32 1.0, %v830
    %v832 = vtanh.pop %v825
    %v833 = vmul.f32 %v831, %v725
    %835 = vrot.lane.b32.xlu0 %v832, 32
    %v836 = vpop.permute.xlu0 %835
    %v838 = vmul.f32 %v831, %v836
    %840 = vrot.lane.b32.xlu0 %v838, 32
    %v841 = vpop.permute.xlu0 %840
    %v843 = vadd.f32 %v833, %v841
    %v844 = vtanh.pop %v843
    %846 = vrot.lane.b32.xlu0 %v844, 32
    %v847 = vpop.permute.xlu0 %846
    %v849 = vmul.f32 %v831, %v847
    %851 = vrot.lane.b32.xlu0 %v849, 64
    %v852 = vpop.permute.xlu0 %851
    %854 = vst.msk [vmem:[#allocation3 + $0xa] sm:$0x3] %vm262, %v852
    %855 = vrot.lane.b32.xlu0 %v849, 96
    %v856 = vpop.permute.xlu0 %855
    %858 = vst.msk [vmem:[#allocation3 + $0x2] sm:$0xc] %vm267, %v856
    %v859 = vpack.c.bf16 %v849, %v849
    %v860 = vld [vmem:[#allocation4] sm:$0xff]
    %v861 = vld [vmem:[#allocation4 + $0x8] sm:$0xff]
    %v862 = vld [vmem:[#allocation4 + $0x10] sm:$0xff]
    %v863 = vld [vmem:[#allocation4 + $0x18] sm:$0xff]
    %865 = vrot.lane.b32.xlu0 %v859, 64
    %v866 = vpop.permute.xlu0 %865
    %v871 = vunpack.c.l.b16 %v860
    %v872 = vunpack.c.h.b16 %v860
    %v873 = vunpack.c.l.b16 %v861
    %v874 = vunpack.c.h.b16 %v861
    %v875 = vunpack.c.l.b16 %v862
    %v876 = vunpack.c.h.b16 %v862
    %v877 = vunpack.c.l.b16 %v863
    %v878 = vunpack.c.h.b16 %v863
    %v879 = vpack.c.b16 %v873, %v871
    %v880 = vpack.c.b16 %v874, %v872
    %v881 = vpack.c.b16 %v877, %v875
    %v882 = vpack.c.b16 %v878, %v876
    %v888 = vsel %vm103, %v866, 0
    %890 = vmatprep.subr.bf16.mxu0 %v880
    %891 = vmatpush1.bf16.msra.mxu0 %v879
    %892 = vmatprep.subr.bf16.mxu0 %v882
    %893 = vmatpush1.bf16.msra.mxu0 %v881
    %894 = vmatprep.subr.bf16.mxu0 0
    %895 = vmatpush1.bf16.msra.mxu0 0
    %896 = vmatprep.subr.bf16.mxu0 0
    %897 = vmatpush1.bf16.msra.mxu0 0
    %898 = vmatprep.subr.bf16.mxu0 0
    %899 = vmatpush1.bf16.msra.mxu0 0
    %900 = vmatprep.subr.bf16.mxu0 0
    %901 = vmatpush1.bf16.msra.mxu0 0
    %902 = vmatprep.subr.bf16.mxu0 0
    %903 = vmatpush1.bf16.msra.mxu0 0
    %904 = vmatprep.subr.bf16.mxu0 0
    %905 = vmatpush1.bf16.msra.mxu0 0
    %906 = vmatprep.subr.bf16.mxu0 0
    %907 = vmatpush1.bf16.msra.mxu0 0
    %908 = vmatprep.subr.bf16.mxu0 0
    %909 = vmatpush1.bf16.msra.mxu0 0
    %910 = vmatprep.subr.bf16.mxu0 0
    %911 = vmatpush1.bf16.msra.mxu0 0
    %912 = vmatprep.subr.bf16.mxu0 0
    %913 = vmatpush1.bf16.msra.mxu0 0
    %914 = vmatprep.subr.bf16.mxu0 0
    %915 = vmatpush1.bf16.msra.mxu0 0
    %916 = vmatprep.subr.bf16.mxu0 0
    %917 = vmatpush1.bf16.msra.mxu0 0
    %918 = vmatprep.subr.bf16.mxu0 0
    %919 = vmatpush1.bf16.msra.mxu0 0
    %920 = vmatprep.subr.bf16.mxu0 0
    %921 = vmatpush1.bf16.msra.mxu0 0
    %922 = vmatprep.mubr.bf16.mxu0 0
    %923 = vmatmul.mubr.bf16.gmra.mrb[0].mxu0 %v888
    %v924 = vpop.f32.mrb[0].mxu0
    %v925 = vadd.f32 0.0, %v924
    %v926 = vpop.f32.mrb[0].mxu0
    %v927 = vadd.f32 0.0, %v926
    %v928 = vpop.f32.mrb[0].mxu0
    %v929 = vpop.f32.mrb[0].mxu0
    %930 = vdwg.mxu0
    %v931 = vsel %vm63, %v925, %v927
    %v932 = vld [vmem:[#allocation2] sm:$0x40]
    %v933 = vld [vmem:[#allocation2 + $0x8] sm:$0x2]
    %v935 = vrot.slane %v932, 6
    %v938 = vsel %vm227, %v935, %v933
    %v940 = vunpack.c.l.bf16 %v938
    %v941 = vadd.f32 %v940, %v931
    %v942 = vxor.u32 %v941, 2147483648
    %v943 = vmul.f32 %v942, 1.442695
    %v944 = vpow.pop %v943
    %v945 = vadd.f32 %v944, 1.0
    %v946 = vrcp.pop %v945
    %v947 = vmul.f32 1.0, %v946
    %v948 = vtanh.pop %v941
    %v949 = vmul.f32 %v947, %v843
    %951 = vrot.lane.b32.xlu0 %v948, 32
    %v952 = vpop.permute.xlu0 %951
    %v954 = vmul.f32 %v947, %v952
    %956 = vrot.lane.b32.xlu0 %v954, 32
    %v957 = vpop.permute.xlu0 %956
    %v959 = vadd.f32 %v949, %v957
    %v960 = vtanh.pop %v959
    %962 = vrot.lane.b32.xlu0 %v960, 32
    %v963 = vpop.permute.xlu0 %962
    %v965 = vmul.f32 %v947, %v963
    %967 = vrot.lane.b32.xlu0 %v965, 64
    %v968 = vpop.permute.xlu0 %967
    %970 = vst.msk [vmem:[#allocation3 + $0xc] sm:$0x3] %vm262, %v968
    %971 = vrot.lane.b32.xlu0 %v965, 96
    %v972 = vpop.permute.xlu0 %971
    %974 = vst.msk [vmem:[#allocation3] sm:$0xc] %vm267, %v972
    %v975 = vpack.c.bf16 %v965, %v965
    %v976 = vld [vmem:[#allocation4] sm:$0xff]
    %v977 = vld [vmem:[#allocation4 + $0x8] sm:$0xff]
    %v978 = vld [vmem:[#allocation4 + $0x10] sm:$0xff]
    %v979 = vld [vmem:[#allocation4 + $0x18] sm:$0xff]
    %981 = vrot.lane.b32.xlu0 %v975, 64
    %v982 = vpop.permute.xlu0 %981
    %v987 = vunpack.c.l.b16 %v976
    %v988 = vunpack.c.h.b16 %v976
    %v989 = vunpack.c.l.b16 %v977
    %v990 = vunpack.c.h.b16 %v977
    %v991 = vunpack.c.l.b16 %v978
    %v992 = vunpack.c.h.b16 %v978
    %v993 = vunpack.c.l.b16 %v979
    %v994 = vunpack.c.h.b16 %v979
    %v995 = vpack.c.b16 %v989, %v987
    %v996 = vpack.c.b16 %v990, %v988
    %v997 = vpack.c.b16 %v993, %v991
    %v998 = vpack.c.b16 %v994, %v992
    %v1004 = vsel %vm103, %v982, 0
    %1006 = vmatprep.subr.bf16.mxu0 %v996
    %1007 = vmatpush1.bf16.msra.mxu0 %v995
    %1008 = vmatprep.subr.bf16.mxu0 %v998
    %1009 = vmatpush1.bf16.msra.mxu0 %v997
    %1010 = vmatprep.subr.bf16.mxu0 0
    %1011 = vmatpush1.bf16.msra.mxu0 0
    %1012 = vmatprep.subr.bf16.mxu0 0
    %1013 = vmatpush1.bf16.msra.mxu0 0
    %1014 = vmatprep.subr.bf16.mxu0 0
    %1015 = vmatpush1.bf16.msra.mxu0 0
    %1016 = vmatprep.subr.bf16.mxu0 0
    %1017 = vmatpush1.bf16.msra.mxu0 0
    %1018 = vmatprep.subr.bf16.mxu0 0
    %1019 = vmatpush1.bf16.msra.mxu0 0
    %1020 = vmatprep.subr.bf16.mxu0 0
    %1021 = vmatpush1.bf16.msra.mxu0 0
    %1022 = vmatprep.subr.bf16.mxu0 0
    %1023 = vmatpush1.bf16.msra.mxu0 0
    %1024 = vmatprep.subr.bf16.mxu0 0
    %1025 = vmatpush1.bf16.msra.mxu0 0
    %1026 = vmatprep.subr.bf16.mxu0 0
    %1027 = vmatpush1.bf16.msra.mxu0 0
    %1028 = vmatprep.subr.bf16.mxu0 0
    %1029 = vmatpush1.bf16.msra.mxu0 0
    %1030 = vmatprep.subr.bf16.mxu0 0
    %1031 = vmatpush1.bf16.msra.mxu0 0
    %1032 = vmatprep.subr.bf16.mxu0 0
    %1033 = vmatpush1.bf16.msra.mxu0 0
    %1034 = vmatprep.subr.bf16.mxu0 0
    %1035 = vmatpush1.bf16.msra.mxu0 0
    %1036 = vmatprep.subr.bf16.mxu0 0
    %1037 = vmatpush1.bf16.msra.mxu0 0
    %1038 = vmatprep.mubr.bf16.mxu0 0
    %1039 = vmatmul.mubr.bf16.gmra.mrb[0].mxu0 %v1004
    %v1040 = vpop.f32.mrb[0].mxu0
    %v1041 = vadd.f32 0.0, %v1040
    %v1042 = vpop.f32.mrb[0].mxu0
    %v1043 = vadd.f32 0.0, %v1042
    %v1044 = vpop.f32.mrb[0].mxu0
    %v1045 = vpop.f32.mrb[0].mxu0
    %1046 = vdwg.mxu0
    %v1047 = vsel %vm63, %v1041, %v1043
    %v1048 = vld [vmem:[#allocation2] sm:$0x80]
    %v1049 = vld [vmem:[#allocation2 + $0x8] sm:$0x1]
    %v1051 = vrot.slane %v1048, 7
    %v1053 = vrot.slane %v1049, 7
    %v1056 = vsel %vm227, %v1051, %v1053
    %v1058 = vunpack.c.l.bf16 %v1056
    %v1059 = vadd.f32 %v1058, %v1047
    %v1060 = vxor.u32 %v1059, 2147483648
    %v1061 = vmul.f32 %v1060, 1.442695
    %v1062 = vpow.pop %v1061
    %v1063 = vadd.f32 %v1062, 1.0
    %v1064 = vrcp.pop %v1063
    %v1065 = vmul.f32 1.0, %v1064
    %v1066 = vtanh.pop %v1059
    %v1067 = vmul.f32 %v1065, %v959
    %1069 = vrot.lane.b32.xlu0 %v1066, 32
    %v1070 = vpop.permute.xlu0 %1069
    %v1072 = vmul.f32 %v1065, %v1070
    %1074 = vrot.lane.b32.xlu0 %v1072, 32
    %v1075 = vpop.permute.xlu0 %1074
    %v1077 = vadd.f32 %v1067, %v1075
    %v1078 = vtanh.pop %v1077
    %1080 = vrot.lane.b32.xlu0 %v1078, 32
    %v1081 = vpop.permute.xlu0 %1080
    %v1083 = vmul.f32 %v1065, %v1081
    %1085 = vrot.lane.b32.xlu0 %v1083, 64
    %v1086 = vpop.permute.xlu0 %1085
    %1088 = vst.msk [vmem:[#allocation3 + $0xe] sm:$0x3] %vm262, %v1086
    %1089 = vrot.lane.b32.xlu0 %v1083, 96
    %v1090 = vpop.permute.xlu0 %1089
    %1092 = vst.msk [vmem:[#allocation3 - $0x2] sm:$0xc] %vm267, %v1090
    %v1093 = vld [vmem:[#allocation3] sm:$0xff]
    %v1094 = vld [vmem:[#allocation3 + $0x8] sm:$0xff]
    %v1095 = vpack.c.bf16 %v1094, %v1093
    %v1096 = vld [vmem:[%s4] sm:$0xff]
    %v1097 = vld [vmem:[%s4 + $0x8] sm:$0xff]
    %v1098 = vld [vmem:[%s4 + $0x10] sm:$0xff]
    %v1099 = vld [vmem:[%s4 + $0x18] sm:$0xff]
    %v1100 = vld [vmem:[%s4 + $0x20] sm:$0xff]
    %v1101 = vld [vmem:[%s4 + $0x28] sm:$0xff]
    %v1102 = vld [vmem:[%s4 + $0x30] sm:$0xff]
    %v1103 = vld [vmem:[%s4 + $0x38] sm:$0xff]
    %v1104 = vld [vmem:[%s6] sm:$0x3]
    %v1106 = vlaneseq
    %v1107 = vshrl.u32 %v1106, 7
    %v1108 = vsub.s32 0, %v1107
    %v1109 = vrot.slane %v1104, %v1108
    %v1110 = vlaneseq
    %v1111 = vshrl.u32 %v1110, 7
    %v1112 = vsub.s32 1, %v1111
    %v1113 = vrot.slane %v1104, %v1112
    %v1124 = vunpack.c.l.b16 %v1096
    %v1125 = vunpack.c.h.b16 %v1096
    %v1126 = vunpack.c.l.b16 %v1097
    %v1127 = vunpack.c.h.b16 %v1097
    %v1128 = vunpack.c.l.b16 %v1098
    %v1129 = vunpack.c.h.b16 %v1098
    %v1130 = vunpack.c.l.b16 %v1099
    %v1131 = vunpack.c.h.b16 %v1099
    %v1132 = vunpack.c.l.b16 %v1100
    %v1133 = vunpack.c.h.b16 %v1100
    %v1134 = vunpack.c.l.b16 %v1101
    %v1135 = vunpack.c.h.b16 %v1101
    %v1136 = vunpack.c.l.b16 %v1102
    %v1137 = vunpack.c.h.b16 %v1102
    %v1138 = vunpack.c.l.b16 %v1103
    %v1139 = vunpack.c.h.b16 %v1103
    %v1140 = vpack.c.b16 %v1126, %v1124
    %v1141 = vpack.c.b16 %v1127, %v1125
    %v1142 = vpack.c.b16 %v1130, %v1128
    %v1143 = vpack.c.b16 %v1131, %v1129
    %v1144 = vpack.c.b16 %v1134, %v1132
    %v1145 = vpack.c.b16 %v1135, %v1133
    %v1146 = vpack.c.b16 %v1138, %v1136
    %v1147 = vpack.c.b16 %v1139, %v1137
    %vm1156 = vcmask 523264
    %v1158 = vsel %vm1156, %v1095, 0
    %1160 = vmatprep.subr.bf16.mxu0 %v1141
    %1161 = vmatpush1.bf16.msra.mxu0 %v1140
    %1162 = vmatprep.subr.bf16.mxu0 %v1143
    %1163 = vmatpush1.bf16.msra.mxu0 %v1142
    %1164 = vmatprep.subr.bf16.mxu0 %v1145
    %1165 = vmatpush1.bf16.msra.mxu0 %v1144
    %1166 = vmatprep.subr.bf16.mxu0 %v1147
    %1167 = vmatpush1.bf16.msra.mxu0 %v1146
    %1168 = vmatprep.subr.bf16.mxu0 0
    %1169 = vmatpush1.bf16.msra.mxu0 0
    %1170 = vmatprep.subr.bf16.mxu0 0
    %1171 = vmatpush1.bf16.msra.mxu0 0
    %1172 = vmatprep.subr.bf16.mxu0 0
    %1173 = vmatpush1.bf16.msra.mxu0 0
    %1174 = vmatprep.subr.bf16.mxu0 0
    %1175 = vmatpush1.bf16.msra.mxu0 0
    %1176 = vmatprep.subr.bf16.mxu0 0
    %1177 = vmatpush1.bf16.msra.mxu0 0
    %1178 = vmatprep.subr.bf16.mxu0 0
    %1179 = vmatpush1.bf16.msra.mxu0 0
    %1180 = vmatprep.subr.bf16.mxu0 0
    %1181 = vmatpush1.bf16.msra.mxu0 0
    %1182 = vmatprep.subr.bf16.mxu0 0
    %1183 = vmatpush1.bf16.msra.mxu0 0
    %1184 = vmatprep.subr.bf16.mxu0 0
    %1185 = vmatpush1.bf16.msra.mxu0 0
    %1186 = vmatprep.subr.bf16.mxu0 0
    %1187 = vmatpush1.bf16.msra.mxu0 0
    %1188 = vmatprep.subr.bf16.mxu0 0
    %1189 = vmatpush1.bf16.msra.mxu0 0
    %1190 = vmatprep.subr.bf16.mxu0 0
    %1191 = vmatpush1.bf16.msra.mxu0 0
    %1192 = vmatprep.mubr.bf16.mxu0 0
    %1193 = vmatmul.mubr.bf16.gmra.mrb[0].mxu0 %v1158
    %v1194 = vpop.f32.mrb[0].mxu0
    %v1195 = vadd.f32 %v1109, %v1194
    %v1196 = vpop.f32.mrb[0].mxu0
    %v1197 = vadd.f32 %v1113, %v1196
    %v1198 = vpop.f32.mrb[0].mxu0
    %v1199 = vadd.f32 %v1109, %v1198
    %v1200 = vpop.f32.mrb[0].mxu0
    %v1201 = vadd.f32 %v1113, %v1200
    %1202 = vdwg.mxu0
    %v1203 = vpack.c.bf16 %v1199, %v1195
    %v1204 = vpack.c.bf16 %v1201, %v1197
    %1205 = vst [vmem:[#allocation2] sm:$0xff] %v1203
    %1206 = vst [vmem:[#allocation2 + $0x8] sm:$0xff] %v1204
    %v1207 = vld [vmem:[#allocation6] sm:$0xff]
    %v1208 = vld [vmem:[#allocation6 + $0x8] sm:$0xff]
    %v1209 = vld [vmem:[#allocation6 + $0x10] sm:$0xff]
    %v1210 = vld [vmem:[#allocation6 + $0x18] sm:$0xff]
    %v1215 = vunpack.c.l.b16 %v1207
    %v1216 = vunpack.c.h.b16 %v1207
    %v1217 = vunpack.c.l.b16 %v1208
    %v1218 = vunpack.c.h.b16 %v1208
    %v1219 = vunpack.c.l.b16 %v1209
    %v1220 = vunpack.c.h.b16 %v1209
    %v1221 = vunpack.c.l.b16 %v1210
    %v1222 = vunpack.c.h.b16 %v1210
    %v1223 = vpack.c.b16 %v1217, %v1215
    %v1224 = vpack.c.b16 %v1218, %v1216
    %v1225 = vpack.c.b16 %v1221, %v1219
    %v1226 = vpack.c.b16 %v1222, %v1220
    %1231 = vmatprep.subr.bf16.mxu0 %v1224
    %1232 = vmatpush1.bf16.msra.mxu0 %v1223
    %1233 = vmatprep.subr.bf16.mxu0 %v1226
    %1234 = vmatpush1.bf16.msra.mxu0 %v1225
    %1235 = vmatprep.subr.bf16.mxu0 0
    %1236 = vmatpush1.bf16.msra.mxu0 0
    %1237 = vmatprep.subr.bf16.mxu0 0
    %1238 = vmatpush1.bf16.msra.mxu0 0
    %1239 = vmatprep.subr.bf16.mxu0 0
    %1240 = vmatpush1.bf16.msra.mxu0 0
    %1241 = vmatprep.subr.bf16.mxu0 0
    %1242 = vmatpush1.bf16.msra.mxu0 0
    %1243 = vmatprep.subr.bf16.mxu0 0
    %1244 = vmatpush1.bf16.msra.mxu0 0
    %1245 = vmatprep.subr.bf16.mxu0 0
    %1246 = vmatpush1.bf16.msra.mxu0 0
    %1247 = vmatprep.subr.bf16.mxu0 0
    %1248 = vmatpush1.bf16.msra.mxu0 0
    %1249 = vmatprep.subr.bf16.mxu0 0
    %1250 = vmatpush1.bf16.msra.mxu0 0
    %1251 = vmatprep.subr.bf16.mxu0 0
    %1252 = vmatpush1.bf16.msra.mxu0 0
    %1253 = vmatprep.subr.bf16.mxu0 0
    %1254 = vmatpush1.bf16.msra.mxu0 0
    %1255 = vmatprep.subr.bf16.mxu0 0
    %1256 = vmatpush1.bf16.msra.mxu0 0
    %1257 = vmatprep.subr.bf16.mxu0 0
    %1258 = vmatpush1.bf16.msra.mxu0 0
    %1259 = vmatprep.subr.bf16.mxu0 0
    %1260 = vmatpush1.bf16.msra.mxu0 0
    %1261 = vmatprep.subr.bf16.mxu0 0
    %1262 = vmatpush1.bf16.msra.mxu0 0
    %1263 = vmatprep.mubr.bf16.mxu0 0
    %1264 = vmatmul.mubr.bf16.gmra.mrb[0].mxu0 %v179
    %v1265 = vpop.f32.mrb[0].mxu0
    %v1266 = vadd.f32 0.0, %v1265
    %v1267 = vpop.f32.mrb[0].mxu0
    %v1268 = vadd.f32 0.0, %v1267
    %v1269 = vpop.f32.mrb[0].mxu0
    %v1270 = vpop.f32.mrb[0].mxu0
    %1271 = vdwg.mxu0
    %v1272 = vsel %vm63, %v1266, %v1268
    %v1273 = vld [vmem:[#allocation2] sm:$0x1]
    %v1274 = vld [vmem:[#allocation2 + $0x8] sm:$0x80]
    %v1276 = vrot.slane %v1274, 6
    %v1279 = vsel %vm227, %v1273, %v1276
    %v1281 = vunpack.c.l.bf16 %v1279
    %v1282 = vadd.f32 %v1281, %v1272
    %v1283 = vxor.u32 %v1282, 2147483648
    %v1284 = vmul.f32 %v1283, 1.442695
    %v1285 = vpow.pop %v1284
    %v1286 = vadd.f32 %v1285, 1.0
    %v1287 = vrcp.pop %v1286
    %v1288 = vmul.f32 1.0, %v1287
    %v1289 = vtanh.pop %v1282
    %v1290 = vmul.f32 %v1288, 0.0
    %1292 = vrot.lane.b32.xlu0 %v1289, 32
    %v1293 = vpop.permute.xlu0 %1292
    %v1295 = vmul.f32 %v1288, %v1293
    %1297 = vrot.lane.b32.xlu0 %v1295, 32
    %v1298 = vpop.permute.xlu0 %1297
    %v1300 = vadd.f32 %v1290, %v1298
    %v1301 = vtanh.pop %v1300
    %1303 = vrot.lane.b32.xlu0 %v1301, 32
    %v1304 = vpop.permute.xlu0 %1303
    %v1306 = vmul.f32 %v1288, %v1304
    %1308 = vrot.lane.b32.xlu0 %v1306, 64
    %v1309 = vpop.permute.xlu0 %1308
    %1311 = vst.msk [vmem:[#allocation3] sm:$0x3] %vm262, %v1309
    %1312 = vrot.lane.b32.xlu0 %v1306, 96
    %v1313 = vpop.permute.xlu0 %1312
    %1315 = vst.msk [vmem:[#allocation3 + $0xc] sm:$0xc] %vm267, %v1313
    %v1316 = vpack.c.bf16 %v1306, %v1306
    %v1317 = vld [vmem:[#allocation6] sm:$0xff]
    %v1318 = vld [vmem:[#allocation6 + $0x8] sm:$0xff]
    %v1319 = vld [vmem:[#allocation6 + $0x10] sm:$0xff]
    %v1320 = vld [vmem:[#allocation6 + $0x18] sm:$0xff]
    %1322 = vrot.lane.b32.xlu0 %v1316, 64
    %v1323 = vpop.permute.xlu0 %1322
    %v1328 = vunpack.c.l.b16 %v1317
    %v1329 = vunpack.c.h.b16 %v1317
    %v1330 = vunpack.c.l.b16 %v1318
    %v1331 = vunpack.c.h.b16 %v1318
    %v1332 = vunpack.c.l.b16 %v1319
    %v1333 = vunpack.c.h.b16 %v1319
    %v1334 = vunpack.c.l.b16 %v1320
    %v1335 = vunpack.c.h.b16 %v1320
    %v1336 = vpack.c.b16 %v1330, %v1328
    %v1337 = vpack.c.b16 %v1331, %v1329
    %v1338 = vpack.c.b16 %v1334, %v1332
    %v1339 = vpack.c.b16 %v1335, %v1333
    %v1345 = vsel %vm103, %v1323, 0
    %1347 = vmatprep.subr.bf16.mxu0 %v1337
    %1348 = vmatpush1.bf16.msra.mxu0 %v1336
    %1349 = vmatprep.subr.bf16.mxu0 %v1339
    %1350 = vmatpush1.bf16.msra.mxu0 %v1338
    %1351 = vmatprep.subr.bf16.mxu0 0
    %1352 = vmatpush1.bf16.msra.mxu0 0
    %1353 = vmatprep.subr.bf16.mxu0 0
    %1354 = vmatpush1.bf16.msra.mxu0 0
    %1355 = vmatprep.subr.bf16.mxu0 0
    %1356 = vmatpush1.bf16.msra.mxu0 0
    %1357 = vmatprep.subr.bf16.mxu0 0
    %1358 = vmatpush1.bf16.msra.mxu0 0
    %1359 = vmatprep.subr.bf16.mxu0 0
    %1360 = vmatpush1.bf16.msra.mxu0 0
    %1361 = vmatprep.subr.bf16.mxu0 0
    %1362 = vmatpush1.bf16.msra.mxu0 0
    %1363 = vmatprep.subr.bf16.mxu0 0
    %1364 = vmatpush1.bf16.msra.mxu0 0
    %1365 = vmatprep.subr.bf16.mxu0 0
    %1366 = vmatpush1.bf16.msra.mxu0 0
    %1367 = vmatprep.subr.bf16.mxu0 0
    %1368 = vmatpush1.bf16.msra.mxu0 0
    %1369 = vmatprep.subr.bf16.mxu0 0
    %1370 = vmatpush1.bf16.msra.mxu0 0
    %1371 = vmatprep.subr.bf16.mxu0 0
    %1372 = vmatpush1.bf16.msra.mxu0 0
    %1373 = vmatprep.subr.bf16.mxu0 0
    %1374 = vmatpush1.bf16.msra.mxu0 0
    %1375 = vmatprep.subr.bf16.mxu0 0
    %1376 = vmatpush1.bf16.msra.mxu0 0
    %1377 = vmatprep.subr.bf16.mxu0 0
    %1378 = vmatpush1.bf16.msra.mxu0 0
    %1379 = vmatprep.mubr.bf16.mxu0 0
    %1380 = vmatmul.mubr.bf16.gmra.mrb[0].mxu0 %v1345
    %v1381 = vpop.f32.mrb[0].mxu0
    %v1382 = vadd.f32 0.0, %v1381
    %v1383 = vpop.f32.mrb[0].mxu0
    %v1384 = vadd.f32 0.0, %v1383
    %v1385 = vpop.f32.mrb[0].mxu0
    %v1386 = vpop.f32.mrb[0].mxu0
    %1387 = vdwg.mxu0
    %v1388 = vsel %vm63, %v1382, %v1384
    %v1389 = vld [vmem:[#allocation2] sm:$0x2]
    %v1390 = vld [vmem:[#allocation2 + $0x8] sm:$0x40]
    %v1392 = vrot.slane %v1389, 1
    %v1394 = vrot.slane %v1390, 5
    %v1397 = vsel %vm227, %v1392, %v1394
    %v1399 = vunpack.c.l.bf16 %v1397
    %v1400 = vadd.f32 %v1399, %v1388
    %v1401 = vxor.u32 %v1400, 2147483648
    %v1402 = vmul.f32 %v1401, 1.442695
    %v1403 = vpow.pop %v1402
    %v1404 = vadd.f32 %v1403, 1.0
    %v1405 = vrcp.pop %v1404
    %v1406 = vmul.f32 1.0, %v1405
    %v1407 = vtanh.pop %v1400
    %v1408 = vmul.f32 %v1406, %v1300
    %1410 = vrot.lane.b32.xlu0 %v1407, 32
    %v1411 = vpop.permute.xlu0 %1410
    %v1413 = vmul.f32 %v1406, %v1411
    %1415 = vrot.lane.b32.xlu0 %v1413, 32
    %v1416 = vpop.permute.xlu0 %1415
    %v1418 = vadd.f32 %v1408, %v1416
    %v1419 = vtanh.pop %v1418
    %1421 = vrot.lane.b32.xlu0 %v1419, 32
    %v1422 = vpop.permute.xlu0 %1421
    %v1424 = vmul.f32 %v1406, %v1422
    %1426 = vrot.lane.b32.xlu0 %v1424, 64
    %v1427 = vpop.permute.xlu0 %1426
    %1429 = vst.msk [vmem:[#allocation3 + $0x2] sm:$0x3] %vm262, %v1427
    %1430 = vrot.lane.b32.xlu0 %v1424, 96
    %v1431 = vpop.permute.xlu0 %1430
    %1433 = vst.msk [vmem:[#allocation3 + $0xa] sm:$0xc] %vm267, %v1431
    %v1434 = vpack.c.bf16 %v1424, %v1424
    %v1435 = vld [vmem:[#allocation6] sm:$0xff]
    %v1436 = vld [vmem:[#allocation6 + $0x8] sm:$0xff]
    %v1437 = vld [vmem:[#allocation6 + $0x10] sm:$0xff]
    %v1438 = vld [vmem:[#allocation6 + $0x18] sm:$0xff]
    %1440 = vrot.lane.b32.xlu0 %v1434, 64
    %v1441 = vpop.permute.xlu0 %1440
    %v1446 = vunpack.c.l.b16 %v1435
    %v1447 = vunpack.c.h.b16 %v1435
    %v1448 = vunpack.c.l.b16 %v1436
    %v1449 = vunpack.c.h.b16 %v1436
    %v1450 = vunpack.c.l.b16 %v1437
    %v1451 = vunpack.c.h.b16 %v1437
    %v1452 = vunpack.c.l.b16 %v1438
    %v1453 = vunpack.c.h.b16 %v1438
    %v1454 = vpack.c.b16 %v1448, %v1446
    %v1455 = vpack.c.b16 %v1449, %v1447
    %v1456 = vpack.c.b16 %v1452, %v1450
    %v1457 = vpack.c.b16 %v1453, %v1451
    %v1463 = vsel %vm103, %v1441, 0
    %1465 = vmatprep.subr.bf16.mxu0 %v1455
    %1466 = vmatpush1.bf16.msra.mxu0 %v1454
    %1467 = vmatprep.subr.bf16.mxu0 %v1457
    %1468 = vmatpush1.bf16.msra.mxu0 %v1456
    %1469 = vmatprep.subr.bf16.mxu0 0
    %1470 = vmatpush1.bf16.msra.mxu0 0
    %1471 = vmatprep.subr.bf16.mxu0 0
    %1472 = vmatpush1.bf16.msra.mxu0 0
    %1473 = vmatprep.subr.bf16.mxu0 0
    %1474 = vmatpush1.bf16.msra.mxu0 0
    %1475 = vmatprep.subr.bf16.mxu0 0
    %1476 = vmatpush1.bf16.msra.mxu0 0
    %1477 = vmatprep.subr.bf16.mxu0 0
    %1478 = vmatpush1.bf16.msra.mxu0 0
    %1479 = vmatprep.subr.bf16.mxu0 0
    %1480 = vmatpush1.bf16.msra.mxu0 0
    %1481 = vmatprep.subr.bf16.mxu0 0
    %1482 = vmatpush1.bf16.msra.mxu0 0
    %1483 = vmatprep.subr.bf16.mxu0 0
    %1484 = vmatpush1.bf16.msra.mxu0 0
    %1485 = vmatprep.subr.bf16.mxu0 0
    %1486 = vmatpush1.bf16.msra.mxu0 0
    %1487 = vmatprep.subr.bf16.mxu0 0
    %1488 = vmatpush1.bf16.msra.mxu0 0
    %1489 = vmatprep.subr.bf16.mxu0 0
    %1490 = vmatpush1.bf16.msra.mxu0 0
    %1491 = vmatprep.subr.bf16.mxu0 0
    %1492 = vmatpush1.bf16.msra.mxu0 0
    %1493 = vmatprep.subr.bf16.mxu0 0
    %1494 = vmatpush1.bf16.msra.mxu0 0
    %1495 = vmatprep.subr.bf16.mxu0 0
    %1496 = vmatpush1.bf16.msra.mxu0 0
    %1497 = vmatprep.mubr.bf16.mxu0 0
    %1498 = vmatmul.mubr.bf16.gmra.mrb[0].mxu0 %v1463
    %v1499 = vpop.f32.mrb[0].mxu0
    %v1500 = vadd.f32 0.0, %v1499
    %v1501 = vpop.f32.mrb[0].mxu0
    %v1502 = vadd.f32 0.0, %v1501
    %v1503 = vpop.f32.mrb[0].mxu0
    %v1504 = vpop.f32.mrb[0].mxu0
    %1505 = vdwg.mxu0
    %v1506 = vsel %vm63, %v1500, %v1502
    %v1507 = vld [vmem:[#allocation2] sm:$0x4]
    %v1508 = vld [vmem:[#allocation2 + $0x8] sm:$0x20]
    %v1510 = vrot.slane %v1507, 2
    %v1512 = vrot.slane %v1508, 4
    %v1515 = vsel %vm227, %v1510, %v1512
    %v1517 = vunpack.c.l.bf16 %v1515
    %v1518 = vadd.f32 %v1517, %v1506
    %v1519 = vxor.u32 %v1518, 2147483648
    %v1520 = vmul.f32 %v1519, 1.442695
    %v1521 = vpow.pop %v1520
    %v1522 = vadd.f32 %v1521, 1.0
    %v1523 = vrcp.pop %v1522
    %v1524 = vmul.f32 1.0, %v1523
    %v1525 = vtanh.pop %v1518
    %v1526 = vmul.f32 %v1524, %v1418
    %1528 = vrot.lane.b32.xlu0 %v1525, 32
    %v1529 = vpop.permute.xlu0 %1528
    %v1531 = vmul.f32 %v1524, %v1529
    %1533 = vrot.lane.b32.xlu0 %v1531, 32
    %v1534 = vpop.permute.xlu0 %1533
    %v1536 = vadd.f32 %v1526, %v1534
    %v1537 = vtanh.pop %v1536
    %1539 = vrot.lane.b32.xlu0 %v1537, 32
    %v1540 = vpop.permute.xlu0 %1539
    %v1542 = vmul.f32 %v1524, %v1540
    %1544 = vrot.lane.b32.xlu0 %v1542, 64
    %v1545 = vpop.permute.xlu0 %1544
    %1547 = vst.msk [vmem:[#allocation3 + $0x4] sm:$0x3] %vm262, %v1545
    %1548 = vrot.lane.b32.xlu0 %v1542, 96
    %v1549 = vpop.permute.xlu0 %1548
    %1551 = vst.msk [vmem:[#allocation3 + $0x8] sm:$0xc] %vm267, %v1549
    %v1552 = vpack.c.bf16 %v1542, %v1542
    %v1553 = vld [vmem:[#allocation6] sm:$0xff]
    %v1554 = vld [vmem:[#allocation6 + $0x8] sm:$0xff]
    %v1555 = vld [vmem:[#allocation6 + $0x10] sm:$0xff]
    %v1556 = vld [vmem:[#allocation6 + $0x18] sm:$0xff]
    %1558 = vrot.lane.b32.xlu0 %v1552, 64
    %v1559 = vpop.permute.xlu0 %1558
    %v1564 = vunpack.c.l.b16 %v1553
    %v1565 = vunpack.c.h.b16 %v1553
    %v1566 = vunpack.c.l.b16 %v1554
    %v1567 = vunpack.c.h.b16 %v1554
    %v1568 = vunpack.c.l.b16 %v1555
    %v1569 = vunpack.c.h.b16 %v1555
    %v1570 = vunpack.c.l.b16 %v1556
    %v1571 = vunpack.c.h.b16 %v1556
    %v1572 = vpack.c.b16 %v1566, %v1564
    %v1573 = vpack.c.b16 %v1567, %v1565
    %v1574 = vpack.c.b16 %v1570, %v1568
    %v1575 = vpack.c.b16 %v1571, %v1569
    %v1581 = vsel %vm103, %v1559, 0
    %1583 = vmatprep.subr.bf16.mxu0 %v1573
    %1584 = vmatpush1.bf16.msra.mxu0 %v1572
    %1585 = vmatprep.subr.bf16.mxu0 %v1575
    %1586 = vmatpush1.bf16.msra.mxu0 %v1574
    %1587 = vmatprep.subr.bf16.mxu0 0
    %1588 = vmatpush1.bf16.msra.mxu0 0
    %1589 = vmatprep.subr.bf16.mxu0 0
    %1590 = vmatpush1.bf16.msra.mxu0 0
    %1591 = vmatprep.subr.bf16.mxu0 0
    %1592 = vmatpush1.bf16.msra.mxu0 0
    %1593 = vmatprep.subr.bf16.mxu0 0
    %1594 = vmatpush1.bf16.msra.mxu0 0
    %1595 = vmatprep.subr.bf16.mxu0 0
    %1596 = vmatpush1.bf16.msra.mxu0 0
    %1597 = vmatprep.subr.bf16.mxu0 0
    %1598 = vmatpush1.bf16.msra.mxu0 0
    %1599 = vmatprep.subr.bf16.mxu0 0
    %1600 = vmatpush1.bf16.msra.mxu0 0
    %1601 = vmatprep.subr.bf16.mxu0 0
    %1602 = vmatpush1.bf16.msra.mxu0 0
    %1603 = vmatprep.subr.bf16.mxu0 0
    %1604 = vmatpush1.bf16.msra.mxu0 0
    %1605 = vmatprep.subr.bf16.mxu0 0
    %1606 = vmatpush1.bf16.msra.mxu0 0
    %1607 = vmatprep.subr.bf16.mxu0 0
    %1608 = vmatpush1.bf16.msra.mxu0 0
    %1609 = vmatprep.subr.bf16.mxu0 0
    %1610 = vmatpush1.bf16.msra.mxu0 0
    %1611 = vmatprep.subr.bf16.mxu0 0
    %1612 = vmatpush1.bf16.msra.mxu0 0
    %1613 = vmatprep.subr.bf16.mxu0 0
    %1614 = vmatpush1.bf16.msra.mxu0 0
    %1615 = vmatprep.mubr.bf16.mxu0 0
    %1616 = vmatmul.mubr.bf16.gmra.mrb[0].mxu0 %v1581
    %v1617 = vpop.f32.mrb[0].mxu0
    %v1618 = vadd.f32 0.0, %v1617
    %v1619 = vpop.f32.mrb[0].mxu0
    %v1620 = vadd.f32 0.0, %v1619
    %v1621 = vpop.f32.mrb[0].mxu0
    %v1622 = vpop.f32.mrb[0].mxu0
    %1623 = vdwg.mxu0
    %v1624 = vsel %vm63, %v1618, %v1620
    %v1625 = vld [vmem:[#allocation2] sm:$0x8]
    %v1626 = vld [vmem:[#allocation2 + $0x8] sm:$0x10]
    %v1628 = vrot.slane %v1625, 3
    %v1630 = vrot.slane %v1626, 3
    %v1633 = vsel %vm227, %v1628, %v1630
    %v1635 = vunpack.c.l.bf16 %v1633
    %v1636 = vadd.f32 %v1635, %v1624
    %v1637 = vxor.u32 %v1636, 2147483648
    %v1638 = vmul.f32 %v1637, 1.442695
    %v1639 = vpow.pop %v1638
    %v1640 = vadd.f32 %v1639, 1.0
    %v1641 = vrcp.pop %v1640
    %v1642 = vmul.f32 1.0, %v1641
    %v1643 = vtanh.pop %v1636
    %v1644 = vmul.f32 %v1642, %v1536
    %1646 = vrot.lane.b32.xlu0 %v1643, 32
    %v1647 = vpop.permute.xlu0 %1646
    %v1649 = vmul.f32 %v1642, %v1647
    %1651 = vrot.lane.b32.xlu0 %v1649, 32
    %v1652 = vpop.permute.xlu0 %1651
    %v1654 = vadd.f32 %v1644, %v1652
    %v1655 = vtanh.pop %v1654
    %1657 = vrot.lane.b32.xlu0 %v1655, 32
    %v1658 = vpop.permute.xlu0 %1657
    %v1660 = vmul.f32 %v1642, %v1658
    %1662 = vrot.lane.b32.xlu0 %v1660, 64
    %v1663 = vpop.permute.xlu0 %1662
    %1665 = vst.msk [vmem:[#allocation3 + $0x6] sm:$0x3] %vm262, %v1663
    %1666 = vrot.lane.b32.xlu0 %v1660, 96
    %v1667 = vpop.permute.xlu0 %1666
    %1669 = vst.msk [vmem:[#allocation3 + $0x6] sm:$0xc] %vm267, %v1667
    %v1670 = vpack.c.bf16 %v1660, %v1660
    %v1671 = vld [vmem:[#allocation6] sm:$0xff]
    %v1672 = vld [vmem:[#allocation6 + $0x8] sm:$0xff]
    %v1673 = vld [vmem:[#allocation6 + $0x10] sm:$0xff]
    %v1674 = vld [vmem:[#allocation6 + $0x18] sm:$0xff]
    %1676 = vrot.lane.b32.xlu0 %v1670, 64
    %v1677 = vpop.permute.xlu0 %1676
    %v1682 = vunpack.c.l.b16 %v1671
    %v1683 = vunpack.c.h.b16 %v1671
    %v1684 = vunpack.c.l.b16 %v1672
    %v1685 = vunpack.c.h.b16 %v1672
    %v1686 = vunpack.c.l.b16 %v1673
    %v1687 = vunpack.c.h.b16 %v1673
    %v1688 = vunpack.c.l.b16 %v1674
    %v1689 = vunpack.c.h.b16 %v1674
    %v1690 = vpack.c.b16 %v1684, %v1682
    %v1691 = vpack.c.b16 %v1685, %v1683
    %v1692 = vpack.c.b16 %v1688, %v1686
    %v1693 = vpack.c.b16 %v1689, %v1687
    %v1699 = vsel %vm103, %v1677, 0
    %1701 = vmatprep.subr.bf16.mxu0 %v1691
    %1702 = vmatpush1.bf16.msra.mxu0 %v1690
    %1703 = vmatprep.subr.bf16.mxu0 %v1693
    %1704 = vmatpush1.bf16.msra.mxu0 %v1692
    %1705 = vmatprep.subr.bf16.mxu0 0
    %1706 = vmatpush1.bf16.msra.mxu0 0
    %1707 = vmatprep.subr.bf16.mxu0 0
    %1708 = vmatpush1.bf16.msra.mxu0 0
    %1709 = vmatprep.subr.bf16.mxu0 0
    %1710 = vmatpush1.bf16.msra.mxu0 0
    %1711 = vmatprep.subr.bf16.mxu0 0
    %1712 = vmatpush1.bf16.msra.mxu0 0
    %1713 = vmatprep.subr.bf16.mxu0 0
    %1714 = vmatpush1.bf16.msra.mxu0 0
    %1715 = vmatprep.subr.bf16.mxu0 0
    %1716 = vmatpush1.bf16.msra.mxu0 0
    %1717 = vmatprep.subr.bf16.mxu0 0
    %1718 = vmatpush1.bf16.msra.mxu0 0
    %1719 = vmatprep.subr.bf16.mxu0 0
    %1720 = vmatpush1.bf16.msra.mxu0 0
    %1721 = vmatprep.subr.bf16.mxu0 0
    %1722 = vmatpush1.bf16.msra.mxu0 0
    %1723 = vmatprep.subr.bf16.mxu0 0
    %1724 = vmatpush1.bf16.msra.mxu0 0
    %1725 = vmatprep.subr.bf16.mxu0 0
    %1726 = vmatpush1.bf16.msra.mxu0 0
    %1727 = vmatprep.subr.bf16.mxu0 0
    %1728 = vmatpush1.bf16.msra.mxu0 0
    %1729 = vmatprep.subr.bf16.mxu0 0
    %1730 = vmatpush1.bf16.msra.mxu0 0
    %1731 = vmatprep.subr.bf16.mxu0 0
    %1732 = vmatpush1.bf16.msra.mxu0 0
    %1733 = vmatprep.mubr.bf16.mxu0 0
    %1734 = vmatmul.mubr.bf16.gmra.mrb[0].mxu0 %v1699
    %v1735 = vpop.f32.mrb[0].mxu0
    %v1736 = vadd.f32 0.0, %v1735
    %v1737 = vpop.f32.mrb[0].mxu0
    %v1738 = vadd.f32 0.0, %v1737
    %v1739 = vpop.f32.mrb[0].mxu0
    %v1740 = vpop.f32.mrb[0].mxu0
    %1741 = vdwg.mxu0
    %v1742 = vsel %vm63, %v1736, %v1738
    %v1743 = vld [vmem:[#allocation2] sm:$0x10]
    %v1744 = vld [vmem:[#allocation2 + $0x8] sm:$0x8]
    %v1746 = vrot.slane %v1743, 4
    %v1748 = vrot.slane %v1744, 2
    %v1751 = vsel %vm227, %v1746, %v1748
    %v1753 = vunpack.c.l.bf16 %v1751
    %v1754 = vadd.f32 %v1753, %v1742
    %v1755 = vxor.u32 %v1754, 2147483648
    %v1756 = vmul.f32 %v1755, 1.442695
    %v1757 = vpow.pop %v1756
    %v1758 = vadd.f32 %v1757, 1.0
    %v1759 = vrcp.pop %v1758
    %v1760 = vmul.f32 1.0, %v1759
    %v1761 = vtanh.pop %v1754
    %v1762 = vmul.f32 %v1760, %v1654
    %1764 = vrot.lane.b32.xlu0 %v1761, 32
    %v1765 = vpop.permute.xlu0 %1764
    %v1767 = vmul.f32 %v1760, %v1765
    %1769 = vrot.lane.b32.xlu0 %v1767, 32
    %v1770 = vpop.permute.xlu0 %1769
    %v1772 = vadd.f32 %v1762, %v1770
    %v1773 = vtanh.pop %v1772
    %1775 = vrot.lane.b32.xlu0 %v1773, 32
    %v1776 = vpop.permute.xlu0 %1775
    %v1778 = vmul.f32 %v1760, %v1776
    %1780 = vrot.lane.b32.xlu0 %v1778, 64
    %v1781 = vpop.permute.xlu0 %1780
    %1783 = vst.msk [vmem:[#allocation3 + $0x8] sm:$0x3] %vm262, %v1781
    %1784 = vrot.lane.b32.xlu0 %v1778, 96
    %v1785 = vpop.permute.xlu0 %1784
    %1787 = vst.msk [vmem:[#allocation3 + $0x4] sm:$0xc] %vm267, %v1785
    %v1788 = vpack.c.bf16 %v1778, %v1778
    %v1789 = vld [vmem:[#allocation6] sm:$0xff]
    %v1790 = vld [vmem:[#allocation6 + $0x8] sm:$0xff]
    %v1791 = vld [vmem:[#allocation6 + $0x10] sm:$0xff]
    %v1792 = vld [vmem:[#allocation6 + $0x18] sm:$0xff]
    %1794 = vrot.lane.b32.xlu0 %v1788, 64
    %v1795 = vpop.permute.xlu0 %1794
    %v1800 = vunpack.c.l.b16 %v1789
    %v1801 = vunpack.c.h.b16 %v1789
    %v1802 = vunpack.c.l.b16 %v1790
    %v1803 = vunpack.c.h.b16 %v1790
    %v1804 = vunpack.c.l.b16 %v1791
    %v1805 = vunpack.c.h.b16 %v1791
    %v1806 = vunpack.c.l.b16 %v1792
    %v1807 = vunpack.c.h.b16 %v1792
    %v1808 = vpack.c.b16 %v1802, %v1800
    %v1809 = vpack.c.b16 %v1803, %v1801
    %v1810 = vpack.c.b16 %v1806, %v1804
    %v1811 = vpack.c.b16 %v1807, %v1805
    %v1817 = vsel %vm103, %v1795, 0
    %1819 = vmatprep.subr.bf16.mxu0 %v1809
    %1820 = vmatpush1.bf16.msra.mxu0 %v1808
    %1821 = vmatprep.subr.bf16.mxu0 %v1811
    %1822 = vmatpush1.bf16.msra.mxu0 %v1810
    %1823 = vmatprep.subr.bf16.mxu0 0
    %1824 = vmatpush1.bf16.msra.mxu0 0
    %1825 = vmatprep.subr.bf16.mxu0 0
    %1826 = vmatpush1.bf16.msra.mxu0 0
    %1827 = vmatprep.subr.bf16.mxu0 0
    %1828 = vmatpush1.bf16.msra.mxu0 0
    %1829 = vmatprep.subr.bf16.mxu0 0
    %1830 = vmatpush1.bf16.msra.mxu0 0
    %1831 = vmatprep.subr.bf16.mxu0 0
    %1832 = vmatpush1.bf16.msra.mxu0 0
    %1833 = vmatprep.subr.bf16.mxu0 0
    %1834 = vmatpush1.bf16.msra.mxu0 0
    %1835 = vmatprep.subr.bf16.mxu0 0
    %1836 = vmatpush1.bf16.msra.mxu0 0
    %1837 = vmatprep.subr.bf16.mxu0 0
    %1838 = vmatpush1.bf16.msra.mxu0 0
    %1839 = vmatprep.subr.bf16.mxu0 0
    %1840 = vmatpush1.bf16.msra.mxu0 0
    %1841 = vmatprep.subr.bf16.mxu0 0
    %1842 = vmatpush1.bf16.msra.mxu0 0
    %1843 = vmatprep.subr.bf16.mxu0 0
    %1844 = vmatpush1.bf16.msra.mxu0 0
    %1845 = vmatprep.subr.bf16.mxu0 0
    %1846 = vmatpush1.bf16.msra.mxu0 0
    %1847 = vmatprep.subr.bf16.mxu0 0
    %1848 = vmatpush1.bf16.msra.mxu0 0
    %1849 = vmatprep.subr.bf16.mxu0 0
    %1850 = vmatpush1.bf16.msra.mxu0 0
    %1851 = vmatprep.mubr.bf16.mxu0 0
    %1852 = vmatmul.mubr.bf16.gmra.mrb[0].mxu0 %v1817
    %v1853 = vpop.f32.mrb[0].mxu0
    %v1854 = vadd.f32 0.0, %v1853
    %v1855 = vpop.f32.mrb[0].mxu0
    %v1856 = vadd.f32 0.0, %v1855
    %v1857 = vpop.f32.mrb[0].mxu0
    %v1858 = vpop.f32.mrb[0].mxu0
    %1859 = vdwg.mxu0
    %v1860 = vsel %vm63, %v1854, %v1856
    %v1861 = vld [vmem:[#allocation2] sm:$0x20]
    %v1862 = vld [vmem:[#allocation2 + $0x8] sm:$0x4]
    %v1864 = vrot.slane %v1861, 5
    %v1866 = vrot.slane %v1862, 1
    %v1869 = vsel %vm227, %v1864, %v1866
    %v1871 = vunpack.c.l.bf16 %v1869
    %v1872 = vadd.f32 %v1871, %v1860
    %v1873 = vxor.u32 %v1872, 2147483648
    %v1874 = vmul.f32 %v1873, 1.442695
    %v1875 = vpow.pop %v1874
    %v1876 = vadd.f32 %v1875, 1.0
    %v1877 = vrcp.pop %v1876
    %v1878 = vmul.f32 1.0, %v1877
    %v1879 = vtanh.pop %v1872
    %v1880 = vmul.f32 %v1878, %v1772
    %1882 = vrot.lane.b32.xlu0 %v1879, 32
    %v1883 = vpop.permute.xlu0 %1882
    %v1885 = vmul.f32 %v1878, %v1883
    %1887 = vrot.lane.b32.xlu0 %v1885, 32
    %v1888 = vpop.permute.xlu0 %1887
    %v1890 = vadd.f32 %v1880, %v1888
    %v1891 = vtanh.pop %v1890
    %1893 = vrot.lane.b32.xlu0 %v1891, 32
    %v1894 = vpop.permute.xlu0 %1893
    %v1896 = vmul.f32 %v1878, %v1894
    %1898 = vrot.lane.b32.xlu0 %v1896, 64
    %v1899 = vpop.permute.xlu0 %1898
    %1901 = vst.msk [vmem:[#allocation3 + $0xa] sm:$0x3] %vm262, %v1899
    %1902 = vrot.lane.b32.xlu0 %v1896, 96
    %v1903 = vpop.permute.xlu0 %1902
    %1905 = vst.msk [vmem:[#allocation3 + $0x2] sm:$0xc] %vm267, %v1903
    %v1906 = vpack.c.bf16 %v1896, %v1896
    %v1907 = vld [vmem:[#allocation6] sm:$0xff]
    %v1908 = vld [vmem:[#allocation6 + $0x8] sm:$0xff]
    %v1909 = vld [vmem:[#allocation6 + $0x10] sm:$0xff]
    %v1910 = vld [vmem:[#allocation6 + $0x18] sm:$0xff]
    %1912 = vrot.lane.b32.xlu0 %v1906, 64
    %v1913 = vpop.permute.xlu0 %1912
    %v1918 = vunpack.c.l.b16 %v1907
    %v1919 = vunpack.c.h.b16 %v1907
    %v1920 = vunpack.c.l.b16 %v1908
    %v1921 = vunpack.c.h.b16 %v1908
    %v1922 = vunpack.c.l.b16 %v1909
    %v1923 = vunpack.c.h.b16 %v1909
    %v1924 = vunpack.c.l.b16 %v1910
    %v1925 = vunpack.c.h.b16 %v1910
    %v1926 = vpack.c.b16 %v1920, %v1918
    %v1927 = vpack.c.b16 %v1921, %v1919
    %v1928 = vpack.c.b16 %v1924, %v1922
    %v1929 = vpack.c.b16 %v1925, %v1923
    %v1935 = vsel %vm103, %v1913, 0
    %1937 = vmatprep.subr.bf16.mxu0 %v1927
    %1938 = vmatpush1.bf16.msra.mxu0 %v1926
    %1939 = vmatprep.subr.bf16.mxu0 %v1929
    %1940 = vmatpush1.bf16.msra.mxu0 %v1928
    %1941 = vmatprep.subr.bf16.mxu0 0
    %1942 = vmatpush1.bf16.msra.mxu0 0
    %1943 = vmatprep.subr.bf16.mxu0 0
    %1944 = vmatpush1.bf16.msra.mxu0 0
    %1945 = vmatprep.subr.bf16.mxu0 0
    %1946 = vmatpush1.bf16.msra.mxu0 0
    %1947 = vmatprep.subr.bf16.mxu0 0
    %1948 = vmatpush1.bf16.msra.mxu0 0
    %1949 = vmatprep.subr.bf16.mxu0 0
    %1950 = vmatpush1.bf16.msra.mxu0 0
    %1951 = vmatprep.subr.bf16.mxu0 0
    %1952 = vmatpush1.bf16.msra.mxu0 0
    %1953 = vmatprep.subr.bf16.mxu0 0
    %1954 = vmatpush1.bf16.msra.mxu0 0
    %1955 = vmatprep.subr.bf16.mxu0 0
    %1956 = vmatpush1.bf16.msra.mxu0 0
    %1957 = vmatprep.subr.bf16.mxu0 0
    %1958 = vmatpush1.bf16.msra.mxu0 0
    %1959 = vmatprep.subr.bf16.mxu0 0
    %1960 = vmatpush1.bf16.msra.mxu0 0
    %1961 = vmatprep.subr.bf16.mxu0 0
    %1962 = vmatpush1.bf16.msra.mxu0 0
    %1963 = vmatprep.subr.bf16.mxu0 0
    %1964 = vmatpush1.bf16.msra.mxu0 0
    %1965 = vmatprep.subr.bf16.mxu0 0
    %1966 = vmatpush1.bf16.msra.mxu0 0
    %1967 = vmatprep.subr.bf16.mxu0 0
    %1968 = vmatpush1.bf16.msra.mxu0 0
    %1969 = vmatprep.mubr.bf16.mxu0 0
    %1970 = vmatmul.mubr.bf16.gmra.mrb[0].mxu0 %v1935
    %v1971 = vpop.f32.mrb[0].mxu0
    %v1972 = vadd.f32 0.0, %v1971
    %v1973 = vpop.f32.mrb[0].mxu0
    %v1974 = vadd.f32 0.0, %v1973
    %v1975 = vpop.f32.mrb[0].mxu0
    %v1976 = vpop.f32.mrb[0].mxu0
    %1977 = vdwg.mxu0
    %v1978 = vsel %vm63, %v1972, %v1974
    %v1979 = vld [vmem:[#allocation2] sm:$0x40]
    %v1980 = vld [vmem:[#allocation2 + $0x8] sm:$0x2]
    %v1982 = vrot.slane %v1979, 6
    %v1985 = vsel %vm227, %v1982, %v1980
    %v1987 = vunpack.c.l.bf16 %v1985
    %v1988 = vadd.f32 %v1987, %v1978
    %v1989 = vxor.u32 %v1988, 2147483648
    %v1990 = vmul.f32 %v1989, 1.442695
    %v1991 = vpow.pop %v1990
    %v1992 = vadd.f32 %v1991, 1.0
    %v1993 = vrcp.pop %v1992
    %v1994 = vmul.f32 1.0, %v1993
    %v1995 = vtanh.pop %v1988
    %v1996 = vmul.f32 %v1994, %v1890
    %1998 = vrot.lane.b32.xlu0 %v1995, 32
    %v1999 = vpop.permute.xlu0 %1998
    %v2001 = vmul.f32 %v1994, %v1999
    %2003 = vrot.lane.b32.xlu0 %v2001, 32
    %v2004 = vpop.permute.xlu0 %2003
    %v2006 = vadd.f32 %v1996, %v2004
    %v2007 = vtanh.pop %v2006
    %2009 = vrot.lane.b32.xlu0 %v2007, 32
    %v2010 = vpop.permute.xlu0 %2009
    %v2012 = vmul.f32 %v1994, %v2010
    %2014 = vrot.lane.b32.xlu0 %v2012, 64
    %v2015 = vpop.permute.xlu0 %2014
    %2017 = vst.msk [vmem:[#allocation3 + $0xc] sm:$0x3] %vm262, %v2015
    %2018 = vrot.lane.b32.xlu0 %v2012, 96
    %v2019 = vpop.permute.xlu0 %2018
    %2021 = vst.msk [vmem:[#allocation3] sm:$0xc] %vm267, %v2019
    %v2022 = vpack.c.bf16 %v2012, %v2012
    %v2023 = vld [vmem:[#allocation6] sm:$0xff]
    %v2024 = vld [vmem:[#allocation6 + $0x8] sm:$0xff]
    %v2025 = vld [vmem:[#allocation6 + $0x10] sm:$0xff]
    %v2026 = vld [vmem:[#allocation6 + $0x18] sm:$0xff]
    %2028 = vrot.lane.b32.xlu0 %v2022, 64
    %v2029 = vpop.permute.xlu0 %2028
    %v2034 = vunpack.c.l.b16 %v2023
    %v2035 = vunpack.c.h.b16 %v2023
    %v2036 = vunpack.c.l.b16 %v2024
    %v2037 = vunpack.c.h.b16 %v2024
    %v2038 = vunpack.c.l.b16 %v2025
    %v2039 = vunpack.c.h.b16 %v2025
    %v2040 = vunpack.c.l.b16 %v2026
    %v2041 = vunpack.c.h.b16 %v2026
    %v2042 = vpack.c.b16 %v2036, %v2034
    %v2043 = vpack.c.b16 %v2037, %v2035
    %v2044 = vpack.c.b16 %v2040, %v2038
    %v2045 = vpack.c.b16 %v2041, %v2039
    %v2051 = vsel %vm103, %v2029, 0
    %2053 = vmatprep.subr.bf16.mxu0 %v2043
    %2054 = vmatpush1.bf16.msra.mxu0 %v2042
    %2055 = vmatprep.subr.bf16.mxu0 %v2045
    %2056 = vmatpush1.bf16.msra.mxu0 %v2044
    %2057 = vmatprep.subr.bf16.mxu0 0
    %2058 = vmatpush1.bf16.msra.mxu0 0
    %2059 = vmatprep.subr.bf16.mxu0 0
    %2060 = vmatpush1.bf16.msra.mxu0 0
    %2061 = vmatprep.subr.bf16.mxu0 0
    %2062 = vmatpush1.bf16.msra.mxu0 0
    %2063 = vmatprep.subr.bf16.mxu0 0
    %2064 = vmatpush1.bf16.msra.mxu0 0
    %2065 = vmatprep.subr.bf16.mxu0 0
    %2066 = vmatpush1.bf16.msra.mxu0 0
    %2067 = vmatprep.subr.bf16.mxu0 0
    %2068 = vmatpush1.bf16.msra.mxu0 0
    %2069 = vmatprep.subr.bf16.mxu0 0
    %2070 = vmatpush1.bf16.msra.mxu0 0
    %2071 = vmatprep.subr.bf16.mxu0 0
    %2072 = vmatpush1.bf16.msra.mxu0 0
    %2073 = vmatprep.subr.bf16.mxu0 0
    %2074 = vmatpush1.bf16.msra.mxu0 0
    %2075 = vmatprep.subr.bf16.mxu0 0
    %2076 = vmatpush1.bf16.msra.mxu0 0
    %2077 = vmatprep.subr.bf16.mxu0 0
    %2078 = vmatpush1.bf16.msra.mxu0 0
    %2079 = vmatprep.subr.bf16.mxu0 0
    %2080 = vmatpush1.bf16.msra.mxu0 0
    %2081 = vmatprep.subr.bf16.mxu0 0
    %2082 = vmatpush1.bf16.msra.mxu0 0
    %2083 = vmatprep.subr.bf16.mxu0 0
    %2084 = vmatpush1.bf16.msra.mxu0 0
    %2085 = vmatprep.mubr.bf16.mxu0 0
    %2086 = vmatmul.mubr.bf16.gmra.mrb[0].mxu0 %v2051
    %v2087 = vpop.f32.mrb[0].mxu0
    %v2088 = vadd.f32 0.0, %v2087
    %v2089 = vpop.f32.mrb[0].mxu0
    %v2090 = vadd.f32 0.0, %v2089
    %v2091 = vpop.f32.mrb[0].mxu0
    %v2092 = vpop.f32.mrb[0].mxu0
    %2093 = vdwg.mxu0
    %v2094 = vsel %vm63, %v2088, %v2090
    %v2095 = vld [vmem:[#allocation2] sm:$0x80]
    %v2096 = vld [vmem:[#allocation2 + $0x8] sm:$0x1]
    %v2098 = vrot.slane %v2095, 7
    %v2100 = vrot.slane %v2096, 7
    %v2103 = vsel %vm227, %v2098, %v2100
    %v2105 = vunpack.c.l.bf16 %v2103
    %v2106 = vadd.f32 %v2105, %v2094
    %v2107 = vxor.u32 %v2106, 2147483648
    %v2108 = vmul.f32 %v2107, 1.442695
    %v2109 = vpow.pop %v2108
    %v2110 = vadd.f32 %v2109, 1.0
    %v2111 = vrcp.pop %v2110
    %v2112 = vmul.f32 1.0, %v2111
    %v2113 = vtanh.pop %v2106
    %v2114 = vmul.f32 %v2112, %v2006
    %2116 = vrot.lane.b32.xlu0 %v2113, 32
    %v2117 = vpop.permute.xlu0 %2116
    %v2119 = vmul.f32 %v2112, %v2117
    %2121 = vrot.lane.b32.xlu0 %v2119, 32
    %v2122 = vpop.permute.xlu0 %2121
    %v2124 = vadd.f32 %v2114, %v2122
    %v2125 = vtanh.pop %v2124
    %2127 = vrot.lane.b32.xlu0 %v2125, 32
    %v2128 = vpop.permute.xlu0 %2127
    %v2130 = vmul.f32 %v2112, %v2128
    %2132 = vrot.lane.b32.xlu0 %v2130, 64
    %v2133 = vpop.permute.xlu0 %2132
    %2135 = vst.msk [vmem:[#allocation3 + $0xe] sm:$0x3] %vm262, %v2133
    %2136 = vrot.lane.b32.xlu0 %v2130, 96
    %v2137 = vpop.permute.xlu0 %2136
    %2139 = vst.msk [vmem:[#allocation3 - $0x2] sm:$0xc] %vm267, %v2137
    %v2140 = vld [vmem:[#allocation3] sm:$0xff]
    %v2141 = vld [vmem:[#allocation3 + $0x8] sm:$0xff]
    %v2142 = vpack.c.bf16 %v2141, %v2140
    %v2143 = vld [vmem:[%s7] sm:$0xf]
    %v2144 = vld [vmem:[%s7 + $0x4] sm:$0xf]
    %v2145 = vld [vmem:[%s7 + $0x8] sm:$0xf]
    %v2146 = vld [vmem:[%s7 + $0xc] sm:$0xf]
    %v2147 = vld [vmem:[%s7 + $0x10] sm:$0xf]
    %v2148 = vld [vmem:[%s7 + $0x14] sm:$0xf]
    %v2149 = vld [vmem:[%s7 + $0x18] sm:$0xf]
    %v2150 = vld [vmem:[%s7 + $0x1c] sm:$0xf]
    %v2151 = vld [vmem:[%s8] sm:$0x1]
    %v2153 = vlaneseq
    %v2154 = vshrl.u32 %v2153, 7
    %v2155 = vsub.s32 0, %v2154
    %v2156 = vrot.slane %v2151, %v2155
    %v2166 = vunpack.c.l.b16 %v2143
    %v2167 = vunpack.c.l.b16 %v2144
    %v2168 = vunpack.c.l.b16 %v2145
    %v2169 = vunpack.c.l.b16 %v2146
    %v2170 = vunpack.c.l.b16 %v2147
    %v2171 = vunpack.c.l.b16 %v2148
    %v2172 = vunpack.c.l.b16 %v2149
    %v2173 = vunpack.c.l.b16 %v2150
    %v2174 = vpack.c.b16 %v2167, %v2166
    %v2175 = vpack.c.b16 %v2169, %v2168
    %v2176 = vpack.c.b16 %v2171, %v2170
    %v2177 = vpack.c.b16 %v2173, %v2172
    %v2183 = vsel %vm1156, %v2142, 0
    %2185 = vmatprep.subr.bf16.mxu0 0
    %2186 = vmatpush1.bf16.msra.mxu0 %v2174
    %2187 = vmatprep.subr.bf16.mxu0 0
    %2188 = vmatpush1.bf16.msra.mxu0 %v2175
    %2189 = vmatprep.subr.bf16.mxu0 0
    %2190 = vmatpush1.bf16.msra.mxu0 %v2176
    %2191 = vmatprep.subr.bf16.mxu0 0
    %2192 = vmatpush1.bf16.msra.mxu0 %v2177
    %2193 = vmatprep.subr.bf16.mxu0 0
    %2194 = vmatpush1.bf16.msra.mxu0 0
    %2195 = vmatprep.subr.bf16.mxu0 0
    %2196 = vmatpush1.bf16.msra.mxu0 0
    %2197 = vmatprep.subr.bf16.mxu0 0
    %2198 = vmatpush1.bf16.msra.mxu0 0
    %2199 = vmatprep.subr.bf16.mxu0 0
    %2200 = vmatpush1.bf16.msra.mxu0 0
    %2201 = vmatprep.subr.bf16.mxu0 0
    %2202 = vmatpush1.bf16.msra.mxu0 0
    %2203 = vmatprep.subr.bf16.mxu0 0
    %2204 = vmatpush1.bf16.msra.mxu0 0
    %2205 = vmatprep.subr.bf16.mxu0 0
    %2206 = vmatpush1.bf16.msra.mxu0 0
    %2207 = vmatprep.subr.bf16.mxu0 0
    %2208 = vmatpush1.bf16.msra.mxu0 0
    %2209 = vmatprep.subr.bf16.mxu0 0
    %2210 = vmatpush1.bf16.msra.mxu0 0
    %2211 = vmatprep.subr.bf16.mxu0 0
    %2212 = vmatpush1.bf16.msra.mxu0 0
    %2213 = vmatprep.subr.bf16.mxu0 0
    %2214 = vmatpush1.bf16.msra.mxu0 0
    %2215 = vmatprep.subr.bf16.mxu0 0
    %2216 = vmatpush1.bf16.msra.mxu0 0
    %2217 = vmatprep.mubr.bf16.mxu0 0
    %2218 = vmatmul.mubr.bf16.gmra.mrb[0].mxu0 %v2183
    %v2219 = vpop.f32.mrb[0].mxu0
    %v2220 = vadd.f32 %v2156, %v2219
    %v2221 = vpop.f32.mrb[0].mxu0
    %v2222 = vpop.f32.mrb[0].mxu0
    %v2223 = vadd.f32 %v2156, %v2222
    %v2224 = vpop.f32.mrb[0].mxu0
    %2225 = vdwg.mxu0
    %v2226 = vld [vmem:[%s0] sm:$0xff]
    %v2227 = vld [vmem:[%s0 + $0x8] sm:$0xff]
    %v2228 = vadd.f32 %v2220, %v2226
    %v2229 = vadd.f32 %v2223, %v2227
    %2230 = vst.msk [vmem:[%s9] sm:$0xff] %vm103, %v2228
    %2231 = vst.msk [vmem:[%s9 + $0x8] sm:$0xff] %vm103, %v2229
    // Predicated region
    $region46: #{blstm_forward.1} parent=1 // pred_check
      _
    $region47: #{blstm_forward.1} parent=1 // pred_check_branch
      %2233 = sbr.rel (0) target = $region49
    $region48: #{blstm_forward.1} parent=1 // pred_region
      _
    $region49: #{blstm_forward.1} parent=1 // pred_fallthru
      _
    // Predicated region
    $region50: #{blstm_forward.1} parent=1 // pred_check
      _
    $region51: #{blstm_forward.1} parent=1 // pred_check_branch
      %2235 = sbr.rel (0) target = $region53
    $region52: #{blstm_forward.1} parent=1 // pred_region
      _
    $region53: #{blstm_forward.1} parent=1 // pred_fallthru
      _
    %2236 = vsyncpa [#allocation5], 1
    %2237 = vsyncpa [#allocation7], 1

</llo_original>
